<compile_context>
chip_gen: v5e
topology: v5e:2x2
jax: 0.10.0
libtpu: 0.0.40
codegen_flags: <defaults>
</compile_context>

<pallas_src>
import functools
import math

import numpy as np
import jax
import jax.numpy as jnp
from jax.experimental import pallas as pl
from jax.experimental.pallas import tpu as pltpu

LRELU_SLOPE = 0.1
MAX_STFT_TILE_M = 512


def get_keep_size_padding(kernel_size: int, dilation: int) -> int:
    return (kernel_size - 1) * dilation // 2


def _round_up(x: int, m: int) -> int:
    return ((x + m - 1) // m) * m


def _conv_out_hw(H, W, kh, kw, sh, sw, ph, pw):
    return (H + 2 * ph - kh) // sh + 1, (W + 2 * pw - kw) // sw + 1


def _leaky(x):
    return jnp.where(x >= 0.0, x, LRELU_SLOPE * x)


# ---------------------------------------------------------------------------
# Kernel 1: fused STFT  (windowed DFT matmul -> frequency-scaled magnitude)
# ---------------------------------------------------------------------------
def _stft_mag_kernel(fr_ref, dft_ref, out_ref):
    """frames @ [hann*cos*scale | hann*sin] -> sqrt(re^2 + im^2).

    The cos/sin halves occupy lanes [0, half) / [half, 2*half); re^2+im^2 is formed with
    a lane roll by `half` (XLU slot, free next to the MXU/VPU work).  The full lane-dense
    2*half-wide block is stored (unmasked vst) in bf16; the n_freq slice is XLA glue.
    """
    cs = jnp.dot(fr_ref[...], dft_ref[...], preferred_element_type=jnp.float32)
    sq = cs * cs
    half = dft_ref.shape[1] // 2
    mag = jnp.sqrt(sq + pltpu.roll(sq, shift=half, axis=1))
    out_ref[...] = mag.astype(out_ref.dtype)


def stft_scaled_mag(frames2d, dft_mat):
    """frames2d: (M, n_fft) bf16.  Returns (M, 2*half) bf16 scaled magnitudes."""
    M, K = frames2d.shape
    W = dft_mat.shape[1]
    tm = min(MAX_STFT_TILE_M, _round_up(M, 16))   # single grid step for small M
    Mp = _round_up(M, tm)
    fr = jnp.pad(frames2d, ((0, Mp - M), (0, 0)))
    out = pl.pallas_call(
        _stft_mag_kernel,
        out_shape=jax.ShapeDtypeStruct((Mp, W), jnp.bfloat16),
        grid=(Mp // tm,),
        in_specs=[
            pl.BlockSpec((tm, K), lambda i: (i, 0)),
            pl.BlockSpec((K, W), lambda i: (0, 0)),
        ],
        out_specs=pl.BlockSpec((tm, W), lambda i: (i, 0)),
        compiler_params=pltpu.CompilerParams(dimension_semantics=("parallel",)),
    )(fr, dft_mat)
    return out[:M]


def log_frequency_scale(n_fft: int, min_clip_bins: int = 12):
    bins = np.arange(0, n_fft // 2 + 1, dtype=np.float64)
    ret = np.log2(np.maximum(float(min_clip_bins), bins) + 2.0) / np.log2(
        float(n_fft // 2 + 1 + 2))
    ret[0] = 1.0
    return ret.astype(np.float32)


def make_dft_mat(n_fft: int):
    """[hann*cos*log_freq_scale | hann*sin], packed into 2*half lanes (half = 64-aligned)."""
    n_freq = n_fft // 2 + 1
    half = max(64, _round_up(n_freq, 64))           # n_freq<=64 -> one 128-lane group
    n = np.arange(n_fft, dtype=np.float64)
    f = np.arange(n_freq, dtype=np.float64)
    ang = 2.0 * np.pi * np.outer(n, f) / n_fft
    win = 0.5 - 0.5 * np.cos(2.0 * np.pi * n / n_fft)   # periodic Hann (torch.hann_window)
    scale = log_frequency_scale(n_fft)
    dft = np.zeros((n_fft, 2 * half), np.float32)
    dft[:, :n_freq] = np.cos(ang) * win[:, None] * scale[None, :]   # scale folded into cos
    dft[:, half:half + n_freq] = np.sin(ang) * win[:, None]         # sign dropped (squared)
    # TODO(synk): keep the DFT operands in f32 if bit-tight parity with the f32 torch
    # reference is required; bf16 operands (~0.4% rel. error) are used for MXU rate/DMA.
    return jnp.asarray(dft, dtype=jnp.bfloat16)


# ---------------------------------------------------------------------------
# Kernel 2: conv0 .. conv_post fully fused (grid-free, VMEM resident)
# ---------------------------------------------------------------------------
def _conv_stack_kernel(p0_ref, w0_ref, b0_ref,
                       g1_ref, w1_ref, b1_ref,
                       g2_ref, w2_ref, b2_ref,
                       g3_ref, w3_ref, b3_ref,
                       g4_ref, w4_ref, b4_ref,
                       f0_ref, f1_ref, f2_ref, f3_ref, f4_ref,
                       *, tail_dims):
    """All five conv layers in one kernel invocation.

    conv0: plain im2col matmul (patches built in the wrapper, Cin=1, tiny).
    conv1..conv_post: in-kernel im2col via ONE constant 0/1 gather matmul per layer
    (G_stack @ act gives every tap window, row blocks 16-aligned), then per-tap
    (m_pad x Cin)@(Cin x Cout) matmuls accumulated in f32.  Intermediate activations
    stay in VMEM as bf16 values; only fmap pre-activations / the score hit HBM.
    """
    # conv0 + leaky_relu (fmap[0] is the post-activation)
    pre0 = jnp.dot(p0_ref[...], w0_ref[...],
                   preferred_element_type=jnp.float32) + b0_ref[...]
    act_f32 = _leaky(pre0)
    f0_ref[...] = act_f32
    act = act_f32.astype(jnp.bfloat16)

    tail_refs = ((g1_ref, w1_ref, b1_ref, f1_ref),
                 (g2_ref, w2_ref, b2_ref, f2_ref),
                 (g3_ref, w3_ref, b3_ref, f3_ref),
                 (g4_ref, w4_ref, b4_ref, f4_ref))
    n_tail = len(tail_refs)
    for li, ((g_ref, w_ref, b_ref, o_ref), (kept, cin, m_pad)) in enumerate(
            zip(tail_refs, tail_dims)):
        # Gather every kept tap window with one 0/1 selection matmul; values are exact
        # copies (selection accumulated in f32), so the bf16 re-cast is lossless.
        pstack = jnp.dot(g_ref[...], act,
                         preferred_element_type=jnp.float32).astype(jnp.bfloat16)
        w = w_ref[...]
        acc = None
        for si, t in enumerate(kept):
            part = jnp.dot(pstack[si * m_pad:(si + 1) * m_pad, :],
                           w[t * cin:(t + 1) * cin, :],
                           preferred_element_type=jnp.float32)
            acc = part if acc is None else acc + part
        pre = acc + b_ref[...]
        o_ref[...] = pre                      # fmap pre-activation / final score (f32)
        if li + 1 < n_tail:
            act = _leaky(pre).astype(jnp.bfloat16)


def _build_gather_stack(B, Hin, Win, Hout, Wout, kh, kw, sh, sw, ph, pw,
                        in_rows, m_pad):
    """Constant 0/1 row-gather matrix (kept_taps*m_pad, in_rows) + kept tap indices.

    Row t*m_pad + m selects the input row feeding output position m = (b, ho, wo) at
    kernel tap t = (i, j); out-of-bounds taps stay all-zero (zero padding) and taps that
    are out of bounds for every output position are dropped entirely.
    """
    blocks, kept = [], []
    for i in range(kh):
        for j in range(kw):
            blk = np.zeros((m_pad, in_rows), np.float32)
            nonzero = False
            for b in range(B):
                for ho in range(Hout):
                    hi = ho * sh + i - ph
                    if hi < 0 or hi >= Hin:
                        continue
                    for wo in range(Wout):
                        wi = wo * sw + j - pw
                        if wi < 0 or wi >= Win:
                            continue
                        blk[(b * Hout + ho) * Wout + wo, (b * Hin + hi) * Win + wi] = 1.0
                        nonzero = True
            if nonzero:
                blocks.append(blk)
                kept.append(i * kw + j)
    g = np.concatenate(blocks, axis=0)
    return jnp.asarray(g, jnp.bfloat16), tuple(kept)


def conv_stack(spec_bft, params, conv_cfg):
    """spec_bft: (B, F, T') bf16 spectrogram.  Runs all convs in ONE fused pallas_call.

    Returns fmap list in NCHW (fmap[-1] is the conv_post output / score map)."""
    B, H0, W0 = spec_bft.shape

    # conv0 im2col as XLA glue (Cin=1; the spectrogram is ~B*F*T' elements, so the
    # KH*KW read inflation is negligible here).
    cin0, cout0, kh0, kw0, sh0, sw0, ph0, pw0 = conv_cfg[0]
    Hout0, Wout0 = _conv_out_hw(H0, W0, kh0, kw0, sh0, sw0, ph0, pw0)
    xp = jnp.pad(spec_bft, ((0, 0), (ph0, ph0), (pw0, pw0)))
    cols = []
    for i in range(kh0):
        for j in range(kw0):
            cols.append(xp[:, i:i + (Hout0 - 1) * sh0 + 1:sh0,
                            j:j + (Wout0 - 1) * sw0 + 1:sw0])
    m0 = B * Hout0 * Wout0
    p0 = jnp.stack(cols, axis=-1).reshape(m0, kh0 * kw0)            # (m0, KH*KW) bf16

    w0, b0 = params[0]
    w0mat = (jnp.transpose(w0, (2, 3, 1, 0))
             .reshape(kh0 * kw0 * cin0, cout0).astype(jnp.bfloat16))
    b0v = b0.reshape(1, cout0).astype(jnp.float32)

    # Tail layers: constant gather matrices + im2col weight matrices (all VMEM resident).
    tail_args, tail_dims, tail_geom = [], [], []
    out_shapes = [jax.ShapeDtypeStruct((m0, cout0), jnp.float32)]    # fmap0 (post-act)
    Hin, Win, in_rows = Hout0, Wout0, m0
    for li in range(1, 5):
        cin, cout, kh, kw, sh, sw, ph, pw = conv_cfg[li]
        Hout, Wout = _conv_out_hw(Hin, Win, kh, kw, sh, sw, ph, pw)
        m_out = B * Hout * Wout
        m_pad = _round_up(m_out, 16)     # 16: bf16 sublane packing -> aligned row slices
        g, kept = _build_gather_stack(B, Hin, Win, Hout, Wout, kh, kw, sh, sw,
                                      ph, pw, in_rows, m_pad)
        w, b = params[li]
        wmat = (jnp.transpose(w, (2, 3, 1, 0))
                .reshape(kh * kw * cin, cout).astype(jnp.bfloat16))
        bv = b.reshape(1, cout).astype(jnp.float32)
        tail_args += [g, wmat, bv]
        tail_dims.append((kept, cin, m_pad))
        tail_geom.append((Hout, Wout, m_out, cout))
        out_shapes.append(jax.ShapeDtypeStruct((m_pad, cout), jnp.float32))
        Hin, Win, in_rows = Hout, Wout, m_pad

    outs = pl.pallas_call(
        functools.partial(_conv_stack_kernel, tail_dims=tuple(tail_dims)),
        out_shape=tuple(out_shapes),
    )(p0, w0mat, b0v, *tail_args)

    fmap = [jnp.transpose(outs[0].reshape(B, Hout0, Wout0, cout0), (0, 3, 1, 2))]
    for li, (Hout, Wout, m_out, cout) in enumerate(tail_geom):
        o = outs[1 + li][:m_out].reshape(B, Hout, Wout, cout)
        fmap.append(jnp.transpose(o, (0, 3, 1, 2)))
    return fmap


# ---------------------------------------------------------------------------
# Module setup (deterministic parameters)
# ---------------------------------------------------------------------------
def init_params(key, kernel_size: int = 5):
    """Deterministic parameters matching the module's shapes (weight_norm/SAN folded)."""
    conv_shapes = [
        (16, 1, kernel_size, 7),
        (32, 16, kernel_size, 7),
        (32, 32, kernel_size, 7),
        (32, 32, kernel_size, 3),
    ]
    params = []
    for shp in conv_shapes:
        key, k1, k2 = jax.random.split(key, 3)
        fan_in = shp[1] * shp[2] * shp[3]
        bound = 1.0 / math.sqrt(fan_in)
        w = jax.random.uniform(k1, shp, jnp.float32, -bound, bound)
        b = jax.random.uniform(k2, (shp[0],), jnp.float32, -bound, bound)
        params.append((w, b))
    # SANConv2d(32, 1, (3, 1), 1, padding=(1, 0)): eval branch at deterministic init is a
    # plain conv with no output bias.
    key, k1 = jax.random.split(key)
    fan_in = 32 * 3 * 1
    bound = 1.0 / math.sqrt(fan_in)
    wp = jax.random.uniform(k1, (1, 32, 3, 1), jnp.float32, -bound, bound)
    params.append((wp, jnp.zeros((1,), jnp.float32)))
    return params


# ---------------------------------------------------------------------------
# Forward pass
# ---------------------------------------------------------------------------
def discriminator_spec_w_forward(x, params, *, period: int, hop_length: int,
                                 kernel_size: int = 5, stride: int = 3):
    """x: (B, T) float32 audio.  Returns (flattened score, fmap list in NCHW)."""
    B, T = x.shape
    n_fft = period
    n_freq = n_fft // 2 + 1
    nframes = (T - n_fft) // hop_length + 1          # center=False, no padding

    # Frame extraction in bf16 (XLA gather glue).
    idx = jnp.arange(nframes)[:, None] * hop_length + jnp.arange(n_fft)[None, :]
    frames = x.astype(jnp.bfloat16)[:, idx].reshape(B * nframes, n_fft)

    dft_mat = make_dft_mat(n_fft)
    mag = stft_scaled_mag(frames, dft_mat)[:, :n_freq]                  # (B*T', F) bf16
    spec = jnp.transpose(mag.reshape(B, nframes, n_freq), (0, 2, 1))    # (B, F, T')

    pad_h = get_keep_size_padding(kernel_size, 1)
    conv_cfg = [
        # (cin, cout, kh, kw, sh, sw, ph, pw)
        (1, 16, kernel_size, 7, stride, 2, pad_h, 2),
        (16, 32, kernel_size, 7, stride, 2, pad_h, 2),
        (32, 32, kernel_size, 7, stride, 2, pad_h, 2),
        (32, 32, kernel_size, 3, 1, 1, pad_h, 2),
        (32, 1, 3, 1, 1, 1, 1, 0),                 # SANConv2d post conv (eval path)
    ]
    # TODO(synk): flg_train=True dual-output (fun/dir) SAN branch is not implemented.
    fmap = conv_stack(spec, params, conv_cfg)

    out = fmap[-1].reshape(B, -1)                  # torch.flatten(x, 1, -1)
    return out, fmap


# ---------------------------------------------------------------------------
if __name__ == "__main__":
    key = jax.random.PRNGKey(0)
    k_x, k_p = jax.random.split(key)

    period = 32        # n_fft -> 17 frequency bins
    hop_length = 8
    B, T = 2, 256      # -> 29 STFT frames

    x = jax.random.normal(k_x, (B, T), dtype=jnp.float32)
    params = init_params(k_p)

    fwd = jax.jit(functools.partial(discriminator_spec_w_forward,
                                    period=period, hop_length=hop_length))
    out, fmap = fwd(x, params)
    jax.block_until_ready(out)
    for f in fmap:
        jax.block_until_ready(f)
    print("KERNEL_OK")
</pallas_src>

<mosaic_0001>
module attributes {stable_mosaic.version = 11 : i64} {
  func.func @_stft_mag_kernel(%arg0: i32, %arg1: memref<64x32xbf16, #tpu.memory_space<vmem>>, %arg2: memref<32x128xbf16, #tpu.memory_space<vmem>>, %arg3: memref<64x128xbf16, #tpu.memory_space<vmem>>) attributes {dimension_semantics = [#tpu.dimension_semantics<parallel>], iteration_bounds = array<i64: 1>, scalar_prefetch = 0 : i64, scratch_operands = 0 : i64, tpu.core_type = #tpu.core_type<tc>, window_params = [{transform_indices = @transform_0, window_bounds = array<i64: 64, 32>}, {pipeline_mode = #tpu.pipeline_mode<synchronous>, transform_indices = @transform_1, window_bounds = array<i64: 32, 128>}, {transform_indices = @transform_2, window_bounds = array<i64: 64, 128>}]} {
    %c0 = arith.constant 0 : index
    %c0_0 = arith.constant 0 : index
    %0 = vector.load %arg1[%c0, %c0_0] : memref<64x32xbf16, #tpu.memory_space<vmem>>, vector<64x32xbf16>
    %c0_1 = arith.constant 0 : index
    %c0_2 = arith.constant 0 : index
    %1 = vector.load %arg2[%c0_1, %c0_2] : memref<32x128xbf16, #tpu.memory_space<vmem>>, vector<32x128xbf16>
    %cst = arith.constant dense<0.000000e+00> : vector<64x128xf32>
    %2 = tpu.matmul %0, %1, %cst {dimension_numbers = #tpu.dot_dimension_numbers<[1], [0], [0], [1], [0, 0, 1, 1], [], []>} : vector<64x32xbf16>, vector<32x128xbf16>, vector<64x128xf32> -> vector<64x128xf32>
    %3 = arith.mulf %2, %2 : vector<64x128xf32>
    %c64_i32 = arith.constant 64 : i32
    %4 = tpu.dynamic_rotate %3 by %c64_i32 dim 1 : vector<64x128xf32>, i32 -> vector<64x128xf32>
    %5 = arith.addf %3, %4 : vector<64x128xf32>
    %6 = math.sqrt %5 : vector<64x128xf32>
    %7 = arith.truncf %6 : vector<64x128xf32> to vector<64x128xbf16>
    %c0_3 = arith.constant 0 : index
    %c0_4 = arith.constant 0 : index
    %8 = vector.load %arg3[%c0_3, %c0_4] : memref<64x128xbf16, #tpu.memory_space<vmem>>, vector<64x128xbf16>
    tpu.vector_store %arg3[%c0_3, %c0_4], %7 {strides = array<i32>} : memref<64x128xbf16, #tpu.memory_space<vmem>>, vector<64x128xbf16>,
    return
  }
  func.func @transform_0(%arg0: i32) -> (i32, i32) {
    %c0_i32 = arith.constant 0 : i32
    %c0_i32_0 = arith.constant 0 : i32
    return %arg0, %c0_i32 : i32, i32
  }
  func.func @transform_1(%arg0: i32) -> (i32, i32) {
    %c0_i32 = arith.constant 0 : i32
    %c0_i32_0 = arith.constant 0 : i32
    %c0_i32_1 = arith.constant 0 : i32
    return %c0_i32, %c0_i32_0 : i32, i32
  }
  func.func @transform_2(%arg0: i32) -> (i32, i32) {
    %c0_i32 = arith.constant 0 : i32
    %c0_i32_0 = arith.constant 0 : i32
    return %arg0, %c0_i32 : i32, i32
  }
}

module attributes {stable_mosaic.version = 11 : i64} {
  func.func @_conv_stack_kernel(%arg0: memref<168x35xbf16, #tpu.memory_space<vmem>>, %arg1: memref<35x16xbf16, #tpu.memory_space<vmem>>, %arg2: memref<1x16xf32, #tpu.memory_space<vmem>>, %arg3: memref<1120x168xbf16, #tpu.memory_space<vmem>>, %arg4: memref<560x32xbf16, #tpu.memory_space<vmem>>, %arg5: memref<1x32xf32, #tpu.memory_space<vmem>>, %arg6: memref<224x32xbf16, #tpu.memory_space<vmem>>, %arg7: memref<1120x32xbf16, #tpu.memory_space<vmem>>, %arg8: memref<1x32xf32, #tpu.memory_space<vmem>>, %arg9: memref<48x16xbf16, #tpu.memory_space<vmem>>, %arg10: memref<480x32xbf16, #tpu.memory_space<vmem>>, %arg11: memref<1x32xf32, #tpu.memory_space<vmem>>, %arg12: memref<16x16xbf16, #tpu.memory_space<vmem>>, %arg13: memref<96x1xbf16, #tpu.memory_space<vmem>>, %arg14: memref<1x1xf32, #tpu.memory_space<vmem>>, %arg15: memref<168x16xf32, #tpu.memory_space<vmem>>, %arg16: memref<32x32xf32, #tpu.memory_space<vmem>>, %arg17: memref<16x32xf32, #tpu.memory_space<vmem>>, %arg18: memref<16x32xf32, #tpu.memory_space<vmem>>, %arg19: memref<16x1xf32, #tpu.memory_space<vmem>>) attributes {dimension_semantics = [], scalar_prefetch = 0 : i64, scratch_operands = 0 : i64, tpu.core_type = #tpu.core_type<tc>} {
    %c0 = arith.constant 0 : index
    %c0_0 = arith.constant 0 : index
    %0 = vector.load %arg0[%c0, %c0_0] : memref<168x35xbf16, #tpu.memory_space<vmem>>, vector<168x35xbf16>
    %c0_1 = arith.constant 0 : index
    %c0_2 = arith.constant 0 : index
    %1 = vector.load %arg1[%c0_1, %c0_2] : memref<35x16xbf16, #tpu.memory_space<vmem>>, vector<35x16xbf16>
    %cst = arith.constant dense<0.000000e+00> : vector<168x16xf32>
    %2 = tpu.matmul %0, %1, %cst {dimension_numbers = #tpu.dot_dimension_numbers<[1], [0], [0], [1], [0, 0, 1, 1], [], []>} : vector<168x35xbf16>, vector<35x16xbf16>, vector<168x16xf32> -> vector<168x16xf32>
    %c0_3 = arith.constant 0 : index
    %c0_4 = arith.constant 0 : index
    %3 = vector.load %arg2[%c0_3, %c0_4] : memref<1x16xf32, #tpu.memory_space<vmem>>, vector<1x16xf32>
    %4 = vector.broadcast %3 : vector<1x16xf32> to vector<168x16xf32>
    %5 = arith.addf %2, %4 : vector<168x16xf32>
    %cst_5 = arith.constant 0.000000e+00 : f32
    %6 = vector.broadcast %cst_5 : f32 to vector<168x16xf32>
    %7 = arith.cmpf oge, %5, %6 : vector<168x16xf32>
    %cst_6 = arith.constant 1.000000e-01 : f32
    %8 = vector.broadcast %cst_6 : f32 to vector<168x16xf32>
    %9 = arith.mulf %8, %5 : vector<168x16xf32>
    %10 = arith.select %7, %5, %9 : vector<168x16xi1>, vector<168x16xf32>
    %c0_7 = arith.constant 0 : index
    %c0_8 = arith.constant 0 : index
    %11 = vector.load %arg15[%c0_7, %c0_8] : memref<168x16xf32, #tpu.memory_space<vmem>>, vector<168x16xf32>
    tpu.vector_store %arg15[%c0_7, %c0_8], %10 {strides = array<i32>} : memref<168x16xf32, #tpu.memory_space<vmem>>, vector<168x16xf32>,
    %12 = arith.truncf %10 : vector<168x16xf32> to vector<168x16xbf16>
    %c0_9 = arith.constant 0 : index
    %c0_10 = arith.constant 0 : index
    %13 = vector.load %arg3[%c0_9, %c0_10] : memref<1120x168xbf16, #tpu.memory_space<vmem>>, vector<1120x168xbf16>
    %cst_11 = arith.constant dense<0.000000e+00> : vector<1120x16xf32>
    %14 = tpu.matmul %13, %12, %cst_11 {dimension_numbers = #tpu.dot_dimension_numbers<[1], [0], [0], [1], [0, 0, 1, 1], [], []>} : vector<1120x168xbf16>, vector<168x16xbf16>, vector<1120x16xf32> -> vector<1120x16xf32>
    %15 = arith.truncf %14 : vector<1120x16xf32> to vector<1120x16xbf16>
    %c0_12 = arith.constant 0 : index
    %c0_13 = arith.constant 0 : index
    %16 = vector.load %arg4[%c0_12, %c0_13] : memref<560x32xbf16, #tpu.memory_space<vmem>>, vector<560x32xbf16>
    %17 = vector.extract_strided_slice %15 {offsets = [0, 0], sizes = [32, 16], strides = [1, 1]} : vector<1120x16xbf16> to vector<32x16xbf16>
    %18 = vector.extract_strided_slice %16 {offsets = [0, 0], sizes = [16, 32], strides = [1, 1]} : vector<560x32xbf16> to vector<16x32xbf16>
    %cst_14 = arith.constant dense<0.000000e+00> : vector<32x32xf32>
    %19 = tpu.matmul %17, %18, %cst_14 {dimension_numbers = #tpu.dot_dimension_numbers<[1], [0], [0], [1], [0, 0, 1, 1], [], []>} : vector<32x16xbf16>, vector<16x32xbf16>, vector<32x32xf32> -> vector<32x32xf32>
    %20 = vector.extract_strided_slice %15 {offsets = [32, 0], sizes = [32, 16], strides = [1, 1]} : vector<1120x16xbf16> to vector<32x16xbf16>
    %21 = vector.extract_strided_slice %16 {offsets = [16, 0], sizes = [16, 32], strides = [1, 1]} : vector<560x32xbf16> to vector<16x32xbf16>
    %cst_15 = arith.constant dense<0.000000e+00> : vector<32x32xf32>
    %22 = tpu.matmul %20, %21, %cst_15 {dimension_numbers = #tpu.dot_dimension_numbers<[1], [0], [0], [1], [0, 0, 1, 1], [], []>} : vector<32x16xbf16>, vector<16x32xbf16>, vector<32x32xf32> -> vector<32x32xf32>
    %23 = arith.addf %19, %22 : vector<32x32xf32>
    %24 = vector.extract_strided_slice %15 {offsets = [64, 0], sizes = [32, 16], strides = [1, 1]} : vector<1120x16xbf16> to vector<32x16xbf16>
    %25 = vector.extract_strided_slice %16 {offsets = [32, 0], sizes = [16, 32], strides = [1, 1]} : vector<560x32xbf16> to vector<16x32xbf16>
    %cst_16 = arith.constant dense<0.000000e+00> : vector<32x32xf32>
    %26 = tpu.matmul %24, %25, %cst_16 {dimension_numbers = #tpu.dot_dimension_numbers<[1], [0], [0], [1], [0, 0, 1, 1], [], []>} : vector<32x16xbf16>, vector<16x32xbf16>, vector<32x32xf32> -> vector<32x32xf32>
    %27 = arith.addf %23, %26 : vector<32x32xf32>
    %28 = vector.extract_strided_slice %15 {offsets = [96, 0], sizes = [32, 16], strides = [1, 1]} : vector<1120x16xbf16> to vector<32x16xbf16>
    %29 = vector.extract_strided_slice %16 {offsets = [48, 0], sizes = [16, 32], strides = [1, 1]} : vector<560x32xbf16> to vector<16x32xbf16>
    %cst_17 = arith.constant dense<0.000000e+00> : vector<32x32xf32>
    %30 = tpu.matmul %28, %29, %cst_17 {dimension_numbers = #tpu.dot_dimension_numbers<[1], [0], [0], [1], [0, 0, 1, 1], [], []>} : vector<32x16xbf16>, vector<16x32xbf16>, vector<32x32xf32> -> vector<32x32xf32>
    %31 = arith.addf %27, %30 : vector<32x32xf32>
    %32 = vector.extract_strided_slice %15 {offsets = [128, 0], sizes = [32, 16], strides = [1, 1]} : vector<1120x16xbf16> to vector<32x16xbf16>
    %33 = vector.extract_strided_slice %16 {offsets = [64, 0], sizes = [16, 32], strides = [1, 1]} : vector<560x32xbf16> to vector<16x32xbf16>
    %cst_18 = arith.constant dense<0.000000e+00> : vector<32x32xf32>
    %34 = tpu.matmul %32, %33, %cst_18 {dimension_numbers = #tpu.dot_dimension_numbers<[1], [0], [0], [1], [0, 0, 1, 1], [], []>} : vector<32x16xbf16>, vector<16x32xbf16>, vector<32x32xf32> -> vector<32x32xf32>
    %35 = arith.addf %31, %34 : vector<32x32xf32>
    %36 = vector.extract_strided_slice %15 {offsets = [160, 0], sizes = [32, 16], strides = [1, 1]} : vector<1120x16xbf16> to vector<32x16xbf16>
    %37 = vector.extract_strided_slice %16 {offsets = [80, 0], sizes = [16, 32], strides = [1, 1]} : vector<560x32xbf16> to vector<16x32xbf16>
    %cst_19 = arith.constant dense<0.000000e+00> : vector<32x32xf32>
    %38 = tpu.matmul %36, %37, %cst_19 {dimension_numbers = #tpu.dot_dimension_numbers<[1], [0], [0], [1], [0, 0, 1, 1], [], []>} : vector<32x16xbf16>, vector<16x32xbf16>, vector<32x32xf32> -> vector<32x32xf32>
    %39 = arith.addf %35, %38 : vector<32x32xf32>
    %40 = vector.extract_strided_slice %15 {offsets = [192, 0], sizes = [32, 16], strides = [1, 1]} : vector<1120x16xbf16> to vector<32x16xbf16>
    %41 = vector.extract_strided_slice %16 {offsets = [96, 0], sizes = [16, 32], strides = [1, 1]} : vector<560x32xbf16> to vector<16x32xbf16>
    %cst_20 = arith.constant dense<0.000000e+00> : vector<32x32xf32>
    %42 = tpu.matmul %40, %41, %cst_20 {dimension_numbers = #tpu.dot_dimension_numbers<[1], [0], [0], [1], [0, 0, 1, 1], [], []>} : vector<32x16xbf16>, vector<16x32xbf16>, vector<32x32xf32> -> vector<32x32xf32>
    %43 = arith.addf %39, %42 : vector<32x32xf32>
    %44 = vector.extract_strided_slice %15 {offsets = [224, 0], sizes = [32, 16], strides = [1, 1]} : vector<1120x16xbf16> to vector<32x16xbf16>
    %45 = vector.extract_strided_slice %16 {offsets = [112, 0], sizes = [16, 32], strides = [1, 1]} : vector<560x32xbf16> to vector<16x32xbf16>
    %cst_21 = arith.constant dense<0.000000e+00> : vector<32x32xf32>
    %46 = tpu.matmul %44, %45, %cst_21 {dimension_numbers = #tpu.dot_dimension_numbers<[1], [0], [0], [1], [0, 0, 1, 1], [], []>} : vector<32x16xbf16>, vector<16x32xbf16>, vector<32x32xf32> -> vector<32x32xf32>
    %47 = arith.addf %43, %46 : vector<32x32xf32>
    %48 = vector.extract_strided_slice %15 {offsets = [256, 0], sizes = [32, 16], strides = [1, 1]} : vector<1120x16xbf16> to vector<32x16xbf16>
    %49 = vector.extract_strided_slice %16 {offsets = [128, 0], sizes = [16, 32], strides = [1, 1]} : vector<560x32xbf16> to vector<16x32xbf16>
    %cst_22 = arith.constant dense<0.000000e+00> : vector<32x32xf32>
    %50 = tpu.matmul %48, %49, %cst_22 {dimension_numbers = #tpu.dot_dimension_numbers<[1], [0], [0], [1], [0, 0, 1, 1], [], []>} : vector<32x16xbf16>, vector<16x32xbf16>, vector<32x32xf32> -> vector<32x32xf32>
    %51 = arith.addf %47, %50 : vector<32x32xf32>
    %52 = vector.extract_strided_slice %15 {offsets = [288, 0], sizes = [32, 16], strides = [1, 1]} : vector<1120x16xbf16> to vector<32x16xbf16>
    %53 = vector.extract_strided_slice %16 {offsets = [144, 0], sizes = [16, 32], strides = [1, 1]} : vector<560x32xbf16> to vector<16x32xbf16>
    %cst_23 = arith.constant dense<0.000000e+00> : vector<32x32xf32>
    %54 = tpu.matmul %52, %53, %cst_23 {dimension_numbers = #tpu.dot_dimension_numbers<[1], [0], [0], [1], [0, 0, 1, 1], [], []>} : vector<32x16xbf16>, vector<16x32xbf16>, vector<32x32xf32> -> vector<32x32xf32>
    %55 = arith.addf %51, %54 : vector<32x32xf32>
    %56 = vector.extract_strided_slice %15 {offsets = [320, 0], sizes = [32, 16], strides = [1, 1]} : vector<1120x16xbf16> to vector<32x16xbf16>
    %57 = vector.extract_strided_slice %16 {offsets = [160, 0], sizes = [16, 32], strides = [1, 1]} : vector<560x32xbf16> to vector<16x32xbf16>
    %cst_24 = arith.constant dense<0.000000e+00> : vector<32x32xf32>
    %58 = tpu.matmul %56, %57, %cst_24 {dimension_numbers = #tpu.dot_dimension_numbers<[1], [0], [0], [1], [0, 0, 1, 1], [], []>} : vector<32x16xbf16>, vector<16x32xbf16>, vector<32x32xf32> -> vector<32x32xf32>
    %59 = arith.addf %55, %58 : vector<32x32xf32>
    %60 = vector.extract_strided_slice %15 {offsets = [352, 0], sizes = [32, 16], strides = [1, 1]} : vector<1120x16xbf16> to vector<32x16xbf16>
    %61 = vector.extract_strided_slice %16 {offsets = [176, 0], sizes = [16, 32], strides = [1, 1]} : vector<560x32xbf16> to vector<16x32xbf16>
    %cst_25 = arith.constant dense<0.000000e+00> : vector<32x32xf32>
    %62 = tpu.matmul %60, %61, %cst_25 {dimension_numbers = #tpu.dot_dimension_numbers<[1], [0], [0], [1], [0, 0, 1, 1], [], []>} : vector<32x16xbf16>, vector<16x32xbf16>, vector<32x32xf32> -> vector<32x32xf32>
    %63 = arith.addf %59, %62 : vector<32x32xf32>
    %64 = vector.extract_strided_slice %15 {offsets = [384, 0], sizes = [32, 16], strides = [1, 1]} : vector<1120x16xbf16> to vector<32x16xbf16>
    %65 = vector.extract_strided_slice %16 {offsets = [192, 0], sizes = [16, 32], strides = [1, 1]} : vector<560x32xbf16> to vector<16x32xbf16>
    %cst_26 = arith.constant dense<0.000000e+00> : vector<32x32xf32>
    %66 = tpu.matmul %64, %65, %cst_26 {dimension_numbers = #tpu.dot_dimension_numbers<[1], [0], [0], [1], [0, 0, 1, 1], [], []>} : vector<32x16xbf16>, vector<16x32xbf16>, vector<32x32xf32> -> vector<32x32xf32>
    %67 = arith.addf %63, %66 : vector<32x32xf32>
    %68 = vector.extract_strided_slice %15 {offsets = [416, 0], sizes = [32, 16], strides = [1, 1]} : vector<1120x16xbf16> to vector<32x16xbf16>
    %69 = vector.extract_strided_slice %16 {offsets = [208, 0], sizes = [16, 32], strides = [1, 1]} : vector<560x32xbf16> to vector<16x32xbf16>
    %cst_27 = arith.constant dense<0.000000e+00> : vector<32x32xf32>
    %70 = tpu.matmul %68, %69, %cst_27 {dimension_numbers = #tpu.dot_dimension_numbers<[1], [0], [0], [1], [0, 0, 1, 1], [], []>} : vector<32x16xbf16>, vector<16x32xbf16>, vector<32x32xf32> -> vector<32x32xf32>
    %71 = arith.addf %67, %70 : vector<32x32xf32>
    %72 = vector.extract_strided_slice %15 {offsets = [448, 0], sizes = [32, 16], strides = [1, 1]} : vector<1120x16xbf16> to vector<32x16xbf16>
    %73 = vector.extract_strided_slice %16 {offsets = [224, 0], sizes = [16, 32], strides = [1, 1]} : vector<560x32xbf16> to vector<16x32xbf16>
    %cst_28 = arith.constant dense<0.000000e+00> : vector<32x32xf32>
    %74 = tpu.matmul %72, %73, %cst_28 {dimension_numbers = #tpu.dot_dimension_numbers<[1], [0], [0], [1], [0, 0, 1, 1], [], []>} : vector<32x16xbf16>, vector<16x32xbf16>, vector<32x32xf32> -> vector<32x32xf32>
    %75 = arith.addf %71, %74 : vector<32x32xf32>
    %76 = vector.extract_strided_slice %15 {offsets = [480, 0], sizes = [32, 16], strides = [1, 1]} : vector<1120x16xbf16> to vector<32x16xbf16>
    %77 = vector.extract_strided_slice %16 {offsets = [240, 0], sizes = [16, 32], strides = [1, 1]} : vector<560x32xbf16> to vector<16x32xbf16>
    %cst_29 = arith.constant dense<0.000000e+00> : vector<32x32xf32>
    %78 = tpu.matmul %76, %77, %cst_29 {dimension_numbers = #tpu.dot_dimension_numbers<[1], [0], [0], [1], [0, 0, 1, 1], [], []>} : vector<32x16xbf16>, vector<16x32xbf16>, vector<32x32xf32> -> vector<32x32xf32>
    %79 = arith.addf %75, %78 : vector<32x32xf32>
    %80 = vector.extract_strided_slice %15 {offsets = [512, 0], sizes = [32, 16], strides = [1, 1]} : vector<1120x16xbf16> to vector<32x16xbf16>
    %81 = vector.extract_strided_slice %16 {offsets = [256, 0], sizes = [16, 32], strides = [1, 1]} : vector<560x32xbf16> to vector<16x32xbf16>
    %cst_30 = arith.constant dense<0.000000e+00> : vector<32x32xf32>
    %82 = tpu.matmul %80, %81, %cst_30 {dimension_numbers = #tpu.dot_dimension_numbers<[1], [0], [0], [1], [0, 0, 1, 1], [], []>} : vector<32x16xbf16>, vector<16x32xbf16>, vector<32x32xf32> -> vector<32x32xf32>
    %83 = arith.addf %79, %82 : vector<32x32xf32>
    %84 = vector.extract_strided_slice %15 {offsets = [544, 0], sizes = [32, 16], strides = [1, 1]} : vector<1120x16xbf16> to vector<32x16xbf16>
    %85 = vector.extract_strided_slice %16 {offsets = [272, 0], sizes = [16, 32], strides = [1, 1]} : vector<560x32xbf16> to vector<16x32xbf16>
    %cst_31 = arith.constant dense<0.000000e+00> : vector<32x32xf32>
    %86 = tpu.matmul %84, %85, %cst_31 {dimension_numbers = #tpu.dot_dimension_numbers<[1], [0], [0], [1], [0, 0, 1, 1], [], []>} : vector<32x16xbf16>, vector<16x32xbf16>, vector<32x32xf32> -> vector<32x32xf32>
    %87 = arith.addf %83, %86 : vector<32x32xf32>
    %88 = vector.extract_strided_slice %15 {offsets = [576, 0], sizes = [32, 16], strides = [1, 1]} : vector<1120x16xbf16> to vector<32x16xbf16>
    %89 = vector.extract_strided_slice %16 {offsets = [288, 0], sizes = [16, 32], strides = [1, 1]} : vector<560x32xbf16> to vector<16x32xbf16>
    %cst_32 = arith.constant dense<0.000000e+00> : vector<32x32xf32>
    %90 = tpu.matmul %88, %89, %cst_32 {dimension_numbers = #tpu.dot_dimension_numbers<[1], [0], [0], [1], [0, 0, 1, 1], [], []>} : vector<32x16xbf16>, vector<16x32xbf16>, vector<32x32xf32> -> vector<32x32xf32>
    %91 = arith.addf %87, %90 : vector<32x32xf32>
    %92 = vector.extract_strided_slice %15 {offsets = [608, 0], sizes = [32, 16], strides = [1, 1]} : vector<1120x16xbf16> to vector<32x16xbf16>
    %93 = vector.extract_strided_slice %16 {offsets = [304, 0], sizes = [16, 32], strides = [1, 1]} : vector<560x32xbf16> to vector<16x32xbf16>
    %cst_33 = arith.constant dense<0.000000e+00> : vector<32x32xf32>
    %94 = tpu.matmul %92, %93, %cst_33 {dimension_numbers = #tpu.dot_dimension_numbers<[1], [0], [0], [1], [0, 0, 1, 1], [], []>} : vector<32x16xbf16>, vector<16x32xbf16>, vector<32x32xf32> -> vector<32x32xf32>
    %95 = arith.addf %91, %94 : vector<32x32xf32>
    %96 = vector.extract_strided_slice %15 {offsets = [640, 0], sizes = [32, 16], strides = [1, 1]} : vector<1120x16xbf16> to vector<32x16xbf16>
    %97 = vector.extract_strided_slice %16 {offsets = [320, 0], sizes = [16, 32], strides = [1, 1]} : vector<560x32xbf16> to vector<16x32xbf16>
    %cst_34 = arith.constant dense<0.000000e+00> : vector<32x32xf32>
    %98 = tpu.matmul %96, %97, %cst_34 {dimension_numbers = #tpu.dot_dimension_numbers<[1], [0], [0], [1], [0, 0, 1, 1], [], []>} : vector<32x16xbf16>, vector<16x32xbf16>, vector<32x32xf32> -> vector<32x32xf32>
    %99 = arith.addf %95, %98 : vector<32x32xf32>
    %100 = vector.extract_strided_slice %15 {offsets = [672, 0], sizes = [32, 16], strides = [1, 1]} : vector<1120x16xbf16> to vector<32x16xbf16>
    %101 = vector.extract_strided_slice %16 {offsets = [336, 0], sizes = [16, 32], strides = [1, 1]} : vector<560x32xbf16> to vector<16x32xbf16>
    %cst_35 = arith.constant dense<0.000000e+00> : vector<32x32xf32>
    %102 = tpu.matmul %100, %101, %cst_35 {dimension_numbers = #tpu.dot_dimension_numbers<[1], [0], [0], [1], [0, 0, 1, 1], [], []>} : vector<32x16xbf16>, vector<16x32xbf16>, vector<32x32xf32> -> vector<32x32xf32>
    %103 = arith.addf %99, %102 : vector<32x32xf32>
    %104 = vector.extract_strided_slice %15 {offsets = [704, 0], sizes = [32, 16], strides = [1, 1]} : vector<1120x16xbf16> to vector<32x16xbf16>
    %105 = vector.extract_strided_slice %16 {offsets = [352, 0], sizes = [16, 32], strides = [1, 1]} : vector<560x32xbf16> to vector<16x32xbf16>
    %cst_36 = arith.constant dense<0.000000e+00> : vector<32x32xf32>
    %106 = tpu.matmul %104, %105, %cst_36 {dimension_numbers = #tpu.dot_dimension_numbers<[1], [0], [0], [1], [0, 0, 1, 1], [], []>} : vector<32x16xbf16>, vector<16x32xbf16>, vector<32x32xf32> -> vector<32x32xf32>
    %107 = arith.addf %103, %106 : vector<32x32xf32>
    %108 = vector.extract_strided_slice %15 {offsets = [736, 0], sizes = [32, 16], strides = [1, 1]} : vector<1120x16xbf16> to vector<32x16xbf16>
    %109 = vector.extract_strided_slice %16 {offsets = [368, 0], sizes = [16, 32], strides = [1, 1]} : vector<560x32xbf16> to vector<16x32xbf16>
    %cst_37 = arith.constant dense<0.000000e+00> : vector<32x32xf32>
    %110 = tpu.matmul %108, %109, %cst_37 {dimension_numbers = #tpu.dot_dimension_numbers<[1], [0], [0], [1], [0, 0, 1, 1], [], []>} : vector<32x16xbf16>, vector<16x32xbf16>, vector<32x32xf32> -> vector<32x32xf32>
    %111 = arith.addf %107, %110 : vector<32x32xf32>
    %112 = vector.extract_strided_slice %15 {offsets = [768, 0], sizes = [32, 16], strides = [1, 1]} : vector<1120x16xbf16> to vector<32x16xbf16>
    %113 = vector.extract_strided_slice %16 {offsets = [384, 0], sizes = [16, 32], strides = [1, 1]} : vector<560x32xbf16> to vector<16x32xbf16>
    %cst_38 = arith.constant dense<0.000000e+00> : vector<32x32xf32>
    %114 = tpu.matmul %112, %113, %cst_38 {dimension_numbers = #tpu.dot_dimension_numbers<[1], [0], [0], [1], [0, 0, 1, 1], [], []>} : vector<32x16xbf16>, vector<16x32xbf16>, vector<32x32xf32> -> vector<32x32xf32>
    %115 = arith.addf %111, %114 : vector<32x32xf32>
    %116 = vector.extract_strided_slice %15 {offsets = [800, 0], sizes = [32, 16], strides = [1, 1]} : vector<1120x16xbf16> to vector<32x16xbf16>
    %117 = vector.extract_strided_slice %16 {offsets = [400, 0], sizes = [16, 32], strides = [1, 1]} : vector<560x32xbf16> to vector<16x32xbf16>
    %cst_39 = arith.constant dense<0.000000e+00> : vector<32x32xf32>
    %118 = tpu.matmul %116, %117, %cst_39 {dimension_numbers = #tpu.dot_dimension_numbers<[1], [0], [0], [1], [0, 0, 1, 1], [], []>} : vector<32x16xbf16>, vector<16x32xbf16>, vector<32x32xf32> -> vector<32x32xf32>
    %119 = arith.addf %115, %118 : vector<32x32xf32>
    %120 = vector.extract_strided_slice %15 {offsets = [832, 0], sizes = [32, 16], strides = [1, 1]} : vector<1120x16xbf16> to vector<32x16xbf16>
    %121 = vector.extract_strided_slice %16 {offsets = [416, 0], sizes = [16, 32], strides = [1, 1]} : vector<560x32xbf16> to vector<16x32xbf16>
    %cst_40 = arith.constant dense<0.000000e+00> : vector<32x32xf32>
    %122 = tpu.matmul %120, %121, %cst_40 {dimension_numbers = #tpu.dot_dimension_numbers<[1], [0], [0], [1], [0, 0, 1, 1], [], []>} : vector<32x16xbf16>, vector<16x32xbf16>, vector<32x32xf32> -> vector<32x32xf32>
    %123 = arith.addf %119, %122 : vector<32x32xf32>
    %124 = vector.extract_strided_slice %15 {offsets = [864, 0], sizes = [32, 16], strides = [1, 1]} : vector<1120x16xbf16> to vector<32x16xbf16>
    %125 = vector.extract_strided_slice %16 {offsets = [432, 0], sizes = [16, 32], strides = [1, 1]} : vector<560x32xbf16> to vector<16x32xbf16>
    %cst_41 = arith.constant dense<0.000000e+00> : vector<32x32xf32>
    %126 = tpu.matmul %124, %125, %cst_41 {dimension_numbers = #tpu.dot_dimension_numbers<[1], [0], [0], [1], [0, 0, 1, 1], [], []>} : vector<32x16xbf16>, vector<16x32xbf16>, vector<32x32xf32> -> vector<32x32xf32>
    %127 = arith.addf %123, %126 : vector<32x32xf32>
    %128 = vector.extract_strided_slice %15 {offsets = [896, 0], sizes = [32, 16], strides = [1, 1]} : vector<1120x16xbf16> to vector<32x16xbf16>
    %129 = vector.extract_strided_slice %16 {offsets = [448, 0], sizes = [16, 32], strides = [1, 1]} : vector<560x32xbf16> to vector<16x32xbf16>
    %cst_42 = arith.constant dense<0.000000e+00> : vector<32x32xf32>
    %130 = tpu.matmul %128, %129, %cst_42 {dimension_numbers = #tpu.dot_dimension_numbers<[1], [0], [0], [1], [0, 0, 1, 1], [], []>} : vector<32x16xbf16>, vector<16x32xbf16>, vector<32x32xf32> -> vector<32x32xf32>
    %131 = arith.addf %127, %130 : vector<32x32xf32>
    %132 = vector.extract_strided_slice %15 {offsets = [928, 0], sizes = [32, 16], strides = [1, 1]} : vector<1120x16xbf16> to vector<32x16xbf16>
    %133 = vector.extract_strided_slice %16 {offsets = [464, 0], sizes = [16, 32], strides = [1, 1]} : vector<560x32xbf16> to vector<16x32xbf16>
    %cst_43 = arith.constant dense<0.000000e+00> : vector<32x32xf32>
    %134 = tpu.matmul %132, %133, %cst_43 {dimension_numbers = #tpu.dot_dimension_numbers<[1], [0], [0], [1], [0, 0, 1, 1], [], []>} : vector<32x16xbf16>, vector<16x32xbf16>, vector<32x32xf32> -> vector<32x32xf32>
    %135 = arith.addf %131, %134 : vector<32x32xf32>
    %136 = vector.extract_strided_slice %15 {offsets = [960, 0], sizes = [32, 16], strides = [1, 1]} : vector<1120x16xbf16> to vector<32x16xbf16>
    %137 = vector.extract_strided_slice %16 {offsets = [480, 0], sizes = [16, 32], strides = [1, 1]} : vector<560x32xbf16> to vector<16x32xbf16>
    %cst_44 = arith.constant dense<0.000000e+00> : vector<32x32xf32>
    %138 = tpu.matmul %136, %137, %cst_44 {dimension_numbers = #tpu.dot_dimension_numbers<[1], [0], [0], [1], [0, 0, 1, 1], [], []>} : vector<32x16xbf16>, vector<16x32xbf16>, vector<32x32xf32> -> vector<32x32xf32>
    %139 = arith.addf %135, %138 : vector<32x32xf32>
    %140 = vector.extract_strided_slice %15 {offsets = [992, 0], sizes = [32, 16], strides = [1, 1]} : vector<1120x16xbf16> to vector<32x16xbf16>
    %141 = vector.extract_strided_slice %16 {offsets = [496, 0], sizes = [16, 32], strides = [1, 1]} : vector<560x32xbf16> to vector<16x32xbf16>
    %cst_45 = arith.constant dense<0.000000e+00> : vector<32x32xf32>
    %142 = tpu.matmul %140, %141, %cst_45 {dimension_numbers = #tpu.dot_dimension_numbers<[1], [0], [0], [1], [0, 0, 1, 1], [], []>} : vector<32x16xbf16>, vector<16x32xbf16>, vector<32x32xf32> -> vector<32x32xf32>
    %143 = arith.addf %139, %142 : vector<32x32xf32>
    %144 = vector.extract_strided_slice %15 {offsets = [1024, 0], sizes = [32, 16], strides = [1, 1]} : vector<1120x16xbf16> to vector<32x16xbf16>
    %145 = vector.extract_strided_slice %16 {offsets = [512, 0], sizes = [16, 32], strides = [1, 1]} : vector<560x32xbf16> to vector<16x32xbf16>
    %cst_46 = arith.constant dense<0.000000e+00> : vector<32x32xf32>
    %146 = tpu.matmul %144, %145, %cst_46 {dimension_numbers = #tpu.dot_dimension_numbers<[1], [0], [0], [1], [0, 0, 1, 1], [], []>} : vector<32x16xbf16>, vector<16x32xbf16>, vector<32x32xf32> -> vector<32x32xf32>
    %147 = arith.addf %143, %146 : vector<32x32xf32>
    %148 = vector.extract_strided_slice %15 {offsets = [1056, 0], sizes = [32, 16], strides = [1, 1]} : vector<1120x16xbf16> to vector<32x16xbf16>
    %149 = vector.extract_strided_slice %16 {offsets = [528, 0], sizes = [16, 32], strides = [1, 1]} : vector<560x32xbf16> to vector<16x32xbf16>
    %cst_47 = arith.constant dense<0.000000e+00> : vector<32x32xf32>
    %150 = tpu.matmul %148, %149, %cst_47 {dimension_numbers = #tpu.dot_dimension_numbers<[1], [0], [0], [1], [0, 0, 1, 1], [], []>} : vector<32x16xbf16>, vector<16x32xbf16>, vector<32x32xf32> -> vector<32x32xf32>
    %151 = arith.addf %147, %150 : vector<32x32xf32>
    %152 = vector.extract_strided_slice %15 {offsets = [1088, 0], sizes = [32, 16], strides = [1, 1]} : vector<1120x16xbf16> to vector<32x16xbf16>
    %153 = vector.extract_strided_slice %16 {offsets = [544, 0], sizes = [16, 32], strides = [1, 1]} : vector<560x32xbf16> to vector<16x32xbf16>
    %cst_48 = arith.constant dense<0.000000e+00> : vector<32x32xf32>
    %154 = tpu.matmul %152, %153, %cst_48 {dimension_numbers = #tpu.dot_dimension_numbers<[1], [0], [0], [1], [0, 0, 1, 1], [], []>} : vector<32x16xbf16>, vector<16x32xbf16>, vector<32x32xf32> -> vector<32x32xf32>
    %155 = arith.addf %151, %154 : vector<32x32xf32>
    %c0_49 = arith.constant 0 : index
    %c0_50 = arith.constant 0 : index
    %156 = vector.load %arg5[%c0_49, %c0_50] : memref<1x32xf32, #tpu.memory_space<vmem>>, vector<1x32xf32>
    %157 = vector.broadcast %156 : vector<1x32xf32> to vector<32x32xf32>
    %158 = arith.addf %155, %157 : vector<32x32xf32>
    %c0_51 = arith.constant 0 : index
    %c0_52 = arith.constant 0 : index
    %159 = vector.load %arg16[%c0_51, %c0_52] : memref<32x32xf32, #tpu.memory_space<vmem>>, vector<32x32xf32>
    tpu.vector_store %arg16[%c0_51, %c0_52], %158 {strides = array<i32>} : memref<32x32xf32, #tpu.memory_space<vmem>>, vector<32x32xf32>,
    %cst_53 = arith.constant 0.000000e+00 : f32
    %160 = vector.broadcast %cst_53 : f32 to vector<32x32xf32>
    %161 = arith.cmpf oge, %158, %160 : vector<32x32xf32>
    %cst_54 = arith.constant 1.000000e-01 : f32
    %162 = vector.broadcast %cst_54 : f32 to vector<32x32xf32>
    %163 = arith.mulf %162, %158 : vector<32x32xf32>
    %164 = arith.select %161, %158, %163 : vector<32x32xi1>, vector<32x32xf32>
    %165 = arith.truncf %164 : vector<32x32xf32> to vector<32x32xbf16>
    %c0_55 = arith.constant 0 : index
    %c0_56 = arith.constant 0 : index
    %166 = vector.load %arg6[%c0_55, %c0_56] : memref<224x32xbf16, #tpu.memory_space<vmem>>, vector<224x32xbf16>
    %cst_57 = arith.constant dense<0.000000e+00> : vector<224x32xf32>
    %167 = tpu.matmul %166, %165, %cst_57 {dimension_numbers = #tpu.dot_dimension_numbers<[1], [0], [0], [1], [0, 0, 1, 1], [], []>} : vector<224x32xbf16>, vector<32x32xbf16>, vector<224x32xf32> -> vector<224x32xf32>
    %168 = arith.truncf %167 : vector<224x32xf32> to vector<224x32xbf16>
    %c0_58 = arith.constant 0 : index
    %c0_59 = arith.constant 0 : index
    %169 = vector.load %arg7[%c0_58, %c0_59] : memref<1120x32xbf16, #tpu.memory_space<vmem>>, vector<1120x32xbf16>
    %170 = vector.extract_strided_slice %168 {offsets = [0, 0], sizes = [16, 32], strides = [1, 1]} : vector<224x32xbf16> to vector<16x32xbf16>
    %171 = vector.extract_strided_slice %169 {offsets = [448, 0], sizes = [32, 32], strides = [1, 1]} : vector<1120x32xbf16> to vector<32x32xbf16>
    %cst_60 = arith.constant dense<0.000000e+00> : vector<16x32xf32>
    %172 = tpu.matmul %170, %171, %cst_60 {dimension_numbers = #tpu.dot_dimension_numbers<[1], [0], [0], [1], [0, 0, 1, 1], [], []>} : vector<16x32xbf16>, vector<32x32xbf16>, vector<16x32xf32> -> vector<16x32xf32>
    %173 = vector.extract_strided_slice %168 {offsets = [16, 0], sizes = [16, 32], strides = [1, 1]} : vector<224x32xbf16> to vector<16x32xbf16>
    %174 = vector.extract_strided_slice %169 {offsets = [480, 0], sizes = [32, 32], strides = [1, 1]} : vector<1120x32xbf16> to vector<32x32xbf16>
    %cst_61 = arith.constant dense<0.000000e+00> : vector<16x32xf32>
    %175 = tpu.matmul %173, %174, %cst_61 {dimension_numbers = #tpu.dot_dimension_numbers<[1], [0], [0], [1], [0, 0, 1, 1], [], []>} : vector<16x32xbf16>, vector<32x32xbf16>, vector<16x32xf32> -> vector<16x32xf32>
    %176 = arith.addf %172, %175 : vector<16x32xf32>
    %177 = vector.extract_strided_slice %168 {offsets = [32, 0], sizes = [16, 32], strides = [1, 1]} : vector<224x32xbf16> to vector<16x32xbf16>
    %178 = vector.extract_strided_slice %169 {offsets = [512, 0], sizes = [32, 32], strides = [1, 1]} : vector<1120x32xbf16> to vector<32x32xbf16>
    %cst_62 = arith.constant dense<0.000000e+00> : vector<16x32xf32>
    %179 = tpu.matmul %177, %178, %cst_62 {dimension_numbers = #tpu.dot_dimension_numbers<[1], [0], [0], [1], [0, 0, 1, 1], [], []>} : vector<16x32xbf16>, vector<32x32xbf16>, vector<16x32xf32> -> vector<16x32xf32>
    %180 = arith.addf %176, %179 : vector<16x32xf32>
    %181 = vector.extract_strided_slice %168 {offsets = [48, 0], sizes = [16, 32], strides = [1, 1]} : vector<224x32xbf16> to vector<16x32xbf16>
    %182 = vector.extract_strided_slice %169 {offsets = [544, 0], sizes = [32, 32], strides = [1, 1]} : vector<1120x32xbf16> to vector<32x32xbf16>
    %cst_63 = arith.constant dense<0.000000e+00> : vector<16x32xf32>
    %183 = tpu.matmul %181, %182, %cst_63 {dimension_numbers = #tpu.dot_dimension_numbers<[1], [0], [0], [1], [0, 0, 1, 1], [], []>} : vector<16x32xbf16>, vector<32x32xbf16>, vector<16x32xf32> -> vector<16x32xf32>
    %184 = arith.addf %180, %183 : vector<16x32xf32>
    %185 = vector.extract_strided_slice %168 {offsets = [64, 0], sizes = [16, 32], strides = [1, 1]} : vector<224x32xbf16> to vector<16x32xbf16>
    %186 = vector.extract_strided_slice %169 {offsets = [576, 0], sizes = [32, 32], strides = [1, 1]} : vector<1120x32xbf16> to vector<32x32xbf16>
    %cst_64 = arith.constant dense<0.000000e+00> : vector<16x32xf32>
    %187 = tpu.matmul %185, %186, %cst_64 {dimension_numbers = #tpu.dot_dimension_numbers<[1], [0], [0], [1], [0, 0, 1, 1], [], []>} : vector<16x32xbf16>, vector<32x32xbf16>, vector<16x32xf32> -> vector<16x32xf32>
    %188 = arith.addf %184, %187 : vector<16x32xf32>
    %189 = vector.extract_strided_slice %168 {offsets = [80, 0], sizes = [16, 32], strides = [1, 1]} : vector<224x32xbf16> to vector<16x32xbf16>
    %190 = vector.extract_strided_slice %169 {offsets = [608, 0], sizes = [32, 32], strides = [1, 1]} : vector<1120x32xbf16> to vector<32x32xbf16>
    %cst_65 = arith.constant dense<0.000000e+00> : vector<16x32xf32>
    %191 = tpu.matmul %189, %190, %cst_65 {dimension_numbers = #tpu.dot_dimension_numbers<[1], [0], [0], [1], [0, 0, 1, 1], [], []>} : vector<16x32xbf16>, vector<32x32xbf16>, vector<16x32xf32> -> vector<16x32xf32>
    %192 = arith.addf %188, %191 : vector<16x32xf32>
    %193 = vector.extract_strided_slice %168 {offsets = [96, 0], sizes = [16, 32], strides = [1, 1]} : vector<224x32xbf16> to vector<16x32xbf16>
    %194 = vector.extract_strided_slice %169 {offsets = [640, 0], sizes = [32, 32], strides = [1, 1]} : vector<1120x32xbf16> to vector<32x32xbf16>
    %cst_66 = arith.constant dense<0.000000e+00> : vector<16x32xf32>
    %195 = tpu.matmul %193, %194, %cst_66 {dimension_numbers = #tpu.dot_dimension_numbers<[1], [0], [0], [1], [0, 0, 1, 1], [], []>} : vector<16x32xbf16>, vector<32x32xbf16>, vector<16x32xf32> -> vector<16x32xf32>
    %196 = arith.addf %192, %195 : vector<16x32xf32>
    %197 = vector.extract_strided_slice %168 {offsets = [112, 0], sizes = [16, 32], strides = [1, 1]} : vector<224x32xbf16> to vector<16x32xbf16>
    %198 = vector.extract_strided_slice %169 {offsets = [672, 0], sizes = [32, 32], strides = [1, 1]} : vector<1120x32xbf16> to vector<32x32xbf16>
    %cst_67 = arith.constant dense<0.000000e+00> : vector<16x32xf32>
    %199 = tpu.matmul %197, %198, %cst_67 {dimension_numbers = #tpu.dot_dimension_numbers<[1], [0], [0], [1], [0, 0, 1, 1], [], []>} : vector<16x32xbf16>, vector<32x32xbf16>, vector<16x32xf32> -> vector<16x32xf32>
    %200 = arith.addf %196, %199 : vector<16x32xf32>
    %201 = vector.extract_strided_slice %168 {offsets = [128, 0], sizes = [16, 32], strides = [1, 1]} : vector<224x32xbf16> to vector<16x32xbf16>
    %202 = vector.extract_strided_slice %169 {offsets = [704, 0], sizes = [32, 32], strides = [1, 1]} : vector<1120x32xbf16> to vector<32x32xbf16>
    %cst_68 = arith.constant dense<0.000000e+00> : vector<16x32xf32>
    %203 = tpu.matmul %201, %202, %cst_68 {dimension_numbers = #tpu.dot_dimension_numbers<[1], [0], [0], [1], [0, 0, 1, 1], [], []>} : vector<16x32xbf16>, vector<32x32xbf16>, vector<16x32xf32> -> vector<16x32xf32>
    %204 = arith.addf %200, %203 : vector<16x32xf32>
    %205 = vector.extract_strided_slice %168 {offsets = [144, 0], sizes = [16, 32], strides = [1, 1]} : vector<224x32xbf16> to vector<16x32xbf16>
    %206 = vector.extract_strided_slice %169 {offsets = [736, 0], sizes = [32, 32], strides = [1, 1]} : vector<1120x32xbf16> to vector<32x32xbf16>
    %cst_69 = arith.constant dense<0.000000e+00> : vector<16x32xf32>
    %207 = tpu.matmul %205, %206, %cst_69 {dimension_numbers = #tpu.dot_dimension_numbers<[1], [0], [0], [1], [0, 0, 1, 1], [], []>} : vector<16x32xbf16>, vector<32x32xbf16>, vector<16x32xf32> -> vector<16x32xf32>
    %208 = arith.addf %204, %207 : vector<16x32xf32>
    %209 = vector.extract_strided_slice %168 {offsets = [160, 0], sizes = [16, 32], strides = [1, 1]} : vector<224x32xbf16> to vector<16x32xbf16>
    %210 = vector.extract_strided_slice %169 {offsets = [768, 0], sizes = [32, 32], strides = [1, 1]} : vector<1120x32xbf16> to vector<32x32xbf16>
    %cst_70 = arith.constant dense<0.000000e+00> : vector<16x32xf32>
    %211 = tpu.matmul %209, %210, %cst_70 {dimension_numbers = #tpu.dot_dimension_numbers<[1], [0], [0], [1], [0, 0, 1, 1], [], []>} : vector<16x32xbf16>, vector<32x32xbf16>, vector<16x32xf32> -> vector<16x32xf32>
    %212 = arith.addf %208, %211 : vector<16x32xf32>
    %213 = vector.extract_strided_slice %168 {offsets = [176, 0], sizes = [16, 32], strides = [1, 1]} : vector<224x32xbf16> to vector<16x32xbf16>
    %214 = vector.extract_strided_slice %169 {offsets = [800, 0], sizes = [32, 32], strides = [1, 1]} : vector<1120x32xbf16> to vector<32x32xbf16>
    %cst_71 = arith.constant dense<0.000000e+00> : vector<16x32xf32>
    %215 = tpu.matmul %213, %214, %cst_71 {dimension_numbers = #tpu.dot_dimension_numbers<[1], [0], [0], [1], [0, 0, 1, 1], [], []>} : vector<16x32xbf16>, vector<32x32xbf16>, vector<16x32xf32> -> vector<16x32xf32>
    %216 = arith.addf %212, %215 : vector<16x32xf32>
    %217 = vector.extract_strided_slice %168 {offsets = [192, 0], sizes = [16, 32], strides = [1, 1]} : vector<224x32xbf16> to vector<16x32xbf16>
    %218 = vector.extract_strided_slice %169 {offsets = [832, 0], sizes = [32, 32], strides = [1, 1]} : vector<1120x32xbf16> to vector<32x32xbf16>
    %cst_72 = arith.constant dense<0.000000e+00> : vector<16x32xf32>
    %219 = tpu.matmul %217, %218, %cst_72 {dimension_numbers = #tpu.dot_dimension_numbers<[1], [0], [0], [1], [0, 0, 1, 1], [], []>} : vector<16x32xbf16>, vector<32x32xbf16>, vector<16x32xf32> -> vector<16x32xf32>
    %220 = arith.addf %216, %219 : vector<16x32xf32>
    %221 = vector.extract_strided_slice %168 {offsets = [208, 0], sizes = [16, 32], strides = [1, 1]} : vector<224x32xbf16> to vector<16x32xbf16>
    %222 = vector.extract_strided_slice %169 {offsets = [864, 0], sizes = [32, 32], strides = [1, 1]} : vector<1120x32xbf16> to vector<32x32xbf16>
    %cst_73 = arith.constant dense<0.000000e+00> : vector<16x32xf32>
    %223 = tpu.matmul %221, %222, %cst_73 {dimension_numbers = #tpu.dot_dimension_numbers<[1], [0], [0], [1], [0, 0, 1, 1], [], []>} : vector<16x32xbf16>, vector<32x32xbf16>, vector<16x32xf32> -> vector<16x32xf32>
    %224 = arith.addf %220, %223 : vector<16x32xf32>
    %c0_74 = arith.constant 0 : index
    %c0_75 = arith.constant 0 : index
    %225 = vector.load %arg8[%c0_74, %c0_75] : memref<1x32xf32, #tpu.memory_space<vmem>>, vector<1x32xf32>
    %226 = vector.broadcast %225 : vector<1x32xf32> to vector<16x32xf32>
    %227 = arith.addf %224, %226 : vector<16x32xf32>
    %c0_76 = arith.constant 0 : index
    %c0_77 = arith.constant 0 : index
    %228 = vector.load %arg17[%c0_76, %c0_77] : memref<16x32xf32, #tpu.memory_space<vmem>>, vector<16x32xf32>
    tpu.vector_store %arg17[%c0_76, %c0_77], %227 {strides = array<i32>} : memref<16x32xf32, #tpu.memory_space<vmem>>, vector<16x32xf32>,
    %cst_78 = arith.constant 0.000000e+00 : f32
    %229 = vector.broadcast %cst_78 : f32 to vector<16x32xf32>
    %230 = arith.cmpf oge, %227, %229 : vector<16x32xf32>
    %cst_79 = arith.constant 1.000000e-01 : f32
    %231 = vector.broadcast %cst_79 : f32 to vector<16x32xf32>
    %232 = arith.mulf %231, %227 : vector<16x32xf32>
    %233 = arith.select %230, %227, %232 : vector<16x32xi1>, vector<16x32xf32>
    %234 = arith.truncf %233 : vector<16x32xf32> to vector<16x32xbf16>
    %c0_80 = arith.constant 0 : index
    %c0_81 = arith.constant 0 : index
    %235 = vector.load %arg9[%c0_80, %c0_81] : memref<48x16xbf16, #tpu.memory_space<vmem>>, vector<48x16xbf16>
    %cst_82 = arith.constant dense<0.000000e+00> : vector<48x32xf32>
    %236 = tpu.matmul %235, %234, %cst_82 {dimension_numbers = #tpu.dot_dimension_numbers<[1], [0], [0], [1], [0, 0, 1, 1], [], []>} : vector<48x16xbf16>, vector<16x32xbf16>, vector<48x32xf32> -> vector<48x32xf32>
    %237 = arith.truncf %236 : vector<48x32xf32> to vector<48x32xbf16>
    %c0_83 = arith.constant 0 : index
    %c0_84 = arith.constant 0 : index
    %238 = vector.load %arg10[%c0_83, %c0_84] : memref<480x32xbf16, #tpu.memory_space<vmem>>, vector<480x32xbf16>
    %239 = vector.extract_strided_slice %237 {offsets = [0, 0], sizes = [16, 32], strides = [1, 1]} : vector<48x32xbf16> to vector<16x32xbf16>
    %240 = vector.extract_strided_slice %238 {offsets = [192, 0], sizes = [32, 32], strides = [1, 1]} : vector<480x32xbf16> to vector<32x32xbf16>
    %cst_85 = arith.constant dense<0.000000e+00> : vector<16x32xf32>
    %241 = tpu.matmul %239, %240, %cst_85 {dimension_numbers = #tpu.dot_dimension_numbers<[1], [0], [0], [1], [0, 0, 1, 1], [], []>} : vector<16x32xbf16>, vector<32x32xbf16>, vector<16x32xf32> -> vector<16x32xf32>
    %242 = vector.extract_strided_slice %237 {offsets = [16, 0], sizes = [16, 32], strides = [1, 1]} : vector<48x32xbf16> to vector<16x32xbf16>
    %243 = vector.extract_strided_slice %238 {offsets = [224, 0], sizes = [32, 32], strides = [1, 1]} : vector<480x32xbf16> to vector<32x32xbf16>
    %cst_86 = arith.constant dense<0.000000e+00> : vector<16x32xf32>
    %244 = tpu.matmul %242, %243, %cst_86 {dimension_numbers = #tpu.dot_dimension_numbers<[1], [0], [0], [1], [0, 0, 1, 1], [], []>} : vector<16x32xbf16>, vector<32x32xbf16>, vector<16x32xf32> -> vector<16x32xf32>
    %245 = arith.addf %241, %244 : vector<16x32xf32>
    %246 = vector.extract_strided_slice %237 {offsets = [32, 0], sizes = [16, 32], strides = [1, 1]} : vector<48x32xbf16> to vector<16x32xbf16>
    %247 = vector.extract_strided_slice %238 {offsets = [256, 0], sizes = [32, 32], strides = [1, 1]} : vector<480x32xbf16> to vector<32x32xbf16>
    %cst_87 = arith.constant dense<0.000000e+00> : vector<16x32xf32>
    %248 = tpu.matmul %246, %247, %cst_87 {dimension_numbers = #tpu.dot_dimension_numbers<[1], [0], [0], [1], [0, 0, 1, 1], [], []>} : vector<16x32xbf16>, vector<32x32xbf16>, vector<16x32xf32> -> vector<16x32xf32>
    %249 = arith.addf %245, %248 : vector<16x32xf32>
    %c0_88 = arith.constant 0 : index
    %c0_89 = arith.constant 0 : index
    %250 = vector.load %arg11[%c0_88, %c0_89] : memref<1x32xf32, #tpu.memory_space<vmem>>, vector<1x32xf32>
    %251 = vector.broadcast %250 : vector<1x32xf32> to vector<16x32xf32>
    %252 = arith.addf %249, %251 : vector<16x32xf32>
    %c0_90 = arith.constant 0 : index
    %c0_91 = arith.constant 0 : index
    %253 = vector.load %arg18[%c0_90, %c0_91] : memref<16x32xf32, #tpu.memory_space<vmem>>, vector<16x32xf32>
    tpu.vector_store %arg18[%c0_90, %c0_91], %252 {strides = array<i32>} : memref<16x32xf32, #tpu.memory_space<vmem>>, vector<16x32xf32>,
    %cst_92 = arith.constant 0.000000e+00 : f32
    %254 = vector.broadcast %cst_92 : f32 to vector<16x32xf32>
    %255 = arith.cmpf oge, %252, %254 : vector<16x32xf32>
    %cst_93 = arith.constant 1.000000e-01 : f32
    %256 = vector.broadcast %cst_93 : f32 to vector<16x32xf32>
    %257 = arith.mulf %256, %252 : vector<16x32xf32>
    %258 = arith.select %255, %252, %257 : vector<16x32xi1>, vector<16x32xf32>
    %259 = arith.truncf %258 : vector<16x32xf32> to vector<16x32xbf16>
    %c0_94 = arith.constant 0 : index
    %c0_95 = arith.constant 0 : index
    %260 = vector.load %arg12[%c0_94, %c0_95] : memref<16x16xbf16, #tpu.memory_space<vmem>>, vector<16x16xbf16>
    %cst_96 = arith.constant dense<0.000000e+00> : vector<16x32xf32>
    %261 = tpu.matmul %260, %259, %cst_96 {dimension_numbers = #tpu.dot_dimension_numbers<[1], [0], [0], [1], [0, 0, 1, 1], [], []>} : vector<16x16xbf16>, vector<16x32xbf16>, vector<16x32xf32> -> vector<16x32xf32>
    %262 = arith.truncf %261 : vector<16x32xf32> to vector<16x32xbf16>
    %c0_97 = arith.constant 0 : index
    %c0_98 = arith.constant 0 : index
    %263 = vector.load %arg13[%c0_97, %c0_98] : memref<96x1xbf16, #tpu.memory_space<vmem>>, vector<96x1xbf16>
    %264 = vector.extract_strided_slice %263 {offsets = [32, 0], sizes = [32, 1], strides = [1, 1]} : vector<96x1xbf16> to vector<32x1xbf16>
    %cst_99 = arith.constant dense<0.000000e+00> : vector<16x1xf32>
    %265 = tpu.matmul %262, %264, %cst_99 {dimension_numbers = #tpu.dot_dimension_numbers<[1], [0], [0], [1], [0, 0, 1, 1], [], []>} : vector<16x32xbf16>, vector<32x1xbf16>, vector<16x1xf32> -> vector<16x1xf32>
    %c0_100 = arith.constant 0 : index
    %c0_101 = arith.constant 0 : index
    %266 = vector.load %arg14[%c0_100, %c0_101] : memref<1x1xf32, #tpu.memory_space<vmem>>, vector<1x1xf32>
    %267 = vector.broadcast %266 : vector<1x1xf32> to vector<16x1xf32>
    %268 = arith.addf %265, %267 : vector<16x1xf32>
    %c0_102 = arith.constant 0 : index
    %c0_103 = arith.constant 0 : index
    %269 = vector.load %arg19[%c0_102, %c0_103] : memref<16x1xf32, #tpu.memory_space<vmem>>, vector<16x1xf32>
    tpu.vector_store %arg19[%c0_102, %c0_103], %268 {strides = array<i32>} : memref<16x1xf32, #tpu.memory_space<vmem>>, vector<16x1xf32>,
    return
  }
}

</mosaic_0001>

<llo_original>
// kernel: discriminator_spec_w_forward.2
$region0: #{discriminator_spec_w_forward.2}
  #allocation0 [shape = 'u32[]', space=smem, size = 0x4, offset = 0x4, fixed_abs, tag = 'smem constant byte address 0x4 - core index']
  #allocation1 [shape = 'u32[72,128]{1,0:T(1,128)}', space=vmem, size = 0x9000, scoped, tag = 'internal scratch']
  %s0 = inlined_call_operand.vmem [shape: bf16[64,32], index: 0, kind: input, shape index: {}]
  %s1 = inlined_call_operand.vmem [shape: bf16[32,128], index: 1, kind: input, shape index: {}]
  %s2 = inlined_call_operand.vmem [shape: bf16[64,128], index: 2, kind: output, shape index: {}]
  %s3 = sld [smem:[#allocation0]]
  $region18: #{discriminator_spec_w_forward.2} parent=0
    _
  %s5 = ssub.s32 1, %s3
  %s6 = scalar_select 0, %s5, %s3
  // Predicated region
  $region2: #{discriminator_spec_w_forward.2} parent=0 // pred_check
    _
  $region3: #{discriminator_spec_w_forward.2} parent=0 // pred_check_branch
    %8 = sbr.rel (0) target = $region5
  $region4: #{discriminator_spec_w_forward.2} parent=0 // pred_region
    _
  $region5: #{discriminator_spec_w_forward.2} parent=0 // pred_fallthru
    _
  // Predicated region
  $region6: #{discriminator_spec_w_forward.2} parent=0 // pred_check
    _
  $region7: #{discriminator_spec_w_forward.2} parent=0 // pred_check_branch
    %10 = sbr.rel (0) target = $region9
  $region8: #{discriminator_spec_w_forward.2} parent=0 // pred_region
    _
  $region9: #{discriminator_spec_w_forward.2} parent=0 // pred_fallthru
    _
  %v12 = vld [vmem:[%s0] sm:$0xf]
  %v13 = vld [vmem:[%s0 + $0x4] sm:$0xf]
  %v14 = vld [vmem:[%s0 + $0x8] sm:$0xf]
  %v15 = vld [vmem:[%s0 + $0xc] sm:$0xf]
  %v16 = vld [vmem:[%s0 + $0x10] sm:$0xf]
  %v17 = vld [vmem:[%s0 + $0x14] sm:$0xf]
  %v18 = vld [vmem:[%s0 + $0x18] sm:$0xf]
  %v19 = vld [vmem:[%s0 + $0x1c] sm:$0xf]
  %v20 = vld [vmem:[%s1] sm:$0xf]
  %v21 = vld [vmem:[%s1 + $0x4] sm:$0xf]
  %v22 = vld [vmem:[%s1 + $0x8] sm:$0xf]
  %v23 = vld [vmem:[%s1 + $0xc] sm:$0xf]
  %v32 = vunpack.c.l.b16 %v12
  %v33 = vunpack.c.l.b16 %v13
  %v34 = vunpack.c.l.b16 %v14
  %v35 = vunpack.c.l.b16 %v15
  %v36 = vunpack.c.l.b16 %v16
  %v37 = vunpack.c.l.b16 %v17
  %v38 = vunpack.c.l.b16 %v18
  %v39 = vunpack.c.l.b16 %v19
  %v40 = vpack.c.b16 %v33, %v32
  %v41 = vpack.c.b16 %v35, %v34
  %v42 = vpack.c.b16 %v37, %v36
  %v43 = vpack.c.b16 %v39, %v38
  %v48 = vunpack.c.l.b16 %v20
  %v49 = vunpack.c.l.b16 %v21
  %v50 = vunpack.c.l.b16 %v22
  %v51 = vunpack.c.l.b16 %v23
  %v52 = vpack.c.b16 %v49, %v48
  %v53 = vpack.c.b16 %v51, %v50
  %vm56 = vcmask 261120
  %v58 = vsel %vm56, %v40, 0
  %v61 = vsel %vm56, %v41, 0
  %v64 = vsel %vm56, %v42, 0
  %v67 = vsel %vm56, %v43, 0
  %69 = vmatpush.bf16.msra.mxu0 0
  %70 = vmatpush.bf16.msra.mxu0 0
  %71 = vmatpush.bf16.msra.mxu0 0
  %72 = vmatpush.bf16.msra.mxu0 0
  %73 = vmatpush.bf16.msra.mxu0 0
  %74 = vmatpush.bf16.msra.mxu0 0
  %75 = vmatpush.bf16.msra.mxu0 %v53
  %76 = vmatpush.bf16.msra.mxu0 %v52
  %77 = vmatmul.bf16.gmra.mxu0 %v58
  %v78 = vpop.f32.mrf.mxu0
  %v79 = vadd.f32 0.0, %v78
  %v80 = vpop.f32.mrf.mxu0
  %v81 = vadd.f32 0.0, %v80
  %82 = vmatmul.bf16.gmra.mxu0 %v61
  %v83 = vpop.f32.mrf.mxu0
  %v84 = vadd.f32 0.0, %v83
  %v85 = vpop.f32.mrf.mxu0
  %v86 = vadd.f32 0.0, %v85
  %87 = vmatmul.bf16.gmra.mxu0 %v64
  %v88 = vpop.f32.mrf.mxu0
  %v89 = vadd.f32 0.0, %v88
  %v90 = vpop.f32.mrf.mxu0
  %v91 = vadd.f32 0.0, %v90
  %92 = vmatmul.bf16.gmra.mxu0 %v67
  %v93 = vpop.f32.mrf.mxu0
  %v94 = vadd.f32 0.0, %v93
  %v95 = vpop.f32.mrf.mxu0
  %v96 = vadd.f32 0.0, %v95
  %97 = vdwg.mxu0
  %v98 = vmul.f32 %v79, %v79
  %v99 = vmul.f32 %v81, %v81
  %v100 = vmul.f32 %v84, %v84
  %v101 = vmul.f32 %v86, %v86
  %v102 = vmul.f32 %v89, %v89
  %v103 = vmul.f32 %v91, %v91
  %v104 = vmul.f32 %v94, %v94
  %v105 = vmul.f32 %v96, %v96
  %106 = vrot.lane.b32.xlu0 %v98, 64
  %v107 = vpop.permute.xlu0 %106
  %108 = vrot.lane.b32.xlu0 %v99, 64
  %v109 = vpop.permute.xlu0 %108
  %110 = vrot.lane.b32.xlu0 %v100, 64
  %v111 = vpop.permute.xlu0 %110
  %112 = vrot.lane.b32.xlu0 %v101, 64
  %v113 = vpop.permute.xlu0 %112
  %114 = vrot.lane.b32.xlu0 %v102, 64
  %v115 = vpop.permute.xlu0 %114
  %116 = vrot.lane.b32.xlu0 %v103, 64
  %v117 = vpop.permute.xlu0 %116
  %118 = vrot.lane.b32.xlu0 %v104, 64
  %v119 = vpop.permute.xlu0 %118
  %120 = vrot.lane.b32.xlu0 %v105, 64
  %v121 = vpop.permute.xlu0 %120
  %v122 = vadd.f32 %v98, %v107
  %v123 = vadd.f32 %v99, %v109
  %v124 = vadd.f32 %v100, %v111
  %v125 = vadd.f32 %v101, %v113
  %v126 = vadd.f32 %v102, %v115
  %v127 = vadd.f32 %v103, %v117
  %v128 = vadd.f32 %v104, %v119
  %v129 = vadd.f32 %v105, %v121
  %v130 = vrsqrt.pop %v122
  %v131 = vmul.f32 %v130, %v122
  %v132 = vmul.f32 %v131, %v130
  %v133 = vmul.f32 0.5, %v132
  %v134 = vsub.f32 1.5, %v133
  %v135 = vmul.f32 %v130, %v134
  %v136 = vmul.f32 %v122, %v135
  %vm137 = vcmp.eq.f32.partialorder %v122, inf
  %v138 = vsel %vm137, %v122, %v136
  %vm139 = vcmp.eq.f32.partialorder %v122, 0.0
  %v140 = vand.u32 %v122, 2147483648
  %v141 = vsel %vm139, %v140, %v138
  %v142 = vrsqrt.pop %v123
  %v143 = vmul.f32 %v142, %v123
  %v144 = vmul.f32 %v143, %v142
  %v145 = vmul.f32 0.5, %v144
  %v146 = vsub.f32 1.5, %v145
  %v147 = vmul.f32 %v142, %v146
  %v148 = vmul.f32 %v123, %v147
  %vm149 = vcmp.eq.f32.partialorder %v123, inf
  %v150 = vsel %vm149, %v123, %v148
  %vm151 = vcmp.eq.f32.partialorder %v123, 0.0
  %v152 = vand.u32 %v123, 2147483648
  %v153 = vsel %vm151, %v152, %v150
  %v154 = vrsqrt.pop %v124
  %v155 = vmul.f32 %v154, %v124
  %v156 = vmul.f32 %v155, %v154
  %v157 = vmul.f32 0.5, %v156
  %v158 = vsub.f32 1.5, %v157
  %v159 = vmul.f32 %v154, %v158
  %v160 = vmul.f32 %v124, %v159
  %vm161 = vcmp.eq.f32.partialorder %v124, inf
  %v162 = vsel %vm161, %v124, %v160
  %vm163 = vcmp.eq.f32.partialorder %v124, 0.0
  %v164 = vand.u32 %v124, 2147483648
  %v165 = vsel %vm163, %v164, %v162
  %v166 = vrsqrt.pop %v125
  %v167 = vmul.f32 %v166, %v125
  %v168 = vmul.f32 %v167, %v166
  %v169 = vmul.f32 0.5, %v168
  %v170 = vsub.f32 1.5, %v169
  %v171 = vmul.f32 %v166, %v170
  %v172 = vmul.f32 %v125, %v171
  %vm173 = vcmp.eq.f32.partialorder %v125, inf
  %v174 = vsel %vm173, %v125, %v172
  %vm175 = vcmp.eq.f32.partialorder %v125, 0.0
  %v176 = vand.u32 %v125, 2147483648
  %v177 = vsel %vm175, %v176, %v174
  %v178 = vrsqrt.pop %v126
  %v179 = vmul.f32 %v178, %v126
  %v180 = vmul.f32 %v179, %v178
  %v181 = vmul.f32 0.5, %v180
  %v182 = vsub.f32 1.5, %v181
  %v183 = vmul.f32 %v178, %v182
  %v184 = vmul.f32 %v126, %v183
  %vm185 = vcmp.eq.f32.partialorder %v126, inf
  %v186 = vsel %vm185, %v126, %v184
  %vm187 = vcmp.eq.f32.partialorder %v126, 0.0
  %v188 = vand.u32 %v126, 2147483648
  %v189 = vsel %vm187, %v188, %v186
  %v190 = vrsqrt.pop %v127
  %v191 = vmul.f32 %v190, %v127
  %v192 = vmul.f32 %v191, %v190
  %v193 = vmul.f32 0.5, %v192
  %v194 = vsub.f32 1.5, %v193
  %v195 = vmul.f32 %v190, %v194
  %v196 = vmul.f32 %v127, %v195
  %vm197 = vcmp.eq.f32.partialorder %v127, inf
  %v198 = vsel %vm197, %v127, %v196
  %vm199 = vcmp.eq.f32.partialorder %v127, 0.0
  %v200 = vand.u32 %v127, 2147483648
  %v201 = vsel %vm199, %v200, %v198
  %v202 = vrsqrt.pop %v128
  %v203 = vmul.f32 %v202, %v128
  %v204 = vmul.f32 %v203, %v202
  %v205 = vmul.f32 0.5, %v204
  %v206 = vsub.f32 1.5, %v205
  %v207 = vmul.f32 %v202, %v206
  %v208 = vmul.f32 %v128, %v207
  %vm209 = vcmp.eq.f32.partialorder %v128, inf
  %v210 = vsel %vm209, %v128, %v208
  %vm211 = vcmp.eq.f32.partialorder %v128, 0.0
  %v212 = vand.u32 %v128, 2147483648
  %v213 = vsel %vm211, %v212, %v210
  %v214 = vrsqrt.pop %v129
  %v215 = vmul.f32 %v214, %v129
  %v216 = vmul.f32 %v215, %v214
  %v217 = vmul.f32 0.5, %v216
  %v218 = vsub.f32 1.5, %v217
  %v219 = vmul.f32 %v214, %v218
  %v220 = vmul.f32 %v129, %v219
  %vm221 = vcmp.eq.f32.partialorder %v129, inf
  %v222 = vsel %vm221, %v129, %v220
  %vm223 = vcmp.eq.f32.partialorder %v129, 0.0
  %v224 = vand.u32 %v129, 2147483648
  %v225 = vsel %vm223, %v224, %v222
  %v226 = vpack.c.bf16 %v141, %v141
  %v227 = vpack.c.bf16 %v153, %v153
  %v228 = vpack.c.bf16 %v165, %v165
  %v229 = vpack.c.bf16 %v177, %v177
  %v230 = vpack.c.bf16 %v189, %v189
  %v231 = vpack.c.bf16 %v201, %v201
  %v232 = vpack.c.bf16 %v213, %v213
  %v233 = vpack.c.bf16 %v225, %v225
  %234 = vst [vmem:[%s2] sm:$0xf] %v226
  %235 = vst [vmem:[%s2 + $0x4] sm:$0xf] %v227
  %236 = vst [vmem:[%s2 + $0x8] sm:$0xf] %v228
  %237 = vst [vmem:[%s2 + $0xc] sm:$0xf] %v229
  %238 = vst [vmem:[%s2 + $0x10] sm:$0xf] %v230
  %239 = vst [vmem:[%s2 + $0x14] sm:$0xf] %v231
  %240 = vst [vmem:[%s2 + $0x18] sm:$0xf] %v232
  %241 = vst [vmem:[%s2 + $0x1c] sm:$0xf] %v233
  // Predicated region
  $region10: #{discriminator_spec_w_forward.2} parent=0 // pred_check
    _
  $region11: #{discriminator_spec_w_forward.2} parent=0 // pred_check_branch
    %243 = sbr.rel (0) target = $region13
  $region12: #{discriminator_spec_w_forward.2} parent=0 // pred_region
    _
  $region13: #{discriminator_spec_w_forward.2} parent=0 // pred_fallthru
    _
  // Predicated region
  $region14: #{discriminator_spec_w_forward.2} parent=0 // pred_check
    _
  $region15: #{discriminator_spec_w_forward.2} parent=0 // pred_check_branch
    %245 = sbr.rel (0) target = $region17
  $region16: #{discriminator_spec_w_forward.2} parent=0 // pred_region
    _
  $region17: #{discriminator_spec_w_forward.2} parent=0 // pred_fallthru
    _

// kernel: discriminator_spec_w_forward.3
$region0: #{discriminator_spec_w_forward.3}
  #allocation0 [shape = 'u32[]', space=smem, size = 0x4, offset = 0x4, fixed_abs, tag = 'smem constant byte address 0x4 - core index']
  #allocation1 [shape = 'u32[72,128]{1,0:T(1,128)}', space=vmem, size = 0x9000, scoped, tag = 'internal scratch']
  #allocation2 [shape = 'f32[1,1]{1,0:T(1,128)S(1)}', space=vmem, size = 0x200, scoped, tag = 'scoped memory for discriminator_spec_w_forward.3']
  %s0 = inlined_call_operand.vmem [shape: bf16[168,35], index: 0, kind: input, shape index: {}]
  %s1 = inlined_call_operand.vmem [shape: bf16[35,16], index: 1, kind: input, shape index: {}]
  %s2 = inlined_call_operand.vmem [shape: f32[1,16], index: 2, kind: input, shape index: {}]
  %s3 = inlined_call_operand.vmem [shape: bf16[1120,168], index: 3, kind: input, shape index: {}]
  %s4 = inlined_call_operand.vmem [shape: bf16[560,32], index: 4, kind: input, shape index: {}]
  %s5 = inlined_call_operand.vmem [shape: f32[1,32], index: 5, kind: input, shape index: {}]
  %s6 = inlined_call_operand.vmem [shape: bf16[224,32], index: 6, kind: input, shape index: {}]
  %s7 = inlined_call_operand.vmem [shape: bf16[1120,32], index: 7, kind: input, shape index: {}]
  %s8 = inlined_call_operand.vmem [shape: f32[1,32], index: 8, kind: input, shape index: {}]
  %s9 = inlined_call_operand.vmem [shape: bf16[48,16], index: 9, kind: input, shape index: {}]
  %s10 = inlined_call_operand.vmem [shape: bf16[480,32], index: 10, kind: input, shape index: {}]
  %s11 = inlined_call_operand.vmem [shape: f32[1,32], index: 11, kind: input, shape index: {}]
  %s12 = inlined_call_operand.vmem [shape: bf16[16,16], index: 12, kind: input, shape index: {}]
  %s13 = inlined_call_operand.vmem [shape: bf16[96,1], index: 13, kind: input, shape index: {}]
  %s14 = inlined_call_operand.<no memory space> [shape: f32[1,1], index: 14, kind: input, shape index: {}]
  %s15 = inlined_call_operand.vmem [shape: f32[168,16], index: 15, kind: output, shape index: {0}]
  %s16 = inlined_call_operand.vmem [shape: f32[32,32], index: 16, kind: output, shape index: {1}]
  %s17 = inlined_call_operand.vmem [shape: f32[16,32], index: 17, kind: output, shape index: {2}]
  %s18 = inlined_call_operand.vmem [shape: f32[16,32], index: 18, kind: output, shape index: {3}]
  %s19 = inlined_call_operand.vmem [shape: f32[16,1], index: 19, kind: output, shape index: {4}]
  %20 = xla_tuple %s15, %s16, %s17, %s18, %s19
  %s21 = sld [smem:[#allocation0]]
  $region102: #{discriminator_spec_w_forward.3} parent=0
    _
  %s23 = ssub.s32 1, %s21
  %s24 = scalar_select 0, %s23, %s21
  %v25 = vstv %s14
  %26 = vst [vmem:[#allocation2] sm:$0x1] %v25
  // Predicated region
  $region2: #{discriminator_spec_w_forward.3} parent=0 // pred_check
    _
  $region3: #{discriminator_spec_w_forward.3} parent=0 // pred_check_branch
    %28 = sbr.rel (0) target = $region5
  $region4: #{discriminator_spec_w_forward.3} parent=0 // pred_region
    _
  $region5: #{discriminator_spec_w_forward.3} parent=0 // pred_fallthru
    _
  // Predicated region
  $region6: #{discriminator_spec_w_forward.3} parent=0 // pred_check
    _
  $region7: #{discriminator_spec_w_forward.3} parent=0 // pred_check_branch
    %30 = sbr.rel (0) target = $region9
  $region8: #{discriminator_spec_w_forward.3} parent=0 // pred_region
    _
  $region9: #{discriminator_spec_w_forward.3} parent=0 // pred_fallthru
    _
  // Predicated region
  $region10: #{discriminator_spec_w_forward.3} parent=0 // pred_check
    _
  $region11: #{discriminator_spec_w_forward.3} parent=0 // pred_check_branch
    %32 = sbr.rel (0) target = $region13
  $region12: #{discriminator_spec_w_forward.3} parent=0 // pred_region
    _
  $region13: #{discriminator_spec_w_forward.3} parent=0 // pred_fallthru
    _
  // Predicated region
  $region14: #{discriminator_spec_w_forward.3} parent=0 // pred_check
    _
  $region15: #{discriminator_spec_w_forward.3} parent=0 // pred_check_branch
    %34 = sbr.rel (0) target = $region17
  $region16: #{discriminator_spec_w_forward.3} parent=0 // pred_region
    _
  $region17: #{discriminator_spec_w_forward.3} parent=0 // pred_fallthru
    _
  // Predicated region
  $region18: #{discriminator_spec_w_forward.3} parent=0 // pred_check
    _
  $region19: #{discriminator_spec_w_forward.3} parent=0 // pred_check_branch
    %36 = sbr.rel (0) target = $region21
  $region20: #{discriminator_spec_w_forward.3} parent=0 // pred_region
    _
  $region21: #{discriminator_spec_w_forward.3} parent=0 // pred_fallthru
    _
  // Predicated region
  $region22: #{discriminator_spec_w_forward.3} parent=0 // pred_check
    _
  $region23: #{discriminator_spec_w_forward.3} parent=0 // pred_check_branch
    %38 = sbr.rel (0) target = $region25
  $region24: #{discriminator_spec_w_forward.3} parent=0 // pred_region
    _
  $region25: #{discriminator_spec_w_forward.3} parent=0 // pred_fallthru
    _
  // Predicated region
  $region26: #{discriminator_spec_w_forward.3} parent=0 // pred_check
    _
  $region27: #{discriminator_spec_w_forward.3} parent=0 // pred_check_branch
    %40 = sbr.rel (0) target = $region29
  $region28: #{discriminator_spec_w_forward.3} parent=0 // pred_region
    _
  $region29: #{discriminator_spec_w_forward.3} parent=0 // pred_fallthru
    _
  // Predicated region
  $region30: #{discriminator_spec_w_forward.3} parent=0 // pred_check
    _
  $region31: #{discriminator_spec_w_forward.3} parent=0 // pred_check_branch
    %42 = sbr.rel (0) target = $region33
  $region32: #{discriminator_spec_w_forward.3} parent=0 // pred_region
    _
  $region33: #{discriminator_spec_w_forward.3} parent=0 // pred_fallthru
    _
  // Predicated region
  $region34: #{discriminator_spec_w_forward.3} parent=0 // pred_check
    _
  $region35: #{discriminator_spec_w_forward.3} parent=0 // pred_check_branch
    %44 = sbr.rel (0) target = $region37
  $region36: #{discriminator_spec_w_forward.3} parent=0 // pred_region
    _
  $region37: #{discriminator_spec_w_forward.3} parent=0 // pred_fallthru
    _
  // Predicated region
  $region38: #{discriminator_spec_w_forward.3} parent=0 // pred_check
    _
  $region39: #{discriminator_spec_w_forward.3} parent=0 // pred_check_branch
    %46 = sbr.rel (0) target = $region41
  $region40: #{discriminator_spec_w_forward.3} parent=0 // pred_region
    _
  $region41: #{discriminator_spec_w_forward.3} parent=0 // pred_fallthru
    _
  // Predicated region
  $region42: #{discriminator_spec_w_forward.3} parent=0 // pred_check
    _
  $region43: #{discriminator_spec_w_forward.3} parent=0 // pred_check_branch
    %48 = sbr.rel (0) target = $region45
  $region44: #{discriminator_spec_w_forward.3} parent=0 // pred_region
    _
  $region45: #{discriminator_spec_w_forward.3} parent=0 // pred_fallthru
    _
  // Predicated region
  $region46: #{discriminator_spec_w_forward.3} parent=0 // pred_check
    _
  $region47: #{discriminator_spec_w_forward.3} parent=0 // pred_check_branch
    %50 = sbr.rel (0) target = $region49
  $region48: #{discriminator_spec_w_forward.3} parent=0 // pred_region
    _
  $region49: #{discriminator_spec_w_forward.3} parent=0 // pred_fallthru
    _
  // Predicated region
  $region50: #{discriminator_spec_w_forward.3} parent=0 // pred_check
    _
  $region51: #{discriminator_spec_w_forward.3} parent=0 // pred_check_branch
    %52 = sbr.rel (0) target = $region53
  $region52: #{discriminator_spec_w_forward.3} parent=0 // pred_region
    _
  $region53: #{discriminator_spec_w_forward.3} parent=0 // pred_fallthru
    _
  // Predicated region
  $region54: #{discriminator_spec_w_forward.3} parent=0 // pred_check
    _
  $region55: #{discriminator_spec_w_forward.3} parent=0 // pred_check_branch
    %54 = sbr.rel (0) target = $region57
  $region56: #{discriminator_spec_w_forward.3} parent=0 // pred_region
    _
  $region57: #{discriminator_spec_w_forward.3} parent=0 // pred_fallthru
    _
  // Predicated region
  $region58: #{discriminator_spec_w_forward.3} parent=0 // pred_check
    _
  $region59: #{discriminator_spec_w_forward.3} parent=0 // pred_check_branch
    %56 = sbr.rel (0) target = $region61
  $region60: #{discriminator_spec_w_forward.3} parent=0 // pred_region
    _
  $region61: #{discriminator_spec_w_forward.3} parent=0 // pred_fallthru
    _
  %v58 = vld [vmem:[%s0] sm:$0xf]
  %v59 = vld [vmem:[%s0 + $0x4] sm:$0xf]
  %v60 = vld [vmem:[%s0 + $0x8] sm:$0xf]
  %v61 = vld [vmem:[%s0 + $0xc] sm:$0xf]
  %v62 = vld [vmem:[%s0 + $0x10] sm:$0xf]
  %v63 = vld [vmem:[%s0 + $0x14] sm:$0xf]
  %v64 = vld [vmem:[%s0 + $0x18] sm:$0xf]
  %v65 = vld [vmem:[%s0 + $0x1c] sm:$0xf]
  %v66 = vld [vmem:[%s0 + $0x20] sm:$0xf]
  %v67 = vld [vmem:[%s0 + $0x24] sm:$0xf]
  %v68 = vld [vmem:[%s0 + $0x28] sm:$0xf]
  %v69 = vld [vmem:[%s0 + $0x2c] sm:$0xf]
  %v70 = vld [vmem:[%s0 + $0x30] sm:$0xf]
  %v71 = vld [vmem:[%s0 + $0x34] sm:$0xf]
  %v72 = vld [vmem:[%s0 + $0x38] sm:$0xf]
  %v73 = vld [vmem:[%s0 + $0x3c] sm:$0xf]
  %v74 = vld [vmem:[%s0 + $0x40] sm:$0xf]
  %v75 = vld [vmem:[%s0 + $0x44] sm:$0xf]
  %v76 = vld [vmem:[%s0 + $0x48] sm:$0xf]
  %v77 = vld [vmem:[%s0 + $0x4c] sm:$0xf]
  %v78 = vld [vmem:[%s0 + $0x50] sm:$0xf]
  %v79 = vld [vmem:[%s1] sm:$0xf]
  %v80 = vld [vmem:[%s1 + $0x4] sm:$0xf]
  %v81 = vld [vmem:[%s1 + $0x8] sm:$0xf]
  %v82 = vld [vmem:[%s1 + $0xc] sm:$0xf]
  %v83 = vld [vmem:[%s1 + $0x10] sm:$0x3]
  %v84 = vld [vmem:[%s2] sm:$0x1]
  %v86 = vperm.slane %v84, 0
  %v109 = vunpack.c.l.b16 %v58
  %v110 = vunpack.c.l.b16 %v59
  %v111 = vunpack.c.l.b16 %v60
  %v112 = vunpack.c.l.b16 %v61
  %v113 = vunpack.c.l.b16 %v62
  %v114 = vunpack.c.l.b16 %v63
  %v115 = vunpack.c.l.b16 %v64
  %v116 = vunpack.c.l.b16 %v65
  %v117 = vunpack.c.l.b16 %v66
  %v118 = vunpack.c.l.b16 %v67
  %v119 = vunpack.c.l.b16 %v68
  %v120 = vunpack.c.l.b16 %v69
  %v121 = vunpack.c.l.b16 %v70
  %v122 = vunpack.c.l.b16 %v71
  %v123 = vunpack.c.l.b16 %v72
  %v124 = vunpack.c.l.b16 %v73
  %v125 = vunpack.c.l.b16 %v74
  %v126 = vunpack.c.l.b16 %v75
  %v127 = vunpack.c.l.b16 %v76
  %v128 = vunpack.c.l.b16 %v77
  %v129 = vunpack.c.l.b16 %v78
  %v130 = vpack.c.b16 %v110, %v109
  %v131 = vpack.c.b16 %v112, %v111
  %v132 = vpack.c.b16 %v114, %v113
  %v133 = vpack.c.b16 %v116, %v115
  %v134 = vpack.c.b16 %v118, %v117
  %v135 = vpack.c.b16 %v120, %v119
  %v136 = vpack.c.b16 %v122, %v121
  %v137 = vpack.c.b16 %v124, %v123
  %v138 = vpack.c.b16 %v126, %v125
  %v139 = vpack.c.b16 %v128, %v127
  %v140 = vpack.c.b16 %v129, %v129
  %v146 = vunpack.c.l.b16 %v79
  %v147 = vunpack.c.l.b16 %v80
  %v148 = vunpack.c.l.b16 %v81
  %v149 = vunpack.c.l.b16 %v82
  %v150 = vunpack.c.l.b16 %v83
  %v151 = vpack.c.b16 %v147, %v146
  %v152 = vpack.c.b16 %v149, %v148
  %v153 = vpack.c.b16 %v150, %v150
  %vm156 = vcmask 285696
  %v158 = vsel %vm156, %v130, 0
  %v161 = vsel %vm156, %v131, 0
  %v164 = vsel %vm156, %v132, 0
  %v167 = vsel %vm156, %v133, 0
  %v170 = vsel %vm156, %v134, 0
  %v173 = vsel %vm156, %v135, 0
  %v176 = vsel %vm156, %v136, 0
  %v179 = vsel %vm156, %v137, 0
  %v182 = vsel %vm156, %v138, 0
  %v185 = vsel %vm156, %v139, 0
  %v188 = vsel %vm156, %v140, 0
  %vm190 = vcmask 1040384
  %vm191 = vcmask 1041408
  %v192 = vsel %vm190, 4294967295, 65535
  %v193 = vsel %vm191, %v192, 0
  %v195 = vand.u32 %v153, %v193
  %197 = vmatpush.bf16.msra.mxu0 0
  %198 = vmatpush.bf16.msra.mxu0 0
  %199 = vmatpush.bf16.msra.mxu0 0
  %200 = vmatpush.bf16.msra.mxu0 0
  %201 = vmatpush.bf16.msra.mxu0 0
  %202 = vmatpush.bf16.msra.mxu0 %v195
  %203 = vmatpush.bf16.msra.mxu0 %v152
  %204 = vmatpush.bf16.msra.mxu0 %v151
  %205 = vmatmul.bf16.gmra.mxu0 %v158
  %v206 = vpop.f32.mrf.mxu0
  %v207 = vadd.f32 %v86, %v206
  %v208 = vpop.f32.mrf.mxu0
  %v209 = vadd.f32 %v86, %v208
  %210 = vmatmul.bf16.gmra.mxu0 %v161
  %v211 = vpop.f32.mrf.mxu0
  %v212 = vadd.f32 %v86, %v211
  %v213 = vpop.f32.mrf.mxu0
  %v214 = vadd.f32 %v86, %v213
  %215 = vmatmul.bf16.gmra.mxu0 %v164
  %v216 = vpop.f32.mrf.mxu0
  %v217 = vadd.f32 %v86, %v216
  %v218 = vpop.f32.mrf.mxu0
  %v219 = vadd.f32 %v86, %v218
  %220 = vmatmul.bf16.gmra.mxu0 %v167
  %v221 = vpop.f32.mrf.mxu0
  %v222 = vadd.f32 %v86, %v221
  %v223 = vpop.f32.mrf.mxu0
  %v224 = vadd.f32 %v86, %v223
  %225 = vmatmul.bf16.gmra.mxu0 %v170
  %v226 = vpop.f32.mrf.mxu0
  %v227 = vadd.f32 %v86, %v226
  %v228 = vpop.f32.mrf.mxu0
  %v229 = vadd.f32 %v86, %v228
  %230 = vmatmul.bf16.gmra.mxu0 %v173
  %v231 = vpop.f32.mrf.mxu0
  %v232 = vadd.f32 %v86, %v231
  %v233 = vpop.f32.mrf.mxu0
  %v234 = vadd.f32 %v86, %v233
  %235 = vmatmul.bf16.gmra.mxu0 %v176
  %v236 = vpop.f32.mrf.mxu0
  %v237 = vadd.f32 %v86, %v236
  %v238 = vpop.f32.mrf.mxu0
  %v239 = vadd.f32 %v86, %v238
  %240 = vmatmul.bf16.gmra.mxu0 %v179
  %v241 = vpop.f32.mrf.mxu0
  %v242 = vadd.f32 %v86, %v241
  %v243 = vpop.f32.mrf.mxu0
  %v244 = vadd.f32 %v86, %v243
  %245 = vmatmul.bf16.gmra.mxu0 %v182
  %v246 = vpop.f32.mrf.mxu0
  %v247 = vadd.f32 %v86, %v246
  %v248 = vpop.f32.mrf.mxu0
  %v249 = vadd.f32 %v86, %v248
  %250 = vmatmul.bf16.gmra.mxu0 %v185
  %v251 = vpop.f32.mrf.mxu0
  %v252 = vadd.f32 %v86, %v251
  %v253 = vpop.f32.mrf.mxu0
  %v254 = vadd.f32 %v86, %v253
  %255 = vmatmul.bf16.gmra.mxu0 %v188
  %v256 = vpop.f32.mrf.mxu0
  %v257 = vadd.f32 %v86, %v256
  %v258 = vpop.f32.mrf.mxu0
  %259 = vdwg.mxu0
  %vm260 = vcmp.ge.f32.partialorder %v207, 0.0
  %vm261 = vcmp.ge.f32.partialorder %v209, 0.0
  %vm262 = vcmp.ge.f32.partialorder %v212, 0.0
  %vm263 = vcmp.ge.f32.partialorder %v214, 0.0
  %vm264 = vcmp.ge.f32.partialorder %v217, 0.0
  %vm265 = vcmp.ge.f32.partialorder %v219, 0.0
  %vm266 = vcmp.ge.f32.partialorder %v222, 0.0
  %vm267 = vcmp.ge.f32.partialorder %v224, 0.0
  %vm268 = vcmp.ge.f32.partialorder %v227, 0.0
  %vm269 = vcmp.ge.f32.partialorder %v229, 0.0
  %vm270 = vcmp.ge.f32.partialorder %v232, 0.0
  %vm271 = vcmp.ge.f32.partialorder %v234, 0.0
  %vm272 = vcmp.ge.f32.partialorder %v237, 0.0
  %vm273 = vcmp.ge.f32.partialorder %v239, 0.0
  %vm274 = vcmp.ge.f32.partialorder %v242, 0.0
  %vm275 = vcmp.ge.f32.partialorder %v244, 0.0
  %vm276 = vcmp.ge.f32.partialorder %v247, 0.0
  %vm277 = vcmp.ge.f32.partialorder %v249, 0.0
  %vm278 = vcmp.ge.f32.partialorder %v252, 0.0
  %vm279 = vcmp.ge.f32.partialorder %v254, 0.0
  %vm280 = vcmp.ge.f32.partialorder %v257, 0.0
  %v281 = vmul.f32 %v207, 0.1
  %v282 = vmul.f32 %v209, 0.1
  %v283 = vmul.f32 %v212, 0.1
  %v284 = vmul.f32 %v214, 0.1
  %v285 = vmul.f32 %v217, 0.1
  %v286 = vmul.f32 %v219, 0.1
  %v287 = vmul.f32 %v222, 0.1
  %v288 = vmul.f32 %v224, 0.1
  %v289 = vmul.f32 %v227, 0.1
  %v290 = vmul.f32 %v229, 0.1
  %v291 = vmul.f32 %v232, 0.1
  %v292 = vmul.f32 %v234, 0.1
  %v293 = vmul.f32 %v237, 0.1
  %v294 = vmul.f32 %v239, 0.1
  %v295 = vmul.f32 %v242, 0.1
  %v296 = vmul.f32 %v244, 0.1
  %v297 = vmul.f32 %v247, 0.1
  %v298 = vmul.f32 %v249, 0.1
  %v299 = vmul.f32 %v252, 0.1
  %v300 = vmul.f32 %v254, 0.1
  %v301 = vmul.f32 %v257, 0.1
  %v302 = vsel %vm260, %v207, %v281
  %v303 = vsel %vm261, %v209, %v282
  %v304 = vsel %vm262, %v212, %v283
  %v305 = vsel %vm263, %v214, %v284
  %v306 = vsel %vm264, %v217, %v285
  %v307 = vsel %vm265, %v219, %v286
  %v308 = vsel %vm266, %v222, %v287
  %v309 = vsel %vm267, %v224, %v288
  %v310 = vsel %vm268, %v227, %v289
  %v311 = vsel %vm269, %v229, %v290
  %v312 = vsel %vm270, %v232, %v291
  %v313 = vsel %vm271, %v234, %v292
  %v314 = vsel %vm272, %v237, %v293
  %v315 = vsel %vm273, %v239, %v294
  %v316 = vsel %vm274, %v242, %v295
  %v317 = vsel %vm275, %v244, %v296
  %v318 = vsel %vm276, %v247, %v297
  %v319 = vsel %vm277, %v249, %v298
  %v320 = vsel %vm278, %v252, %v299
  %v321 = vsel %vm279, %v254, %v300
  %v322 = vsel %vm280, %v257, %v301
  %vm323 = vcmask 130048
  %324 = vst.msk [vmem:[%s15] sm:$0xff] %vm323, %v302
  %325 = vst.msk [vmem:[%s15 + $0x8] sm:$0xff] %vm323, %v303
  %326 = vst.msk [vmem:[%s15 + $0x10] sm:$0xff] %vm323, %v304
  %327 = vst.msk [vmem:[%s15 + $0x18] sm:$0xff] %vm323, %v305
  %328 = vst.msk [vmem:[%s15 + $0x20] sm:$0xff] %vm323, %v306
  %329 = vst.msk [vmem:[%s15 + $0x28] sm:$0xff] %vm323, %v307
  %330 = vst.msk [vmem:[%s15 + $0x30] sm:$0xff] %vm323, %v308
  %331 = vst.msk [vmem:[%s15 + $0x38] sm:$0xff] %vm323, %v309
  %332 = vst.msk [vmem:[%s15 + $0x40] sm:$0xff] %vm323, %v310
  %333 = vst.msk [vmem:[%s15 + $0x48] sm:$0xff] %vm323, %v311
  %334 = vst.msk [vmem:[%s15 + $0x50] sm:$0xff] %vm323, %v312
  %335 = vst.msk [vmem:[%s15 + $0x58] sm:$0xff] %vm323, %v313
  %336 = vst.msk [vmem:[%s15 + $0x60] sm:$0xff] %vm323, %v314
  %337 = vst.msk [vmem:[%s15 + $0x68] sm:$0xff] %vm323, %v315
  %338 = vst.msk [vmem:[%s15 + $0x70] sm:$0xff] %vm323, %v316
  %339 = vst.msk [vmem:[%s15 + $0x78] sm:$0xff] %vm323, %v317
  %340 = vst.msk [vmem:[%s15 + $0x80] sm:$0xff] %vm323, %v318
  %341 = vst.msk [vmem:[%s15 + $0x88] sm:$0xff] %vm323, %v319
  %342 = vst.msk [vmem:[%s15 + $0x90] sm:$0xff] %vm323, %v320
  %343 = vst.msk [vmem:[%s15 + $0x98] sm:$0xff] %vm323, %v321
  %344 = vst.msk [vmem:[%s15 + $0xa0] sm:$0xff] %vm323, %v322
  %v345 = vpack.c.bf16 %v303, %v302
  %v346 = vpack.c.bf16 %v305, %v304
  %v347 = vpack.c.bf16 %v307, %v306
  %v348 = vpack.c.bf16 %v309, %v308
  %v349 = vpack.c.bf16 %v311, %v310
  %v350 = vpack.c.bf16 %v313, %v312
  %v351 = vpack.c.bf16 %v315, %v314
  %v352 = vpack.c.bf16 %v317, %v316
  %v353 = vpack.c.bf16 %v319, %v318
  %v354 = vpack.c.bf16 %v321, %v320
  %v355 = vpack.c.bf16 %v322, %v322
  %v356 = vld [vmem:[%s3] sm:$0xff]
  %v357 = vld [vmem:[%s3 + $0x8] sm:$0xff]
  %v358 = vld [vmem:[%s3 + $0x10] sm:$0xff]
  %v359 = vld [vmem:[%s3 + $0x18] sm:$0xff]
  %v360 = vld [vmem:[%s3 + $0x20] sm:$0xff]
  %v361 = vld [vmem:[%s3 + $0x28] sm:$0xff]
  %v362 = vld [vmem:[%s3 + $0x30] sm:$0xff]
  %v363 = vld [vmem:[%s3 + $0x38] sm:$0xff]
  %v364 = vld [vmem:[%s3 + $0x40] sm:$0xff]
  %v365 = vld [vmem:[%s3 + $0x48] sm:$0xff]
  %v366 = vld [vmem:[%s3 + $0x50] sm:$0xff]
  %v367 = vld [vmem:[%s3 + $0x58] sm:$0xff]
  %v368 = vld [vmem:[%s3 + $0x60] sm:$0xff]
  %v369 = vld [vmem:[%s3 + $0x68] sm:$0xff]
  %v370 = vld [vmem:[%s3 + $0x70] sm:$0xff]
  %v371 = vld [vmem:[%s3 + $0x78] sm:$0xff]
  %v372 = vld [vmem:[%s3 + $0x80] sm:$0xff]
  %v373 = vld [vmem:[%s3 + $0x88] sm:$0xff]
  %v374 = vld [vmem:[%s3 + $0x90] sm:$0xff]
  %v375 = vld [vmem:[%s3 + $0x98] sm:$0xff]
  %v376 = vld [vmem:[%s3 + $0xa0] sm:$0xff]
  %v377 = vld [vmem:[%s3 + $0xa8] sm:$0xff]
  %v378 = vld [vmem:[%s3 + $0xb0] sm:$0xff]
  %v379 = vld [vmem:[%s3 + $0xb8] sm:$0xff]
  %v380 = vld [vmem:[%s3 + $0xc0] sm:$0xff]
  %v381 = vld [vmem:[%s3 + $0xc8] sm:$0xff]
  %v382 = vld [vmem:[%s3 + $0xd0] sm:$0xff]
  %v383 = vld [vmem:[%s3 + $0xd8] sm:$0xff]
  %v384 = vld [vmem:[%s3 + $0xe0] sm:$0xff]
  %v385 = vld [vmem:[%s3 + $0xe8] sm:$0xff]
  %v386 = vld [vmem:[%s3 + $0xf0] sm:$0xff]
  %v387 = vld [vmem:[%s3 + $0xf8] sm:$0xff]
  %v388 = vld [vmem:[%s3 + $0x100] sm:$0xff]
  %v389 = vld [vmem:[%s3 + $0x108] sm:$0xff]
  %v390 = vld [vmem:[%s3 + $0x110] sm:$0xff]
  %v391 = vld [vmem:[%s3 + $0x118] sm:$0xff]
  %v392 = vld [vmem:[%s3 + $0x120] sm:$0xff]
  %v393 = vld [vmem:[%s3 + $0x128] sm:$0xff]
  %v394 = vld [vmem:[%s3 + $0x130] sm:$0xff]
  %v395 = vld [vmem:[%s3 + $0x138] sm:$0xff]
  %v396 = vld [vmem:[%s3 + $0x140] sm:$0xff]
  %v397 = vld [vmem:[%s3 + $0x148] sm:$0xff]
  %v398 = vld [vmem:[%s3 + $0x150] sm:$0xff]
  %v399 = vld [vmem:[%s3 + $0x158] sm:$0xff]
  %v400 = vld [vmem:[%s3 + $0x160] sm:$0xff]
  %v401 = vld [vmem:[%s3 + $0x168] sm:$0xff]
  %v402 = vld [vmem:[%s3 + $0x170] sm:$0xff]
  %v403 = vld [vmem:[%s3 + $0x178] sm:$0xff]
  %v404 = vld [vmem:[%s3 + $0x180] sm:$0xff]
  %v405 = vld [vmem:[%s3 + $0x188] sm:$0xff]
  %v406 = vld [vmem:[%s3 + $0x190] sm:$0xff]
  %v407 = vld [vmem:[%s3 + $0x198] sm:$0xff]
  %v408 = vld [vmem:[%s3 + $0x1a0] sm:$0xff]
  %v409 = vld [vmem:[%s3 + $0x1a8] sm:$0xff]
  %v410 = vld [vmem:[%s3 + $0x1b0] sm:$0xff]
  %v411 = vld [vmem:[%s3 + $0x1b8] sm:$0xff]
  %v412 = vld [vmem:[%s3 + $0x1c0] sm:$0xff]
  %v413 = vld [vmem:[%s3 + $0x1c8] sm:$0xff]
  %v414 = vld [vmem:[%s3 + $0x1d0] sm:$0xff]
  %v415 = vld [vmem:[%s3 + $0x1d8] sm:$0xff]
  %v416 = vld [vmem:[%s3 + $0x1e0] sm:$0xff]
  %v417 = vld [vmem:[%s3 + $0x1e8] sm:$0xff]
  %v418 = vld [vmem:[%s3 + $0x1f0] sm:$0xff]
  %v419 = vld [vmem:[%s3 + $0x1f8] sm:$0xff]
  %v420 = vld [vmem:[%s3 + $0x200] sm:$0xff]
  %v421 = vld [vmem:[%s3 + $0x208] sm:$0xff]
  %v422 = vld [vmem:[%s3 + $0x210] sm:$0xff]
  %v423 = vld [vmem:[%s3 + $0x218] sm:$0xff]
  %v424 = vld [vmem:[%s3 + $0x220] sm:$0xff]
  %v425 = vld [vmem:[%s3 + $0x228] sm:$0xff]
  %v426 = vld [vmem:[%s3 + $0x230] sm:$0xff]
  %v427 = vld [vmem:[%s3 + $0x238] sm:$0xff]
  %v428 = vld [vmem:[%s3 + $0x240] sm:$0xff]
  %v429 = vld [vmem:[%s3 + $0x248] sm:$0xff]
  %v430 = vld [vmem:[%s3 + $0x250] sm:$0xff]
  %v431 = vld [vmem:[%s3 + $0x258] sm:$0xff]
  %v432 = vld [vmem:[%s3 + $0x260] sm:$0xff]
  %v433 = vld [vmem:[%s3 + $0x268] sm:$0xff]
  %v434 = vld [vmem:[%s3 + $0x270] sm:$0xff]
  %v435 = vld [vmem:[%s3 + $0x278] sm:$0xff]
  %v436 = vld [vmem:[%s3 + $0x280] sm:$0xff]
  %v437 = vld [vmem:[%s3 + $0x288] sm:$0xff]
  %v438 = vld [vmem:[%s3 + $0x290] sm:$0xff]
  %v439 = vld [vmem:[%s3 + $0x298] sm:$0xff]
  %v440 = vld [vmem:[%s3 + $0x2a0] sm:$0xff]
  %v441 = vld [vmem:[%s3 + $0x2a8] sm:$0xff]
  %v442 = vld [vmem:[%s3 + $0x2b0] sm:$0xff]
  %v443 = vld [vmem:[%s3 + $0x2b8] sm:$0xff]
  %v444 = vld [vmem:[%s3 + $0x2c0] sm:$0xff]
  %v445 = vld [vmem:[%s3 + $0x2c8] sm:$0xff]
  %v446 = vld [vmem:[%s3 + $0x2d0] sm:$0xff]
  %v447 = vld [vmem:[%s3 + $0x2d8] sm:$0xff]
  %v448 = vld [vmem:[%s3 + $0x2e0] sm:$0xff]
  %v449 = vld [vmem:[%s3 + $0x2e8] sm:$0xff]
  %v450 = vld [vmem:[%s3 + $0x2f0] sm:$0xff]
  %v451 = vld [vmem:[%s3 + $0x2f8] sm:$0xff]
  %v452 = vld [vmem:[%s3 + $0x300] sm:$0xff]
  %v453 = vld [vmem:[%s3 + $0x308] sm:$0xff]
  %v454 = vld [vmem:[%s3 + $0x310] sm:$0xff]
  %v455 = vld [vmem:[%s3 + $0x318] sm:$0xff]
  %v456 = vld [vmem:[%s3 + $0x320] sm:$0xff]
  %v457 = vld [vmem:[%s3 + $0x328] sm:$0xff]
  %v458 = vld [vmem:[%s3 + $0x330] sm:$0xff]
  %v459 = vld [vmem:[%s3 + $0x338] sm:$0xff]
  %v460 = vld [vmem:[%s3 + $0x340] sm:$0xff]
  %v461 = vld [vmem:[%s3 + $0x348] sm:$0xff]
  %v462 = vld [vmem:[%s3 + $0x350] sm:$0xff]
  %v463 = vld [vmem:[%s3 + $0x358] sm:$0xff]
  %v464 = vld [vmem:[%s3 + $0x360] sm:$0xff]
  %v465 = vld [vmem:[%s3 + $0x368] sm:$0xff]
  %v466 = vld [vmem:[%s3 + $0x370] sm:$0xff]
  %v467 = vld [vmem:[%s3 + $0x378] sm:$0xff]
  %v468 = vld [vmem:[%s3 + $0x380] sm:$0xff]
  %v469 = vld [vmem:[%s3 + $0x388] sm:$0xff]
  %v470 = vld [vmem:[%s3 + $0x390] sm:$0xff]
  %v471 = vld [vmem:[%s3 + $0x398] sm:$0xff]
  %v472 = vld [vmem:[%s3 + $0x3a0] sm:$0xff]
  %v473 = vld [vmem:[%s3 + $0x3a8] sm:$0xff]
  %v474 = vld [vmem:[%s3 + $0x3b0] sm:$0xff]
  %v475 = vld [vmem:[%s3 + $0x3b8] sm:$0xff]
  %v476 = vld [vmem:[%s3 + $0x3c0] sm:$0xff]
  %v477 = vld [vmem:[%s3 + $0x3c8] sm:$0xff]
  %v478 = vld [vmem:[%s3 + $0x3d0] sm:$0xff]
  %v479 = vld [vmem:[%s3 + $0x3d8] sm:$0xff]
  %v480 = vld [vmem:[%s3 + $0x3e0] sm:$0xff]
  %v481 = vld [vmem:[%s3 + $0x3e8] sm:$0xff]
  %v482 = vld [vmem:[%s3 + $0x3f0] sm:$0xff]
  %v483 = vld [vmem:[%s3 + $0x3f8] sm:$0xff]
  %v484 = vld [vmem:[%s3 + $0x400] sm:$0xff]
  %v485 = vld [vmem:[%s3 + $0x408] sm:$0xff]
  %v486 = vld [vmem:[%s3 + $0x410] sm:$0xff]
  %v487 = vld [vmem:[%s3 + $0x418] sm:$0xff]
  %v488 = vld [vmem:[%s3 + $0x420] sm:$0xff]
  %v489 = vld [vmem:[%s3 + $0x428] sm:$0xff]
  %v490 = vld [vmem:[%s3 + $0x430] sm:$0xff]
  %v491 = vld [vmem:[%s3 + $0x438] sm:$0xff]
  %v492 = vld [vmem:[%s3 + $0x440] sm:$0xff]
  %v493 = vld [vmem:[%s3 + $0x448] sm:$0xff]
  %v494 = vld [vmem:[%s3 + $0x450] sm:$0xff]
  %v495 = vld [vmem:[%s3 + $0x458] sm:$0xff]
  %v636 = vunpack.c.l.b16 %v356
  %v637 = vunpack.c.h.b16 %v356
  %v638 = vunpack.c.l.b16 %v357
  %v639 = vunpack.c.h.b16 %v357
  %v640 = vunpack.c.l.b16 %v358
  %v641 = vunpack.c.h.b16 %v358
  %v642 = vunpack.c.l.b16 %v359
  %v643 = vunpack.c.h.b16 %v359
  %v644 = vunpack.c.l.b16 %v360
  %v645 = vunpack.c.h.b16 %v360
  %v646 = vunpack.c.l.b16 %v361
  %v647 = vunpack.c.h.b16 %v361
  %v648 = vunpack.c.l.b16 %v362
  %v649 = vunpack.c.h.b16 %v362
  %v650 = vunpack.c.l.b16 %v363
  %v651 = vunpack.c.h.b16 %v363
  %v652 = vunpack.c.l.b16 %v364
  %v653 = vunpack.c.h.b16 %v364
  %v654 = vunpack.c.l.b16 %v365
  %v655 = vunpack.c.h.b16 %v365
  %v656 = vunpack.c.l.b16 %v366
  %v657 = vunpack.c.h.b16 %v366
  %v658 = vunpack.c.l.b16 %v367
  %v659 = vunpack.c.h.b16 %v367
  %v660 = vunpack.c.l.b16 %v368
  %v661 = vunpack.c.h.b16 %v368
  %v662 = vunpack.c.l.b16 %v369
  %v663 = vunpack.c.h.b16 %v369
  %v664 = vunpack.c.l.b16 %v370
  %v665 = vunpack.c.h.b16 %v370
  %v666 = vunpack.c.l.b16 %v371
  %v667 = vunpack.c.h.b16 %v371
  %v668 = vunpack.c.l.b16 %v372
  %v669 = vunpack.c.h.b16 %v372
  %v670 = vunpack.c.l.b16 %v373
  %v671 = vunpack.c.h.b16 %v373
  %v672 = vunpack.c.l.b16 %v374
  %v673 = vunpack.c.h.b16 %v374
  %v674 = vunpack.c.l.b16 %v375
  %v675 = vunpack.c.h.b16 %v375
  %v676 = vunpack.c.l.b16 %v376
  %v677 = vunpack.c.h.b16 %v376
  %v678 = vunpack.c.l.b16 %v377
  %v679 = vunpack.c.h.b16 %v377
  %v680 = vunpack.c.l.b16 %v378
  %v681 = vunpack.c.h.b16 %v378
  %v682 = vunpack.c.l.b16 %v379
  %v683 = vunpack.c.h.b16 %v379
  %v684 = vunpack.c.l.b16 %v380
  %v685 = vunpack.c.h.b16 %v380
  %v686 = vunpack.c.l.b16 %v381
  %v687 = vunpack.c.h.b16 %v381
  %v688 = vunpack.c.l.b16 %v382
  %v689 = vunpack.c.h.b16 %v382
  %v690 = vunpack.c.l.b16 %v383
  %v691 = vunpack.c.h.b16 %v383
  %v692 = vunpack.c.l.b16 %v384
  %v693 = vunpack.c.h.b16 %v384
  %v694 = vunpack.c.l.b16 %v385
  %v695 = vunpack.c.h.b16 %v385
  %v696 = vunpack.c.l.b16 %v386
  %v697 = vunpack.c.h.b16 %v386
  %v698 = vunpack.c.l.b16 %v387
  %v699 = vunpack.c.h.b16 %v387
  %v700 = vunpack.c.l.b16 %v388
  %v701 = vunpack.c.h.b16 %v388
  %v702 = vunpack.c.l.b16 %v389
  %v703 = vunpack.c.h.b16 %v389
  %v704 = vunpack.c.l.b16 %v390
  %v705 = vunpack.c.h.b16 %v390
  %v706 = vunpack.c.l.b16 %v391
  %v707 = vunpack.c.h.b16 %v391
  %v708 = vunpack.c.l.b16 %v392
  %v709 = vunpack.c.h.b16 %v392
  %v710 = vunpack.c.l.b16 %v393
  %v711 = vunpack.c.h.b16 %v393
  %v712 = vunpack.c.l.b16 %v394
  %v713 = vunpack.c.h.b16 %v394
  %v714 = vunpack.c.l.b16 %v395
  %v715 = vunpack.c.h.b16 %v395
  %v716 = vunpack.c.l.b16 %v396
  %v717 = vunpack.c.h.b16 %v396
  %v718 = vunpack.c.l.b16 %v397
  %v719 = vunpack.c.h.b16 %v397
  %v720 = vunpack.c.l.b16 %v398
  %v721 = vunpack.c.h.b16 %v398
  %v722 = vunpack.c.l.b16 %v399
  %v723 = vunpack.c.h.b16 %v399
  %v724 = vunpack.c.l.b16 %v400
  %v725 = vunpack.c.h.b16 %v400
  %v726 = vunpack.c.l.b16 %v401
  %v727 = vunpack.c.h.b16 %v401
  %v728 = vunpack.c.l.b16 %v402
  %v729 = vunpack.c.h.b16 %v402
  %v730 = vunpack.c.l.b16 %v403
  %v731 = vunpack.c.h.b16 %v403
  %v732 = vunpack.c.l.b16 %v404
  %v733 = vunpack.c.h.b16 %v404
  %v734 = vunpack.c.l.b16 %v405
  %v735 = vunpack.c.h.b16 %v405
  %v736 = vunpack.c.l.b16 %v406
  %v737 = vunpack.c.h.b16 %v406
  %v738 = vunpack.c.l.b16 %v407
  %v739 = vunpack.c.h.b16 %v407
  %v740 = vunpack.c.l.b16 %v408
  %v741 = vunpack.c.h.b16 %v408
  %v742 = vunpack.c.l.b16 %v409
  %v743 = vunpack.c.h.b16 %v409
  %v744 = vunpack.c.l.b16 %v410
  %v745 = vunpack.c.h.b16 %v410
  %v746 = vunpack.c.l.b16 %v411
  %v747 = vunpack.c.h.b16 %v411
  %v748 = vunpack.c.l.b16 %v412
  %v749 = vunpack.c.h.b16 %v412
  %v750 = vunpack.c.l.b16 %v413
  %v751 = vunpack.c.h.b16 %v413
  %v752 = vunpack.c.l.b16 %v414
  %v753 = vunpack.c.h.b16 %v414
  %v754 = vunpack.c.l.b16 %v415
  %v755 = vunpack.c.h.b16 %v415
  %v756 = vunpack.c.l.b16 %v416
  %v757 = vunpack.c.h.b16 %v416
  %v758 = vunpack.c.l.b16 %v417
  %v759 = vunpack.c.h.b16 %v417
  %v760 = vunpack.c.l.b16 %v418
  %v761 = vunpack.c.h.b16 %v418
  %v762 = vunpack.c.l.b16 %v419
  %v763 = vunpack.c.h.b16 %v419
  %v764 = vunpack.c.l.b16 %v420
  %v765 = vunpack.c.h.b16 %v420
  %v766 = vunpack.c.l.b16 %v421
  %v767 = vunpack.c.h.b16 %v421
  %v768 = vunpack.c.l.b16 %v422
  %v769 = vunpack.c.h.b16 %v422
  %v770 = vunpack.c.l.b16 %v423
  %v771 = vunpack.c.h.b16 %v423
  %v772 = vunpack.c.l.b16 %v424
  %v773 = vunpack.c.h.b16 %v424
  %v774 = vunpack.c.l.b16 %v425
  %v775 = vunpack.c.h.b16 %v425
  %v776 = vunpack.c.l.b16 %v426
  %v777 = vunpack.c.h.b16 %v426
  %v778 = vunpack.c.l.b16 %v427
  %v779 = vunpack.c.h.b16 %v427
  %v780 = vunpack.c.l.b16 %v428
  %v781 = vunpack.c.h.b16 %v428
  %v782 = vunpack.c.l.b16 %v429
  %v783 = vunpack.c.h.b16 %v429
  %v784 = vunpack.c.l.b16 %v430
  %v785 = vunpack.c.h.b16 %v430
  %v786 = vunpack.c.l.b16 %v431
  %v787 = vunpack.c.h.b16 %v431
  %v788 = vunpack.c.l.b16 %v432
  %v789 = vunpack.c.h.b16 %v432
  %v790 = vunpack.c.l.b16 %v433
  %v791 = vunpack.c.h.b16 %v433
  %v792 = vunpack.c.l.b16 %v434
  %v793 = vunpack.c.h.b16 %v434
  %v794 = vunpack.c.l.b16 %v435
  %v795 = vunpack.c.h.b16 %v435
  %v796 = vunpack.c.l.b16 %v436
  %v797 = vunpack.c.h.b16 %v436
  %v798 = vunpack.c.l.b16 %v437
  %v799 = vunpack.c.h.b16 %v437
  %v800 = vunpack.c.l.b16 %v438
  %v801 = vunpack.c.h.b16 %v438
  %v802 = vunpack.c.l.b16 %v439
  %v803 = vunpack.c.h.b16 %v439
  %v804 = vunpack.c.l.b16 %v440
  %v805 = vunpack.c.h.b16 %v440
  %v806 = vunpack.c.l.b16 %v441
  %v807 = vunpack.c.h.b16 %v441
  %v808 = vunpack.c.l.b16 %v442
  %v809 = vunpack.c.h.b16 %v442
  %v810 = vunpack.c.l.b16 %v443
  %v811 = vunpack.c.h.b16 %v443
  %v812 = vunpack.c.l.b16 %v444
  %v813 = vunpack.c.h.b16 %v444
  %v814 = vunpack.c.l.b16 %v445
  %v815 = vunpack.c.h.b16 %v445
  %v816 = vunpack.c.l.b16 %v446
  %v817 = vunpack.c.h.b16 %v446
  %v818 = vunpack.c.l.b16 %v447
  %v819 = vunpack.c.h.b16 %v447
  %v820 = vunpack.c.l.b16 %v448
  %v821 = vunpack.c.h.b16 %v448
  %v822 = vunpack.c.l.b16 %v449
  %v823 = vunpack.c.h.b16 %v449
  %v824 = vunpack.c.l.b16 %v450
  %v825 = vunpack.c.h.b16 %v450
  %v826 = vunpack.c.l.b16 %v451
  %v827 = vunpack.c.h.b16 %v451
  %v828 = vunpack.c.l.b16 %v452
  %v829 = vunpack.c.h.b16 %v452
  %v830 = vunpack.c.l.b16 %v453
  %v831 = vunpack.c.h.b16 %v453
  %v832 = vunpack.c.l.b16 %v454
  %v833 = vunpack.c.h.b16 %v454
  %v834 = vunpack.c.l.b16 %v455
  %v835 = vunpack.c.h.b16 %v455
  %v836 = vunpack.c.l.b16 %v456
  %v837 = vunpack.c.h.b16 %v456
  %v838 = vunpack.c.l.b16 %v457
  %v839 = vunpack.c.h.b16 %v457
  %v840 = vunpack.c.l.b16 %v458
  %v841 = vunpack.c.h.b16 %v458
  %v842 = vunpack.c.l.b16 %v459
  %v843 = vunpack.c.h.b16 %v459
  %v844 = vunpack.c.l.b16 %v460
  %v845 = vunpack.c.h.b16 %v460
  %v846 = vunpack.c.l.b16 %v461
  %v847 = vunpack.c.h.b16 %v461
  %v848 = vunpack.c.l.b16 %v462
  %v849 = vunpack.c.h.b16 %v462
  %v850 = vunpack.c.l.b16 %v463
  %v851 = vunpack.c.h.b16 %v463
  %v852 = vunpack.c.l.b16 %v464
  %v853 = vunpack.c.h.b16 %v464
  %v854 = vunpack.c.l.b16 %v465
  %v855 = vunpack.c.h.b16 %v465
  %v856 = vunpack.c.l.b16 %v466
  %v857 = vunpack.c.h.b16 %v466
  %v858 = vunpack.c.l.b16 %v467
  %v859 = vunpack.c.h.b16 %v467
  %v860 = vunpack.c.l.b16 %v468
  %v861 = vunpack.c.h.b16 %v468
  %v862 = vunpack.c.l.b16 %v469
  %v863 = vunpack.c.h.b16 %v469
  %v864 = vunpack.c.l.b16 %v470
  %v865 = vunpack.c.h.b16 %v470
  %v866 = vunpack.c.l.b16 %v471
  %v867 = vunpack.c.h.b16 %v471
  %v868 = vunpack.c.l.b16 %v472
  %v869 = vunpack.c.h.b16 %v472
  %v870 = vunpack.c.l.b16 %v473
  %v871 = vunpack.c.h.b16 %v473
  %v872 = vunpack.c.l.b16 %v474
  %v873 = vunpack.c.h.b16 %v474
  %v874 = vunpack.c.l.b16 %v475
  %v875 = vunpack.c.h.b16 %v475
  %v876 = vunpack.c.l.b16 %v476
  %v877 = vunpack.c.h.b16 %v476
  %v878 = vunpack.c.l.b16 %v477
  %v879 = vunpack.c.h.b16 %v477
  %v880 = vunpack.c.l.b16 %v478
  %v881 = vunpack.c.h.b16 %v478
  %v882 = vunpack.c.l.b16 %v479
  %v883 = vunpack.c.h.b16 %v479
  %v884 = vunpack.c.l.b16 %v480
  %v885 = vunpack.c.h.b16 %v480
  %v886 = vunpack.c.l.b16 %v481
  %v887 = vunpack.c.h.b16 %v481
  %v888 = vunpack.c.l.b16 %v482
  %v889 = vunpack.c.h.b16 %v482
  %v890 = vunpack.c.l.b16 %v483
  %v891 = vunpack.c.h.b16 %v483
  %v892 = vunpack.c.l.b16 %v484
  %v893 = vunpack.c.h.b16 %v484
  %v894 = vunpack.c.l.b16 %v485
  %v895 = vunpack.c.h.b16 %v485
  %v896 = vunpack.c.l.b16 %v486
  %v897 = vunpack.c.h.b16 %v486
  %v898 = vunpack.c.l.b16 %v487
  %v899 = vunpack.c.h.b16 %v487
  %v900 = vunpack.c.l.b16 %v488
  %v901 = vunpack.c.h.b16 %v488
  %v902 = vunpack.c.l.b16 %v489
  %v903 = vunpack.c.h.b16 %v489
  %v904 = vunpack.c.l.b16 %v490
  %v905 = vunpack.c.h.b16 %v490
  %v906 = vunpack.c.l.b16 %v491
  %v907 = vunpack.c.h.b16 %v491
  %v908 = vunpack.c.l.b16 %v492
  %v909 = vunpack.c.h.b16 %v492
  %v910 = vunpack.c.l.b16 %v493
  %v911 = vunpack.c.h.b16 %v493
  %v912 = vunpack.c.l.b16 %v494
  %v913 = vunpack.c.h.b16 %v494
  %v914 = vunpack.c.l.b16 %v495
  %v915 = vunpack.c.h.b16 %v495
  %v916 = vpack.c.b16 %v638, %v636
  %v917 = vpack.c.b16 %v639, %v637
  %v918 = vpack.c.b16 %v642, %v640
  %v919 = vpack.c.b16 %v643, %v641
  %v920 = vpack.c.b16 %v646, %v644
  %v921 = vpack.c.b16 %v647, %v645
  %v922 = vpack.c.b16 %v650, %v648
  %v923 = vpack.c.b16 %v651, %v649
  %v924 = vpack.c.b16 %v654, %v652
  %v925 = vpack.c.b16 %v655, %v653
  %v926 = vpack.c.b16 %v658, %v656
  %v927 = vpack.c.b16 %v659, %v657
  %v928 = vpack.c.b16 %v662, %v660
  %v929 = vpack.c.b16 %v663, %v661
  %v930 = vpack.c.b16 %v666, %v664
  %v931 = vpack.c.b16 %v667, %v665
  %v932 = vpack.c.b16 %v670, %v668
  %v933 = vpack.c.b16 %v671, %v669
  %v934 = vpack.c.b16 %v674, %v672
  %v935 = vpack.c.b16 %v675, %v673
  %v936 = vpack.c.b16 %v678, %v676
  %v937 = vpack.c.b16 %v679, %v677
  %v938 = vpack.c.b16 %v682, %v680
  %v939 = vpack.c.b16 %v683, %v681
  %v940 = vpack.c.b16 %v686, %v684
  %v941 = vpack.c.b16 %v687, %v685
  %v942 = vpack.c.b16 %v690, %v688
  %v943 = vpack.c.b16 %v691, %v689
  %v944 = vpack.c.b16 %v694, %v692
  %v945 = vpack.c.b16 %v695, %v693
  %v946 = vpack.c.b16 %v698, %v696
  %v947 = vpack.c.b16 %v699, %v697
  %v948 = vpack.c.b16 %v702, %v700
  %v949 = vpack.c.b16 %v703, %v701
  %v950 = vpack.c.b16 %v706, %v704
  %v951 = vpack.c.b16 %v707, %v705
  %v952 = vpack.c.b16 %v710, %v708
  %v953 = vpack.c.b16 %v711, %v709
  %v954 = vpack.c.b16 %v714, %v712
  %v955 = vpack.c.b16 %v715, %v713
  %v956 = vpack.c.b16 %v718, %v716
  %v957 = vpack.c.b16 %v719, %v717
  %v958 = vpack.c.b16 %v722, %v720
  %v959 = vpack.c.b16 %v723, %v721
  %v960 = vpack.c.b16 %v726, %v724
  %v961 = vpack.c.b16 %v727, %v725
  %v962 = vpack.c.b16 %v730, %v728
  %v963 = vpack.c.b16 %v731, %v729
  %v964 = vpack.c.b16 %v734, %v732
  %v965 = vpack.c.b16 %v735, %v733
  %v966 = vpack.c.b16 %v738, %v736
  %v967 = vpack.c.b16 %v739, %v737
  %v968 = vpack.c.b16 %v742, %v740
  %v969 = vpack.c.b16 %v743, %v741
  %v970 = vpack.c.b16 %v746, %v744
  %v971 = vpack.c.b16 %v747, %v745
  %v972 = vpack.c.b16 %v750, %v748
  %v973 = vpack.c.b16 %v751, %v749
  %v974 = vpack.c.b16 %v754, %v752
  %v975 = vpack.c.b16 %v755, %v753
  %v976 = vpack.c.b16 %v758, %v756
  %v977 = vpack.c.b16 %v759, %v757
  %v978 = vpack.c.b16 %v762, %v760
  %v979 = vpack.c.b16 %v763, %v761
  %v980 = vpack.c.b16 %v766, %v764
  %v981 = vpack.c.b16 %v767, %v765
  %v982 = vpack.c.b16 %v770, %v768
  %v983 = vpack.c.b16 %v771, %v769
  %v984 = vpack.c.b16 %v774, %v772
  %v985 = vpack.c.b16 %v775, %v773
  %v986 = vpack.c.b16 %v778, %v776
  %v987 = vpack.c.b16 %v779, %v777
  %v988 = vpack.c.b16 %v782, %v780
  %v989 = vpack.c.b16 %v783, %v781
  %v990 = vpack.c.b16 %v786, %v784
  %v991 = vpack.c.b16 %v787, %v785
  %v992 = vpack.c.b16 %v790, %v788
  %v993 = vpack.c.b16 %v791, %v789
  %v994 = vpack.c.b16 %v794, %v792
  %v995 = vpack.c.b16 %v795, %v793
  %v996 = vpack.c.b16 %v798, %v796
  %v997 = vpack.c.b16 %v799, %v797
  %v998 = vpack.c.b16 %v802, %v800
  %v999 = vpack.c.b16 %v803, %v801
  %v1000 = vpack.c.b16 %v806, %v804
  %v1001 = vpack.c.b16 %v807, %v805
  %v1002 = vpack.c.b16 %v810, %v808
  %v1003 = vpack.c.b16 %v811, %v809
  %v1004 = vpack.c.b16 %v814, %v812
  %v1005 = vpack.c.b16 %v815, %v813
  %v1006 = vpack.c.b16 %v818, %v816
  %v1007 = vpack.c.b16 %v819, %v817
  %v1008 = vpack.c.b16 %v822, %v820
  %v1009 = vpack.c.b16 %v823, %v821
  %v1010 = vpack.c.b16 %v826, %v824
  %v1011 = vpack.c.b16 %v827, %v825
  %v1012 = vpack.c.b16 %v830, %v828
  %v1013 = vpack.c.b16 %v831, %v829
  %v1014 = vpack.c.b16 %v834, %v832
  %v1015 = vpack.c.b16 %v835, %v833
  %v1016 = vpack.c.b16 %v838, %v836
  %v1017 = vpack.c.b16 %v839, %v837
  %v1018 = vpack.c.b16 %v842, %v840
  %v1019 = vpack.c.b16 %v843, %v841
  %v1020 = vpack.c.b16 %v846, %v844
  %v1021 = vpack.c.b16 %v847, %v845
  %v1022 = vpack.c.b16 %v850, %v848
  %v1023 = vpack.c.b16 %v851, %v849
  %v1024 = vpack.c.b16 %v854, %v852
  %v1025 = vpack.c.b16 %v855, %v853
  %v1026 = vpack.c.b16 %v858, %v856
  %v1027 = vpack.c.b16 %v859, %v857
  %v1028 = vpack.c.b16 %v862, %v860
  %v1029 = vpack.c.b16 %v863, %v861
  %v1030 = vpack.c.b16 %v866, %v864
  %v1031 = vpack.c.b16 %v867, %v865
  %v1032 = vpack.c.b16 %v870, %v868
  %v1033 = vpack.c.b16 %v871, %v869
  %v1034 = vpack.c.b16 %v874, %v872
  %v1035 = vpack.c.b16 %v875, %v873
  %v1036 = vpack.c.b16 %v878, %v876
  %v1037 = vpack.c.b16 %v879, %v877
  %v1038 = vpack.c.b16 %v882, %v880
  %v1039 = vpack.c.b16 %v883, %v881
  %v1040 = vpack.c.b16 %v886, %v884
  %v1041 = vpack.c.b16 %v887, %v885
  %v1042 = vpack.c.b16 %v890, %v888
  %v1043 = vpack.c.b16 %v891, %v889
  %v1044 = vpack.c.b16 %v894, %v892
  %v1045 = vpack.c.b16 %v895, %v893
  %v1046 = vpack.c.b16 %v898, %v896
  %v1047 = vpack.c.b16 %v899, %v897
  %v1048 = vpack.c.b16 %v902, %v900
  %v1049 = vpack.c.b16 %v903, %v901
  %v1050 = vpack.c.b16 %v906, %v904
  %v1051 = vpack.c.b16 %v907, %v905
  %v1052 = vpack.c.b16 %v910, %v908
  %v1053 = vpack.c.b16 %v911, %v909
  %v1054 = vpack.c.b16 %v914, %v912
  %v1055 = vpack.c.b16 %v915, %v913
  %vm1126 = vcmask 326656
  %v1128 = vsel %vm1126, %v917, 0
  %v1131 = vsel %vm1126, %v919, 0
  %v1134 = vsel %vm1126, %v921, 0
  %v1137 = vsel %vm1126, %v923, 0
  %v1140 = vsel %vm1126, %v925, 0
  %v1143 = vsel %vm1126, %v927, 0
  %v1146 = vsel %vm1126, %v929, 0
  %v1149 = vsel %vm1126, %v931, 0
  %v1152 = vsel %vm1126, %v933, 0
  %v1155 = vsel %vm1126, %v935, 0
  %v1158 = vsel %vm1126, %v937, 0
  %v1161 = vsel %vm1126, %v939, 0
  %v1164 = vsel %vm1126, %v941, 0
  %v1167 = vsel %vm1126, %v943, 0
  %v1170 = vsel %vm1126, %v945, 0
  %v1173 = vsel %vm1126, %v947, 0
  %v1176 = vsel %vm1126, %v949, 0
  %v1179 = vsel %vm1126, %v951, 0
  %v1182 = vsel %vm1126, %v953, 0
  %v1185 = vsel %vm1126, %v955, 0
  %v1188 = vsel %vm1126, %v957, 0
  %v1191 = vsel %vm1126, %v959, 0
  %v1194 = vsel %vm1126, %v961, 0
  %v1197 = vsel %vm1126, %v963, 0
  %v1200 = vsel %vm1126, %v965, 0
  %v1203 = vsel %vm1126, %v967, 0
  %v1206 = vsel %vm1126, %v969, 0
  %v1209 = vsel %vm1126, %v971, 0
  %v1212 = vsel %vm1126, %v973, 0
  %v1215 = vsel %vm1126, %v975, 0
  %v1218 = vsel %vm1126, %v977, 0
  %v1221 = vsel %vm1126, %v979, 0
  %v1224 = vsel %vm1126, %v981, 0
  %v1227 = vsel %vm1126, %v983, 0
  %v1230 = vsel %vm1126, %v985, 0
  %v1233 = vsel %vm1126, %v987, 0
  %v1236 = vsel %vm1126, %v989, 0
  %v1239 = vsel %vm1126, %v991, 0
  %v1242 = vsel %vm1126, %v993, 0
  %v1245 = vsel %vm1126, %v995, 0
  %v1248 = vsel %vm1126, %v997, 0
  %v1251 = vsel %vm1126, %v999, 0
  %v1254 = vsel %vm1126, %v1001, 0
  %v1257 = vsel %vm1126, %v1003, 0
  %v1260 = vsel %vm1126, %v1005, 0
  %v1263 = vsel %vm1126, %v1007, 0
  %v1266 = vsel %vm1126, %v1009, 0
  %v1269 = vsel %vm1126, %v1011, 0
  %v1272 = vsel %vm1126, %v1013, 0
  %v1275 = vsel %vm1126, %v1015, 0
  %v1278 = vsel %vm1126, %v1017, 0
  %v1281 = vsel %vm1126, %v1019, 0
  %v1284 = vsel %vm1126, %v1021, 0
  %v1287 = vsel %vm1126, %v1023, 0
  %v1290 = vsel %vm1126, %v1025, 0
  %v1293 = vsel %vm1126, %v1027, 0
  %v1296 = vsel %vm1126, %v1029, 0
  %v1299 = vsel %vm1126, %v1031, 0
  %v1302 = vsel %vm1126, %v1033, 0
  %v1305 = vsel %vm1126, %v1035, 0
  %v1308 = vsel %vm1126, %v1037, 0
  %v1311 = vsel %vm1126, %v1039, 0
  %v1314 = vsel %vm1126, %v1041, 0
  %v1317 = vsel %vm1126, %v1043, 0
  %v1320 = vsel %vm1126, %v1045, 0
  %v1323 = vsel %vm1126, %v1047, 0
  %v1326 = vsel %vm1126, %v1049, 0
  %v1329 = vsel %vm1126, %v1051, 0
  %v1332 = vsel %vm1126, %v1053, 0
  %v1335 = vsel %vm1126, %v1055, 0
  %vm1337 = vcmask 1043456
  %v1339 = vsel %vm1337, %v355, 0
  %1341 = vmatpush.bf16.msra.mxu0 %v352
  %1342 = vmatpush.bf16.msra.mxu0 %v351
  %1343 = vmatpush.bf16.msra.mxu0 %v350
  %1344 = vmatpush.bf16.msra.mxu0 %v349
  %1345 = vmatpush.bf16.msra.mxu0 %v348
  %1346 = vmatpush.bf16.msra.mxu0 %v347
  %1347 = vmatpush.bf16.msra.mxu0 %v346
  %1348 = vmatpush.bf16.msra.mxu0 %v345
  %1349 = vmatmul.bf16.gmra.mxu0 %v916
  %v1350 = vpop.f32.mrf.mxu0
  %v1351 = vadd.f32 0.0, %v1350
  %v1352 = vpop.f32.mrf.mxu0
  %v1353 = vadd.f32 0.0, %v1352
  %1354 = vmatmul.bf16.gmra.mxu0 %v918
  %v1355 = vpop.f32.mrf.mxu0
  %v1356 = vadd.f32 0.0, %v1355
  %v1357 = vpop.f32.mrf.mxu0
  %v1358 = vadd.f32 0.0, %v1357
  %1359 = vmatmul.bf16.gmra.mxu0 %v920
  %v1360 = vpop.f32.mrf.mxu0
  %v1361 = vadd.f32 0.0, %v1360
  %v1362 = vpop.f32.mrf.mxu0
  %v1363 = vadd.f32 0.0, %v1362
  %1364 = vmatmul.bf16.gmra.mxu0 %v922
  %v1365 = vpop.f32.mrf.mxu0
  %v1366 = vadd.f32 0.0, %v1365
  %v1367 = vpop.f32.mrf.mxu0
  %v1368 = vadd.f32 0.0, %v1367
  %1369 = vmatmul.bf16.gmra.mxu0 %v924
  %v1370 = vpop.f32.mrf.mxu0
  %v1371 = vadd.f32 0.0, %v1370
  %v1372 = vpop.f32.mrf.mxu0
  %v1373 = vadd.f32 0.0, %v1372
  %1374 = vmatmul.bf16.gmra.mxu0 %v926
  %v1375 = vpop.f32.mrf.mxu0
  %v1376 = vadd.f32 0.0, %v1375
  %v1377 = vpop.f32.mrf.mxu0
  %v1378 = vadd.f32 0.0, %v1377
  %1379 = vmatmul.bf16.gmra.mxu0 %v928
  %v1380 = vpop.f32.mrf.mxu0
  %v1381 = vadd.f32 0.0, %v1380
  %v1382 = vpop.f32.mrf.mxu0
  %v1383 = vadd.f32 0.0, %v1382
  %1384 = vmatmul.bf16.gmra.mxu0 %v930
  %v1385 = vpop.f32.mrf.mxu0
  %v1386 = vadd.f32 0.0, %v1385
  %v1387 = vpop.f32.mrf.mxu0
  %v1388 = vadd.f32 0.0, %v1387
  %1389 = vmatmul.bf16.gmra.mxu0 %v932
  %v1390 = vpop.f32.mrf.mxu0
  %v1391 = vadd.f32 0.0, %v1390
  %v1392 = vpop.f32.mrf.mxu0
  %v1393 = vadd.f32 0.0, %v1392
  %1394 = vmatmul.bf16.gmra.mxu0 %v934
  %v1395 = vpop.f32.mrf.mxu0
  %v1396 = vadd.f32 0.0, %v1395
  %v1397 = vpop.f32.mrf.mxu0
  %v1398 = vadd.f32 0.0, %v1397
  %1399 = vmatmul.bf16.gmra.mxu0 %v936
  %v1400 = vpop.f32.mrf.mxu0
  %v1401 = vadd.f32 0.0, %v1400
  %v1402 = vpop.f32.mrf.mxu0
  %v1403 = vadd.f32 0.0, %v1402
  %1404 = vmatmul.bf16.gmra.mxu0 %v938
  %v1405 = vpop.f32.mrf.mxu0
  %v1406 = vadd.f32 0.0, %v1405
  %v1407 = vpop.f32.mrf.mxu0
  %v1408 = vadd.f32 0.0, %v1407
  %1409 = vmatmul.bf16.gmra.mxu0 %v940
  %v1410 = vpop.f32.mrf.mxu0
  %v1411 = vadd.f32 0.0, %v1410
  %v1412 = vpop.f32.mrf.mxu0
  %v1413 = vadd.f32 0.0, %v1412
  %1414 = vmatmul.bf16.gmra.mxu0 %v942
  %v1415 = vpop.f32.mrf.mxu0
  %v1416 = vadd.f32 0.0, %v1415
  %v1417 = vpop.f32.mrf.mxu0
  %v1418 = vadd.f32 0.0, %v1417
  %1419 = vmatmul.bf16.gmra.mxu0 %v944
  %v1420 = vpop.f32.mrf.mxu0
  %v1421 = vadd.f32 0.0, %v1420
  %v1422 = vpop.f32.mrf.mxu0
  %v1423 = vadd.f32 0.0, %v1422
  %1424 = vmatmul.bf16.gmra.mxu0 %v946
  %v1425 = vpop.f32.mrf.mxu0
  %v1426 = vadd.f32 0.0, %v1425
  %v1427 = vpop.f32.mrf.mxu0
  %v1428 = vadd.f32 0.0, %v1427
  %1429 = vmatmul.bf16.gmra.mxu0 %v948
  %v1430 = vpop.f32.mrf.mxu0
  %v1431 = vadd.f32 0.0, %v1430
  %v1432 = vpop.f32.mrf.mxu0
  %v1433 = vadd.f32 0.0, %v1432
  %1434 = vmatmul.bf16.gmra.mxu0 %v950
  %v1435 = vpop.f32.mrf.mxu0
  %v1436 = vadd.f32 0.0, %v1435
  %v1437 = vpop.f32.mrf.mxu0
  %v1438 = vadd.f32 0.0, %v1437
  %1439 = vmatmul.bf16.gmra.mxu0 %v952
  %v1440 = vpop.f32.mrf.mxu0
  %v1441 = vadd.f32 0.0, %v1440
  %v1442 = vpop.f32.mrf.mxu0
  %v1443 = vadd.f32 0.0, %v1442
  %1444 = vmatmul.bf16.gmra.mxu0 %v954
  %v1445 = vpop.f32.mrf.mxu0
  %v1446 = vadd.f32 0.0, %v1445
  %v1447 = vpop.f32.mrf.mxu0
  %v1448 = vadd.f32 0.0, %v1447
  %1449 = vmatmul.bf16.gmra.mxu0 %v956
  %v1450 = vpop.f32.mrf.mxu0
  %v1451 = vadd.f32 0.0, %v1450
  %v1452 = vpop.f32.mrf.mxu0
  %v1453 = vadd.f32 0.0, %v1452
  %1454 = vmatmul.bf16.gmra.mxu0 %v958
  %v1455 = vpop.f32.mrf.mxu0
  %v1456 = vadd.f32 0.0, %v1455
  %v1457 = vpop.f32.mrf.mxu0
  %v1458 = vadd.f32 0.0, %v1457
  %1459 = vmatmul.bf16.gmra.mxu0 %v960
  %v1460 = vpop.f32.mrf.mxu0
  %v1461 = vadd.f32 0.0, %v1460
  %v1462 = vpop.f32.mrf.mxu0
  %v1463 = vadd.f32 0.0, %v1462
  %1464 = vmatmul.bf16.gmra.mxu0 %v962
  %v1465 = vpop.f32.mrf.mxu0
  %v1466 = vadd.f32 0.0, %v1465
  %v1467 = vpop.f32.mrf.mxu0
  %v1468 = vadd.f32 0.0, %v1467
  %1469 = vmatmul.bf16.gmra.mxu0 %v964
  %v1470 = vpop.f32.mrf.mxu0
  %v1471 = vadd.f32 0.0, %v1470
  %v1472 = vpop.f32.mrf.mxu0
  %v1473 = vadd.f32 0.0, %v1472
  %1474 = vmatmul.bf16.gmra.mxu0 %v966
  %v1475 = vpop.f32.mrf.mxu0
  %v1476 = vadd.f32 0.0, %v1475
  %v1477 = vpop.f32.mrf.mxu0
  %v1478 = vadd.f32 0.0, %v1477
  %1479 = vmatmul.bf16.gmra.mxu0 %v968
  %v1480 = vpop.f32.mrf.mxu0
  %v1481 = vadd.f32 0.0, %v1480
  %v1482 = vpop.f32.mrf.mxu0
  %v1483 = vadd.f32 0.0, %v1482
  %1484 = vmatmul.bf16.gmra.mxu0 %v970
  %v1485 = vpop.f32.mrf.mxu0
  %v1486 = vadd.f32 0.0, %v1485
  %v1487 = vpop.f32.mrf.mxu0
  %v1488 = vadd.f32 0.0, %v1487
  %1489 = vmatmul.bf16.gmra.mxu0 %v972
  %v1490 = vpop.f32.mrf.mxu0
  %v1491 = vadd.f32 0.0, %v1490
  %v1492 = vpop.f32.mrf.mxu0
  %v1493 = vadd.f32 0.0, %v1492
  %1494 = vmatmul.bf16.gmra.mxu0 %v974
  %v1495 = vpop.f32.mrf.mxu0
  %v1496 = vadd.f32 0.0, %v1495
  %v1497 = vpop.f32.mrf.mxu0
  %v1498 = vadd.f32 0.0, %v1497
  %1499 = vmatmul.bf16.gmra.mxu0 %v976
  %v1500 = vpop.f32.mrf.mxu0
  %v1501 = vadd.f32 0.0, %v1500
  %v1502 = vpop.f32.mrf.mxu0
  %v1503 = vadd.f32 0.0, %v1502
  %1504 = vmatmul.bf16.gmra.mxu0 %v978
  %v1505 = vpop.f32.mrf.mxu0
  %v1506 = vadd.f32 0.0, %v1505
  %v1507 = vpop.f32.mrf.mxu0
  %v1508 = vadd.f32 0.0, %v1507
  %1509 = vmatmul.bf16.gmra.mxu0 %v980
  %v1510 = vpop.f32.mrf.mxu0
  %v1511 = vadd.f32 0.0, %v1510
  %v1512 = vpop.f32.mrf.mxu0
  %v1513 = vadd.f32 0.0, %v1512
  %1514 = vmatmul.bf16.gmra.mxu0 %v982
  %v1515 = vpop.f32.mrf.mxu0
  %v1516 = vadd.f32 0.0, %v1515
  %v1517 = vpop.f32.mrf.mxu0
  %v1518 = vadd.f32 0.0, %v1517
  %1519 = vmatmul.bf16.gmra.mxu0 %v984
  %v1520 = vpop.f32.mrf.mxu0
  %v1521 = vadd.f32 0.0, %v1520
  %v1522 = vpop.f32.mrf.mxu0
  %v1523 = vadd.f32 0.0, %v1522
  %1524 = vmatmul.bf16.gmra.mxu0 %v986
  %v1525 = vpop.f32.mrf.mxu0
  %v1526 = vadd.f32 0.0, %v1525
  %v1527 = vpop.f32.mrf.mxu0
  %v1528 = vadd.f32 0.0, %v1527
  %1529 = vmatmul.bf16.gmra.mxu0 %v988
  %v1530 = vpop.f32.mrf.mxu0
  %v1531 = vadd.f32 0.0, %v1530
  %v1532 = vpop.f32.mrf.mxu0
  %v1533 = vadd.f32 0.0, %v1532
  %1534 = vmatmul.bf16.gmra.mxu0 %v990
  %v1535 = vpop.f32.mrf.mxu0
  %v1536 = vadd.f32 0.0, %v1535
  %v1537 = vpop.f32.mrf.mxu0
  %v1538 = vadd.f32 0.0, %v1537
  %1539 = vmatmul.bf16.gmra.mxu0 %v992
  %v1540 = vpop.f32.mrf.mxu0
  %v1541 = vadd.f32 0.0, %v1540
  %v1542 = vpop.f32.mrf.mxu0
  %v1543 = vadd.f32 0.0, %v1542
  %1544 = vmatmul.bf16.gmra.mxu0 %v994
  %v1545 = vpop.f32.mrf.mxu0
  %v1546 = vadd.f32 0.0, %v1545
  %v1547 = vpop.f32.mrf.mxu0
  %v1548 = vadd.f32 0.0, %v1547
  %1549 = vmatmul.bf16.gmra.mxu0 %v996
  %v1550 = vpop.f32.mrf.mxu0
  %v1551 = vadd.f32 0.0, %v1550
  %v1552 = vpop.f32.mrf.mxu0
  %v1553 = vadd.f32 0.0, %v1552
  %1554 = vmatmul.bf16.gmra.mxu0 %v998
  %v1555 = vpop.f32.mrf.mxu0
  %v1556 = vadd.f32 0.0, %v1555
  %v1557 = vpop.f32.mrf.mxu0
  %v1558 = vadd.f32 0.0, %v1557
  %1559 = vmatmul.bf16.gmra.mxu0 %v1000
  %v1560 = vpop.f32.mrf.mxu0
  %v1561 = vadd.f32 0.0, %v1560
  %v1562 = vpop.f32.mrf.mxu0
  %v1563 = vadd.f32 0.0, %v1562
  %1564 = vmatmul.bf16.gmra.mxu0 %v1002
  %v1565 = vpop.f32.mrf.mxu0
  %v1566 = vadd.f32 0.0, %v1565
  %v1567 = vpop.f32.mrf.mxu0
  %v1568 = vadd.f32 0.0, %v1567
  %1569 = vmatmul.bf16.gmra.mxu0 %v1004
  %v1570 = vpop.f32.mrf.mxu0
  %v1571 = vadd.f32 0.0, %v1570
  %v1572 = vpop.f32.mrf.mxu0
  %v1573 = vadd.f32 0.0, %v1572
  %1574 = vmatmul.bf16.gmra.mxu0 %v1006
  %v1575 = vpop.f32.mrf.mxu0
  %v1576 = vadd.f32 0.0, %v1575
  %v1577 = vpop.f32.mrf.mxu0
  %v1578 = vadd.f32 0.0, %v1577
  %1579 = vmatmul.bf16.gmra.mxu0 %v1008
  %v1580 = vpop.f32.mrf.mxu0
  %v1581 = vadd.f32 0.0, %v1580
  %v1582 = vpop.f32.mrf.mxu0
  %v1583 = vadd.f32 0.0, %v1582
  %1584 = vmatmul.bf16.gmra.mxu0 %v1010
  %v1585 = vpop.f32.mrf.mxu0
  %v1586 = vadd.f32 0.0, %v1585
  %v1587 = vpop.f32.mrf.mxu0
  %v1588 = vadd.f32 0.0, %v1587
  %1589 = vmatmul.bf16.gmra.mxu0 %v1012
  %v1590 = vpop.f32.mrf.mxu0
  %v1591 = vadd.f32 0.0, %v1590
  %v1592 = vpop.f32.mrf.mxu0
  %v1593 = vadd.f32 0.0, %v1592
  %1594 = vmatmul.bf16.gmra.mxu0 %v1014
  %v1595 = vpop.f32.mrf.mxu0
  %v1596 = vadd.f32 0.0, %v1595
  %v1597 = vpop.f32.mrf.mxu0
  %v1598 = vadd.f32 0.0, %v1597
  %1599 = vmatmul.bf16.gmra.mxu0 %v1016
  %v1600 = vpop.f32.mrf.mxu0
  %v1601 = vadd.f32 0.0, %v1600
  %v1602 = vpop.f32.mrf.mxu0
  %v1603 = vadd.f32 0.0, %v1602
  %1604 = vmatmul.bf16.gmra.mxu0 %v1018
  %v1605 = vpop.f32.mrf.mxu0
  %v1606 = vadd.f32 0.0, %v1605
  %v1607 = vpop.f32.mrf.mxu0
  %v1608 = vadd.f32 0.0, %v1607
  %1609 = vmatmul.bf16.gmra.mxu0 %v1020
  %v1610 = vpop.f32.mrf.mxu0
  %v1611 = vadd.f32 0.0, %v1610
  %v1612 = vpop.f32.mrf.mxu0
  %v1613 = vadd.f32 0.0, %v1612
  %1614 = vmatmul.bf16.gmra.mxu0 %v1022
  %v1615 = vpop.f32.mrf.mxu0
  %v1616 = vadd.f32 0.0, %v1615
  %v1617 = vpop.f32.mrf.mxu0
  %v1618 = vadd.f32 0.0, %v1617
  %1619 = vmatmul.bf16.gmra.mxu0 %v1024
  %v1620 = vpop.f32.mrf.mxu0
  %v1621 = vadd.f32 0.0, %v1620
  %v1622 = vpop.f32.mrf.mxu0
  %v1623 = vadd.f32 0.0, %v1622
  %1624 = vmatmul.bf16.gmra.mxu0 %v1026
  %v1625 = vpop.f32.mrf.mxu0
  %v1626 = vadd.f32 0.0, %v1625
  %v1627 = vpop.f32.mrf.mxu0
  %v1628 = vadd.f32 0.0, %v1627
  %1629 = vmatmul.bf16.gmra.mxu0 %v1028
  %v1630 = vpop.f32.mrf.mxu0
  %v1631 = vadd.f32 0.0, %v1630
  %v1632 = vpop.f32.mrf.mxu0
  %v1633 = vadd.f32 0.0, %v1632
  %1634 = vmatmul.bf16.gmra.mxu0 %v1030
  %v1635 = vpop.f32.mrf.mxu0
  %v1636 = vadd.f32 0.0, %v1635
  %v1637 = vpop.f32.mrf.mxu0
  %v1638 = vadd.f32 0.0, %v1637
  %1639 = vmatmul.bf16.gmra.mxu0 %v1032
  %v1640 = vpop.f32.mrf.mxu0
  %v1641 = vadd.f32 0.0, %v1640
  %v1642 = vpop.f32.mrf.mxu0
  %v1643 = vadd.f32 0.0, %v1642
  %1644 = vmatmul.bf16.gmra.mxu0 %v1034
  %v1645 = vpop.f32.mrf.mxu0
  %v1646 = vadd.f32 0.0, %v1645
  %v1647 = vpop.f32.mrf.mxu0
  %v1648 = vadd.f32 0.0, %v1647
  %1649 = vmatmul.bf16.gmra.mxu0 %v1036
  %v1650 = vpop.f32.mrf.mxu0
  %v1651 = vadd.f32 0.0, %v1650
  %v1652 = vpop.f32.mrf.mxu0
  %v1653 = vadd.f32 0.0, %v1652
  %1654 = vmatmul.bf16.gmra.mxu0 %v1038
  %v1655 = vpop.f32.mrf.mxu0
  %v1656 = vadd.f32 0.0, %v1655
  %v1657 = vpop.f32.mrf.mxu0
  %v1658 = vadd.f32 0.0, %v1657
  %1659 = vmatmul.bf16.gmra.mxu0 %v1040
  %v1660 = vpop.f32.mrf.mxu0
  %v1661 = vadd.f32 0.0, %v1660
  %v1662 = vpop.f32.mrf.mxu0
  %v1663 = vadd.f32 0.0, %v1662
  %1664 = vmatmul.bf16.gmra.mxu0 %v1042
  %v1665 = vpop.f32.mrf.mxu0
  %v1666 = vadd.f32 0.0, %v1665
  %v1667 = vpop.f32.mrf.mxu0
  %v1668 = vadd.f32 0.0, %v1667
  %1669 = vmatmul.bf16.gmra.mxu0 %v1044
  %v1670 = vpop.f32.mrf.mxu0
  %v1671 = vadd.f32 0.0, %v1670
  %v1672 = vpop.f32.mrf.mxu0
  %v1673 = vadd.f32 0.0, %v1672
  %1674 = vmatmul.bf16.gmra.mxu0 %v1046
  %v1675 = vpop.f32.mrf.mxu0
  %v1676 = vadd.f32 0.0, %v1675
  %v1677 = vpop.f32.mrf.mxu0
  %v1678 = vadd.f32 0.0, %v1677
  %1679 = vmatmul.bf16.gmra.mxu0 %v1048
  %v1680 = vpop.f32.mrf.mxu0
  %v1681 = vadd.f32 0.0, %v1680
  %v1682 = vpop.f32.mrf.mxu0
  %v1683 = vadd.f32 0.0, %v1682
  %1684 = vmatmul.bf16.gmra.mxu0 %v1050
  %v1685 = vpop.f32.mrf.mxu0
  %v1686 = vadd.f32 0.0, %v1685
  %v1687 = vpop.f32.mrf.mxu0
  %v1688 = vadd.f32 0.0, %v1687
  %1689 = vmatmul.bf16.gmra.mxu0 %v1052
  %v1690 = vpop.f32.mrf.mxu0
  %v1691 = vadd.f32 0.0, %v1690
  %v1692 = vpop.f32.mrf.mxu0
  %v1693 = vadd.f32 0.0, %v1692
  %1694 = vmatmul.bf16.gmra.mxu0 %v1054
  %v1695 = vpop.f32.mrf.mxu0
  %v1696 = vadd.f32 0.0, %v1695
  %v1697 = vpop.f32.mrf.mxu0
  %v1698 = vadd.f32 0.0, %v1697
  %1699 = vdwg.mxu0
  %1700 = vmatpush.bf16.msra.mxu0 0
  %1701 = vmatpush.bf16.msra.mxu0 0
  %1702 = vmatpush.bf16.msra.mxu0 0
  %1703 = vmatpush.bf16.msra.mxu0 0
  %1704 = vmatpush.bf16.msra.mxu0 0
  %1705 = vmatpush.bf16.msra.mxu0 %v1339
  %1706 = vmatpush.bf16.msra.mxu0 %v354
  %1707 = vmatpush.bf16.msra.mxu0 %v353
  %1708 = vmatmul.bf16.gmra.mxu0 %v1128
  %v1709 = vpop.f32.mrf.mxu0
  %v1710 = vadd.f32 %v1351, %v1709
  %v1711 = vpop.f32.mrf.mxu0
  %v1712 = vadd.f32 %v1353, %v1711
  %1713 = vmatmul.bf16.gmra.mxu0 %v1131
  %v1714 = vpop.f32.mrf.mxu0
  %v1715 = vadd.f32 %v1356, %v1714
  %v1716 = vpop.f32.mrf.mxu0
  %v1717 = vadd.f32 %v1358, %v1716
  %1718 = vmatmul.bf16.gmra.mxu0 %v1134
  %v1719 = vpop.f32.mrf.mxu0
  %v1720 = vadd.f32 %v1361, %v1719
  %v1721 = vpop.f32.mrf.mxu0
  %v1722 = vadd.f32 %v1363, %v1721
  %1723 = vmatmul.bf16.gmra.mxu0 %v1137
  %v1724 = vpop.f32.mrf.mxu0
  %v1725 = vadd.f32 %v1366, %v1724
  %v1726 = vpop.f32.mrf.mxu0
  %v1727 = vadd.f32 %v1368, %v1726
  %1728 = vmatmul.bf16.gmra.mxu0 %v1140
  %v1729 = vpop.f32.mrf.mxu0
  %v1730 = vadd.f32 %v1371, %v1729
  %v1731 = vpop.f32.mrf.mxu0
  %v1732 = vadd.f32 %v1373, %v1731
  %1733 = vmatmul.bf16.gmra.mxu0 %v1143
  %v1734 = vpop.f32.mrf.mxu0
  %v1735 = vadd.f32 %v1376, %v1734
  %v1736 = vpop.f32.mrf.mxu0
  %v1737 = vadd.f32 %v1378, %v1736
  %1738 = vmatmul.bf16.gmra.mxu0 %v1146
  %v1739 = vpop.f32.mrf.mxu0
  %v1740 = vadd.f32 %v1381, %v1739
  %v1741 = vpop.f32.mrf.mxu0
  %v1742 = vadd.f32 %v1383, %v1741
  %1743 = vmatmul.bf16.gmra.mxu0 %v1149
  %v1744 = vpop.f32.mrf.mxu0
  %v1745 = vadd.f32 %v1386, %v1744
  %v1746 = vpop.f32.mrf.mxu0
  %v1747 = vadd.f32 %v1388, %v1746
  %1748 = vmatmul.bf16.gmra.mxu0 %v1152
  %v1749 = vpop.f32.mrf.mxu0
  %v1750 = vadd.f32 %v1391, %v1749
  %v1751 = vpop.f32.mrf.mxu0
  %v1752 = vadd.f32 %v1393, %v1751
  %1753 = vmatmul.bf16.gmra.mxu0 %v1155
  %v1754 = vpop.f32.mrf.mxu0
  %v1755 = vadd.f32 %v1396, %v1754
  %v1756 = vpop.f32.mrf.mxu0
  %v1757 = vadd.f32 %v1398, %v1756
  %1758 = vmatmul.bf16.gmra.mxu0 %v1158
  %v1759 = vpop.f32.mrf.mxu0
  %v1760 = vadd.f32 %v1401, %v1759
  %v1761 = vpop.f32.mrf.mxu0
  %v1762 = vadd.f32 %v1403, %v1761
  %1763 = vmatmul.bf16.gmra.mxu0 %v1161
  %v1764 = vpop.f32.mrf.mxu0
  %v1765 = vadd.f32 %v1406, %v1764
  %v1766 = vpop.f32.mrf.mxu0
  %v1767 = vadd.f32 %v1408, %v1766
  %1768 = vmatmul.bf16.gmra.mxu0 %v1164
  %v1769 = vpop.f32.mrf.mxu0
  %v1770 = vadd.f32 %v1411, %v1769
  %v1771 = vpop.f32.mrf.mxu0
  %v1772 = vadd.f32 %v1413, %v1771
  %1773 = vmatmul.bf16.gmra.mxu0 %v1167
  %v1774 = vpop.f32.mrf.mxu0
  %v1775 = vadd.f32 %v1416, %v1774
  %v1776 = vpop.f32.mrf.mxu0
  %v1777 = vadd.f32 %v1418, %v1776
  %1778 = vmatmul.bf16.gmra.mxu0 %v1170
  %v1779 = vpop.f32.mrf.mxu0
  %v1780 = vadd.f32 %v1421, %v1779
  %v1781 = vpop.f32.mrf.mxu0
  %v1782 = vadd.f32 %v1423, %v1781
  %1783 = vmatmul.bf16.gmra.mxu0 %v1173
  %v1784 = vpop.f32.mrf.mxu0
  %v1785 = vadd.f32 %v1426, %v1784
  %v1786 = vpop.f32.mrf.mxu0
  %v1787 = vadd.f32 %v1428, %v1786
  %1788 = vmatmul.bf16.gmra.mxu0 %v1176
  %v1789 = vpop.f32.mrf.mxu0
  %v1790 = vadd.f32 %v1431, %v1789
  %v1791 = vpop.f32.mrf.mxu0
  %v1792 = vadd.f32 %v1433, %v1791
  %1793 = vmatmul.bf16.gmra.mxu0 %v1179
  %v1794 = vpop.f32.mrf.mxu0
  %v1795 = vadd.f32 %v1436, %v1794
  %v1796 = vpop.f32.mrf.mxu0
  %v1797 = vadd.f32 %v1438, %v1796
  %1798 = vmatmul.bf16.gmra.mxu0 %v1182
  %v1799 = vpop.f32.mrf.mxu0
  %v1800 = vadd.f32 %v1441, %v1799
  %v1801 = vpop.f32.mrf.mxu0
  %v1802 = vadd.f32 %v1443, %v1801
  %1803 = vmatmul.bf16.gmra.mxu0 %v1185
  %v1804 = vpop.f32.mrf.mxu0
  %v1805 = vadd.f32 %v1446, %v1804
  %v1806 = vpop.f32.mrf.mxu0
  %v1807 = vadd.f32 %v1448, %v1806
  %1808 = vmatmul.bf16.gmra.mxu0 %v1188
  %v1809 = vpop.f32.mrf.mxu0
  %v1810 = vadd.f32 %v1451, %v1809
  %v1811 = vpop.f32.mrf.mxu0
  %v1812 = vadd.f32 %v1453, %v1811
  %1813 = vmatmul.bf16.gmra.mxu0 %v1191
  %v1814 = vpop.f32.mrf.mxu0
  %v1815 = vadd.f32 %v1456, %v1814
  %v1816 = vpop.f32.mrf.mxu0
  %v1817 = vadd.f32 %v1458, %v1816
  %1818 = vmatmul.bf16.gmra.mxu0 %v1194
  %v1819 = vpop.f32.mrf.mxu0
  %v1820 = vadd.f32 %v1461, %v1819
  %v1821 = vpop.f32.mrf.mxu0
  %v1822 = vadd.f32 %v1463, %v1821
  %1823 = vmatmul.bf16.gmra.mxu0 %v1197
  %v1824 = vpop.f32.mrf.mxu0
  %v1825 = vadd.f32 %v1466, %v1824
  %v1826 = vpop.f32.mrf.mxu0
  %v1827 = vadd.f32 %v1468, %v1826
  %1828 = vmatmul.bf16.gmra.mxu0 %v1200
  %v1829 = vpop.f32.mrf.mxu0
  %v1830 = vadd.f32 %v1471, %v1829
  %v1831 = vpop.f32.mrf.mxu0
  %v1832 = vadd.f32 %v1473, %v1831
  %1833 = vmatmul.bf16.gmra.mxu0 %v1203
  %v1834 = vpop.f32.mrf.mxu0
  %v1835 = vadd.f32 %v1476, %v1834
  %v1836 = vpop.f32.mrf.mxu0
  %v1837 = vadd.f32 %v1478, %v1836
  %1838 = vmatmul.bf16.gmra.mxu0 %v1206
  %v1839 = vpop.f32.mrf.mxu0
  %v1840 = vadd.f32 %v1481, %v1839
  %v1841 = vpop.f32.mrf.mxu0
  %v1842 = vadd.f32 %v1483, %v1841
  %1843 = vmatmul.bf16.gmra.mxu0 %v1209
  %v1844 = vpop.f32.mrf.mxu0
  %v1845 = vadd.f32 %v1486, %v1844
  %v1846 = vpop.f32.mrf.mxu0
  %v1847 = vadd.f32 %v1488, %v1846
  %1848 = vmatmul.bf16.gmra.mxu0 %v1212
  %v1849 = vpop.f32.mrf.mxu0
  %v1850 = vadd.f32 %v1491, %v1849
  %v1851 = vpop.f32.mrf.mxu0
  %v1852 = vadd.f32 %v1493, %v1851
  %1853 = vmatmul.bf16.gmra.mxu0 %v1215
  %v1854 = vpop.f32.mrf.mxu0
  %v1855 = vadd.f32 %v1496, %v1854
  %v1856 = vpop.f32.mrf.mxu0
  %v1857 = vadd.f32 %v1498, %v1856
  %1858 = vmatmul.bf16.gmra.mxu0 %v1218
  %v1859 = vpop.f32.mrf.mxu0
  %v1860 = vadd.f32 %v1501, %v1859
  %v1861 = vpop.f32.mrf.mxu0
  %v1862 = vadd.f32 %v1503, %v1861
  %1863 = vmatmul.bf16.gmra.mxu0 %v1221
  %v1864 = vpop.f32.mrf.mxu0
  %v1865 = vadd.f32 %v1506, %v1864
  %v1866 = vpop.f32.mrf.mxu0
  %v1867 = vadd.f32 %v1508, %v1866
  %1868 = vmatmul.bf16.gmra.mxu0 %v1224
  %v1869 = vpop.f32.mrf.mxu0
  %v1870 = vadd.f32 %v1511, %v1869
  %v1871 = vpop.f32.mrf.mxu0
  %v1872 = vadd.f32 %v1513, %v1871
  %1873 = vmatmul.bf16.gmra.mxu0 %v1227
  %v1874 = vpop.f32.mrf.mxu0
  %v1875 = vadd.f32 %v1516, %v1874
  %v1876 = vpop.f32.mrf.mxu0
  %v1877 = vadd.f32 %v1518, %v1876
  %1878 = vmatmul.bf16.gmra.mxu0 %v1230
  %v1879 = vpop.f32.mrf.mxu0
  %v1880 = vadd.f32 %v1521, %v1879
  %v1881 = vpop.f32.mrf.mxu0
  %v1882 = vadd.f32 %v1523, %v1881
  %1883 = vmatmul.bf16.gmra.mxu0 %v1233
  %v1884 = vpop.f32.mrf.mxu0
  %v1885 = vadd.f32 %v1526, %v1884
  %v1886 = vpop.f32.mrf.mxu0
  %v1887 = vadd.f32 %v1528, %v1886
  %1888 = vmatmul.bf16.gmra.mxu0 %v1236
  %v1889 = vpop.f32.mrf.mxu0
  %v1890 = vadd.f32 %v1531, %v1889
  %v1891 = vpop.f32.mrf.mxu0
  %v1892 = vadd.f32 %v1533, %v1891
  %1893 = vmatmul.bf16.gmra.mxu0 %v1239
  %v1894 = vpop.f32.mrf.mxu0
  %v1895 = vadd.f32 %v1536, %v1894
  %v1896 = vpop.f32.mrf.mxu0
  %v1897 = vadd.f32 %v1538, %v1896
  %1898 = vmatmul.bf16.gmra.mxu0 %v1242
  %v1899 = vpop.f32.mrf.mxu0
  %v1900 = vadd.f32 %v1541, %v1899
  %v1901 = vpop.f32.mrf.mxu0
  %v1902 = vadd.f32 %v1543, %v1901
  %1903 = vmatmul.bf16.gmra.mxu0 %v1245
  %v1904 = vpop.f32.mrf.mxu0
  %v1905 = vadd.f32 %v1546, %v1904
  %v1906 = vpop.f32.mrf.mxu0
  %v1907 = vadd.f32 %v1548, %v1906
  %1908 = vmatmul.bf16.gmra.mxu0 %v1248
  %v1909 = vpop.f32.mrf.mxu0
  %v1910 = vadd.f32 %v1551, %v1909
  %v1911 = vpop.f32.mrf.mxu0
  %v1912 = vadd.f32 %v1553, %v1911
  %1913 = vmatmul.bf16.gmra.mxu0 %v1251
  %v1914 = vpop.f32.mrf.mxu0
  %v1915 = vadd.f32 %v1556, %v1914
  %v1916 = vpop.f32.mrf.mxu0
  %v1917 = vadd.f32 %v1558, %v1916
  %1918 = vmatmul.bf16.gmra.mxu0 %v1254
  %v1919 = vpop.f32.mrf.mxu0
  %v1920 = vadd.f32 %v1561, %v1919
  %v1921 = vpop.f32.mrf.mxu0
  %v1922 = vadd.f32 %v1563, %v1921
  %1923 = vmatmul.bf16.gmra.mxu0 %v1257
  %v1924 = vpop.f32.mrf.mxu0
  %v1925 = vadd.f32 %v1566, %v1924
  %v1926 = vpop.f32.mrf.mxu0
  %v1927 = vadd.f32 %v1568, %v1926
  %1928 = vmatmul.bf16.gmra.mxu0 %v1260
  %v1929 = vpop.f32.mrf.mxu0
  %v1930 = vadd.f32 %v1571, %v1929
  %v1931 = vpop.f32.mrf.mxu0
  %v1932 = vadd.f32 %v1573, %v1931
  %1933 = vmatmul.bf16.gmra.mxu0 %v1263
  %v1934 = vpop.f32.mrf.mxu0
  %v1935 = vadd.f32 %v1576, %v1934
  %v1936 = vpop.f32.mrf.mxu0
  %v1937 = vadd.f32 %v1578, %v1936
  %1938 = vmatmul.bf16.gmra.mxu0 %v1266
  %v1939 = vpop.f32.mrf.mxu0
  %v1940 = vadd.f32 %v1581, %v1939
  %v1941 = vpop.f32.mrf.mxu0
  %v1942 = vadd.f32 %v1583, %v1941
  %1943 = vmatmul.bf16.gmra.mxu0 %v1269
  %v1944 = vpop.f32.mrf.mxu0
  %v1945 = vadd.f32 %v1586, %v1944
  %v1946 = vpop.f32.mrf.mxu0
  %v1947 = vadd.f32 %v1588, %v1946
  %1948 = vmatmul.bf16.gmra.mxu0 %v1272
  %v1949 = vpop.f32.mrf.mxu0
  %v1950 = vadd.f32 %v1591, %v1949
  %v1951 = vpop.f32.mrf.mxu0
  %v1952 = vadd.f32 %v1593, %v1951
  %1953 = vmatmul.bf16.gmra.mxu0 %v1275
  %v1954 = vpop.f32.mrf.mxu0
  %v1955 = vadd.f32 %v1596, %v1954
  %v1956 = vpop.f32.mrf.mxu0
  %v1957 = vadd.f32 %v1598, %v1956
  %1958 = vmatmul.bf16.gmra.mxu0 %v1278
  %v1959 = vpop.f32.mrf.mxu0
  %v1960 = vadd.f32 %v1601, %v1959
  %v1961 = vpop.f32.mrf.mxu0
  %v1962 = vadd.f32 %v1603, %v1961
  %1963 = vmatmul.bf16.gmra.mxu0 %v1281
  %v1964 = vpop.f32.mrf.mxu0
  %v1965 = vadd.f32 %v1606, %v1964
  %v1966 = vpop.f32.mrf.mxu0
  %v1967 = vadd.f32 %v1608, %v1966
  %1968 = vmatmul.bf16.gmra.mxu0 %v1284
  %v1969 = vpop.f32.mrf.mxu0
  %v1970 = vadd.f32 %v1611, %v1969
  %v1971 = vpop.f32.mrf.mxu0
  %v1972 = vadd.f32 %v1613, %v1971
  %1973 = vmatmul.bf16.gmra.mxu0 %v1287
  %v1974 = vpop.f32.mrf.mxu0
  %v1975 = vadd.f32 %v1616, %v1974
  %v1976 = vpop.f32.mrf.mxu0
  %v1977 = vadd.f32 %v1618, %v1976
  %1978 = vmatmul.bf16.gmra.mxu0 %v1290
  %v1979 = vpop.f32.mrf.mxu0
  %v1980 = vadd.f32 %v1621, %v1979
  %v1981 = vpop.f32.mrf.mxu0
  %v1982 = vadd.f32 %v1623, %v1981
  %1983 = vmatmul.bf16.gmra.mxu0 %v1293
  %v1984 = vpop.f32.mrf.mxu0
  %v1985 = vadd.f32 %v1626, %v1984
  %v1986 = vpop.f32.mrf.mxu0
  %v1987 = vadd.f32 %v1628, %v1986
  %1988 = vmatmul.bf16.gmra.mxu0 %v1296
  %v1989 = vpop.f32.mrf.mxu0
  %v1990 = vadd.f32 %v1631, %v1989
  %v1991 = vpop.f32.mrf.mxu0
  %v1992 = vadd.f32 %v1633, %v1991
  %1993 = vmatmul.bf16.gmra.mxu0 %v1299
  %v1994 = vpop.f32.mrf.mxu0
  %v1995 = vadd.f32 %v1636, %v1994
  %v1996 = vpop.f32.mrf.mxu0
  %v1997 = vadd.f32 %v1638, %v1996
  %1998 = vmatmul.bf16.gmra.mxu0 %v1302
  %v1999 = vpop.f32.mrf.mxu0
  %v2000 = vadd.f32 %v1641, %v1999
  %v2001 = vpop.f32.mrf.mxu0
  %v2002 = vadd.f32 %v1643, %v2001
  %2003 = vmatmul.bf16.gmra.mxu0 %v1305
  %v2004 = vpop.f32.mrf.mxu0
  %v2005 = vadd.f32 %v1646, %v2004
  %v2006 = vpop.f32.mrf.mxu0
  %v2007 = vadd.f32 %v1648, %v2006
  %2008 = vmatmul.bf16.gmra.mxu0 %v1308
  %v2009 = vpop.f32.mrf.mxu0
  %v2010 = vadd.f32 %v1651, %v2009
  %v2011 = vpop.f32.mrf.mxu0
  %v2012 = vadd.f32 %v1653, %v2011
  %2013 = vmatmul.bf16.gmra.mxu0 %v1311
  %v2014 = vpop.f32.mrf.mxu0
  %v2015 = vadd.f32 %v1656, %v2014
  %v2016 = vpop.f32.mrf.mxu0
  %v2017 = vadd.f32 %v1658, %v2016
  %2018 = vmatmul.bf16.gmra.mxu0 %v1314
  %v2019 = vpop.f32.mrf.mxu0
  %v2020 = vadd.f32 %v1661, %v2019
  %v2021 = vpop.f32.mrf.mxu0
  %v2022 = vadd.f32 %v1663, %v2021
  %2023 = vmatmul.bf16.gmra.mxu0 %v1317
  %v2024 = vpop.f32.mrf.mxu0
  %v2025 = vadd.f32 %v1666, %v2024
  %v2026 = vpop.f32.mrf.mxu0
  %v2027 = vadd.f32 %v1668, %v2026
  %2028 = vmatmul.bf16.gmra.mxu0 %v1320
  %v2029 = vpop.f32.mrf.mxu0
  %v2030 = vadd.f32 %v1671, %v2029
  %v2031 = vpop.f32.mrf.mxu0
  %v2032 = vadd.f32 %v1673, %v2031
  %2033 = vmatmul.bf16.gmra.mxu0 %v1323
  %v2034 = vpop.f32.mrf.mxu0
  %v2035 = vadd.f32 %v1676, %v2034
  %v2036 = vpop.f32.mrf.mxu0
  %v2037 = vadd.f32 %v1678, %v2036
  %2038 = vmatmul.bf16.gmra.mxu0 %v1326
  %v2039 = vpop.f32.mrf.mxu0
  %v2040 = vadd.f32 %v1681, %v2039
  %v2041 = vpop.f32.mrf.mxu0
  %v2042 = vadd.f32 %v1683, %v2041
  %2043 = vmatmul.bf16.gmra.mxu0 %v1329
  %v2044 = vpop.f32.mrf.mxu0
  %v2045 = vadd.f32 %v1686, %v2044
  %v2046 = vpop.f32.mrf.mxu0
  %v2047 = vadd.f32 %v1688, %v2046
  %2048 = vmatmul.bf16.gmra.mxu0 %v1332
  %v2049 = vpop.f32.mrf.mxu0
  %v2050 = vadd.f32 %v1691, %v2049
  %v2051 = vpop.f32.mrf.mxu0
  %v2052 = vadd.f32 %v1693, %v2051
  %2053 = vmatmul.bf16.gmra.mxu0 %v1335
  %v2054 = vpop.f32.mrf.mxu0
  %v2055 = vadd.f32 %v1696, %v2054
  %v2056 = vpop.f32.mrf.mxu0
  %v2057 = vadd.f32 %v1698, %v2056
  %2058 = vdwg.mxu0
  %v2059 = vpack.c.bf16 %v1710, %v1710
  %v2060 = vpack.c.bf16 %v1712, %v1712
  %v2061 = vpack.c.bf16 %v1715, %v1715
  %v2062 = vpack.c.bf16 %v1717, %v1717
  %v2063 = vpack.c.bf16 %v1720, %v1720
  %v2064 = vpack.c.bf16 %v1722, %v1722
  %v2065 = vpack.c.bf16 %v1725, %v1725
  %v2066 = vpack.c.bf16 %v1727, %v1727
  %v2067 = vpack.c.bf16 %v1730, %v1730
  %v2068 = vpack.c.bf16 %v1732, %v1732
  %v2069 = vpack.c.bf16 %v1735, %v1735
  %v2070 = vpack.c.bf16 %v1737, %v1737
  %v2071 = vpack.c.bf16 %v1740, %v1740
  %v2072 = vpack.c.bf16 %v1742, %v1742
  %v2073 = vpack.c.bf16 %v1745, %v1745
  %v2074 = vpack.c.bf16 %v1747, %v1747
  %v2075 = vpack.c.bf16 %v1750, %v1750
  %v2076 = vpack.c.bf16 %v1752, %v1752
  %v2077 = vpack.c.bf16 %v1755, %v1755
  %v2078 = vpack.c.bf16 %v1757, %v1757
  %v2079 = vpack.c.bf16 %v1760, %v1760
  %v2080 = vpack.c.bf16 %v1762, %v1762
  %v2081 = vpack.c.bf16 %v1765, %v1765
  %v2082 = vpack.c.bf16 %v1767, %v1767
  %v2083 = vpack.c.bf16 %v1770, %v1770
  %v2084 = vpack.c.bf16 %v1772, %v1772
  %v2085 = vpack.c.bf16 %v1775, %v1775
  %v2086 = vpack.c.bf16 %v1777, %v1777
  %v2087 = vpack.c.bf16 %v1780, %v1780
  %v2088 = vpack.c.bf16 %v1782, %v1782
  %v2089 = vpack.c.bf16 %v1785, %v1785
  %v2090 = vpack.c.bf16 %v1787, %v1787
  %v2091 = vpack.c.bf16 %v1790, %v1790
  %v2092 = vpack.c.bf16 %v1792, %v1792
  %v2093 = vpack.c.bf16 %v1795, %v1795
  %v2094 = vpack.c.bf16 %v1797, %v1797
  %v2095 = vpack.c.bf16 %v1800, %v1800
  %v2096 = vpack.c.bf16 %v1802, %v1802
  %v2097 = vpack.c.bf16 %v1805, %v1805
  %v2098 = vpack.c.bf16 %v1807, %v1807
  %v2099 = vpack.c.bf16 %v1810, %v1810
  %v2100 = vpack.c.bf16 %v1812, %v1812
  %v2101 = vpack.c.bf16 %v1815, %v1815
  %v2102 = vpack.c.bf16 %v1817, %v1817
  %v2103 = vpack.c.bf16 %v1820, %v1820
  %v2104 = vpack.c.bf16 %v1822, %v1822
  %v2105 = vpack.c.bf16 %v1825, %v1825
  %v2106 = vpack.c.bf16 %v1827, %v1827
  %v2107 = vpack.c.bf16 %v1830, %v1830
  %v2108 = vpack.c.bf16 %v1832, %v1832
  %v2109 = vpack.c.bf16 %v1835, %v1835
  %v2110 = vpack.c.bf16 %v1837, %v1837
  %v2111 = vpack.c.bf16 %v1840, %v1840
  %v2112 = vpack.c.bf16 %v1842, %v1842
  %v2113 = vpack.c.bf16 %v1845, %v1845
  %v2114 = vpack.c.bf16 %v1847, %v1847
  %v2115 = vpack.c.bf16 %v1850, %v1850
  %v2116 = vpack.c.bf16 %v1852, %v1852
  %v2117 = vpack.c.bf16 %v1855, %v1855
  %v2118 = vpack.c.bf16 %v1857, %v1857
  %v2119 = vpack.c.bf16 %v1860, %v1860
  %v2120 = vpack.c.bf16 %v1862, %v1862
  %v2121 = vpack.c.bf16 %v1865, %v1865
  %v2122 = vpack.c.bf16 %v1867, %v1867
  %v2123 = vpack.c.bf16 %v1870, %v1870
  %v2124 = vpack.c.bf16 %v1872, %v1872
  %v2125 = vpack.c.bf16 %v1875, %v1875
  %v2126 = vpack.c.bf16 %v1877, %v1877
  %v2127 = vpack.c.bf16 %v1880, %v1880
  %v2128 = vpack.c.bf16 %v1882, %v1882
  %v2129 = vpack.c.bf16 %v1885, %v1885
  %v2130 = vpack.c.bf16 %v1887, %v1887
  %v2131 = vpack.c.bf16 %v1890, %v1890
  %v2132 = vpack.c.bf16 %v1892, %v1892
  %v2133 = vpack.c.bf16 %v1895, %v1895
  %v2134 = vpack.c.bf16 %v1897, %v1897
  %v2135 = vpack.c.bf16 %v1900, %v1900
  %v2136 = vpack.c.bf16 %v1902, %v1902
  %v2137 = vpack.c.bf16 %v1905, %v1905
  %v2138 = vpack.c.bf16 %v1907, %v1907
  %v2139 = vpack.c.bf16 %v1910, %v1910
  %v2140 = vpack.c.bf16 %v1912, %v1912
  %v2141 = vpack.c.bf16 %v1915, %v1915
  %v2142 = vpack.c.bf16 %v1917, %v1917
  %v2143 = vpack.c.bf16 %v1920, %v1920
  %v2144 = vpack.c.bf16 %v1922, %v1922
  %v2145 = vpack.c.bf16 %v1925, %v1925
  %v2146 = vpack.c.bf16 %v1927, %v1927
  %v2147 = vpack.c.bf16 %v1930, %v1930
  %v2148 = vpack.c.bf16 %v1932, %v1932
  %v2149 = vpack.c.bf16 %v1935, %v1935
  %v2150 = vpack.c.bf16 %v1937, %v1937
  %v2151 = vpack.c.bf16 %v1940, %v1940
  %v2152 = vpack.c.bf16 %v1942, %v1942
  %v2153 = vpack.c.bf16 %v1945, %v1945
  %v2154 = vpack.c.bf16 %v1947, %v1947
  %v2155 = vpack.c.bf16 %v1950, %v1950
  %v2156 = vpack.c.bf16 %v1952, %v1952
  %v2157 = vpack.c.bf16 %v1955, %v1955
  %v2158 = vpack.c.bf16 %v1957, %v1957
  %v2159 = vpack.c.bf16 %v1960, %v1960
  %v2160 = vpack.c.bf16 %v1962, %v1962
  %v2161 = vpack.c.bf16 %v1965, %v1965
  %v2162 = vpack.c.bf16 %v1967, %v1967
  %v2163 = vpack.c.bf16 %v1970, %v1970
  %v2164 = vpack.c.bf16 %v1972, %v1972
  %v2165 = vpack.c.bf16 %v1975, %v1975
  %v2166 = vpack.c.bf16 %v1977, %v1977
  %v2167 = vpack.c.bf16 %v1980, %v1980
  %v2168 = vpack.c.bf16 %v1982, %v1982
  %v2169 = vpack.c.bf16 %v1985, %v1985
  %v2170 = vpack.c.bf16 %v1987, %v1987
  %v2171 = vpack.c.bf16 %v1990, %v1990
  %v2172 = vpack.c.bf16 %v1992, %v1992
  %v2173 = vpack.c.bf16 %v1995, %v1995
  %v2174 = vpack.c.bf16 %v1997, %v1997
  %v2175 = vpack.c.bf16 %v2000, %v2000
  %v2176 = vpack.c.bf16 %v2002, %v2002
  %v2177 = vpack.c.bf16 %v2005, %v2005
  %v2178 = vpack.c.bf16 %v2007, %v2007
  %v2179 = vpack.c.bf16 %v2010, %v2010
  %v2180 = vpack.c.bf16 %v2012, %v2012
  %v2181 = vpack.c.bf16 %v2015, %v2015
  %v2182 = vpack.c.bf16 %v2017, %v2017
  %v2183 = vpack.c.bf16 %v2020, %v2020
  %v2184 = vpack.c.bf16 %v2022, %v2022
  %v2185 = vpack.c.bf16 %v2025, %v2025
  %v2186 = vpack.c.bf16 %v2027, %v2027
  %v2187 = vpack.c.bf16 %v2030, %v2030
  %v2188 = vpack.c.bf16 %v2032, %v2032
  %v2189 = vpack.c.bf16 %v2035, %v2035
  %v2190 = vpack.c.bf16 %v2037, %v2037
  %v2191 = vpack.c.bf16 %v2040, %v2040
  %v2192 = vpack.c.bf16 %v2042, %v2042
  %v2193 = vpack.c.bf16 %v2045, %v2045
  %v2194 = vpack.c.bf16 %v2047, %v2047
  %v2195 = vpack.c.bf16 %v2050, %v2050
  %v2196 = vpack.c.bf16 %v2052, %v2052
  %v2197 = vpack.c.bf16 %v2055, %v2055
  %v2198 = vpack.c.bf16 %v2057, %v2057
  %v2199 = vld [vmem:[%s4] sm:$0xf]
  %v2200 = vld [vmem:[%s4 + $0x4] sm:$0xf]
  %v2201 = vld [vmem:[%s4 + $0x8] sm:$0xf]
  %v2202 = vld [vmem:[%s4 + $0xc] sm:$0xf]
  %v2203 = vld [vmem:[%s4 + $0x10] sm:$0xf]
  %v2204 = vld [vmem:[%s4 + $0x14] sm:$0xf]
  %v2205 = vld [vmem:[%s4 + $0x18] sm:$0xf]
  %v2206 = vld [vmem:[%s4 + $0x1c] sm:$0xf]
  %v2207 = vld [vmem:[%s4 + $0x20] sm:$0xf]
  %v2208 = vld [vmem:[%s4 + $0x24] sm:$0xf]
  %v2209 = vld [vmem:[%s4 + $0x28] sm:$0xf]
  %v2210 = vld [vmem:[%s4 + $0x2c] sm:$0xf]
  %v2211 = vld [vmem:[%s4 + $0x30] sm:$0xf]
  %v2212 = vld [vmem:[%s4 + $0x34] sm:$0xf]
  %v2213 = vld [vmem:[%s4 + $0x38] sm:$0xf]
  %v2214 = vld [vmem:[%s4 + $0x3c] sm:$0xf]
  %v2215 = vld [vmem:[%s4 + $0x40] sm:$0xf]
  %v2216 = vld [vmem:[%s4 + $0x44] sm:$0xf]
  %v2217 = vld [vmem:[%s4 + $0x48] sm:$0xf]
  %v2218 = vld [vmem:[%s4 + $0x4c] sm:$0xf]
  %v2219 = vld [vmem:[%s4 + $0x50] sm:$0xf]
  %v2220 = vld [vmem:[%s4 + $0x54] sm:$0xf]
  %v2221 = vld [vmem:[%s4 + $0x58] sm:$0xf]
  %v2222 = vld [vmem:[%s4 + $0x5c] sm:$0xf]
  %v2223 = vld [vmem:[%s4 + $0x60] sm:$0xf]
  %v2224 = vld [vmem:[%s4 + $0x64] sm:$0xf]
  %v2225 = vld [vmem:[%s4 + $0x68] sm:$0xf]
  %v2226 = vld [vmem:[%s4 + $0x6c] sm:$0xf]
  %v2227 = vld [vmem:[%s4 + $0x70] sm:$0xf]
  %v2228 = vld [vmem:[%s4 + $0x74] sm:$0xf]
  %v2229 = vld [vmem:[%s4 + $0x78] sm:$0xf]
  %v2230 = vld [vmem:[%s4 + $0x7c] sm:$0xf]
  %v2231 = vld [vmem:[%s4 + $0x80] sm:$0xf]
  %v2232 = vld [vmem:[%s4 + $0x84] sm:$0xf]
  %v2233 = vld [vmem:[%s4 + $0x88] sm:$0xf]
  %v2234 = vld [vmem:[%s4 + $0x8c] sm:$0xf]
  %v2235 = vld [vmem:[%s4 + $0x90] sm:$0xf]
  %v2236 = vld [vmem:[%s4 + $0x94] sm:$0xf]
  %v2237 = vld [vmem:[%s4 + $0x98] sm:$0xf]
  %v2238 = vld [vmem:[%s4 + $0x9c] sm:$0xf]
  %v2239 = vld [vmem:[%s4 + $0xa0] sm:$0xf]
  %v2240 = vld [vmem:[%s4 + $0xa4] sm:$0xf]
  %v2241 = vld [vmem:[%s4 + $0xa8] sm:$0xf]
  %v2242 = vld [vmem:[%s4 + $0xac] sm:$0xf]
  %v2243 = vld [vmem:[%s4 + $0xb0] sm:$0xf]
  %v2244 = vld [vmem:[%s4 + $0xb4] sm:$0xf]
  %v2245 = vld [vmem:[%s4 + $0xb8] sm:$0xf]
  %v2246 = vld [vmem:[%s4 + $0xbc] sm:$0xf]
  %v2247 = vld [vmem:[%s4 + $0xc0] sm:$0xf]
  %v2248 = vld [vmem:[%s4 + $0xc4] sm:$0xf]
  %v2249 = vld [vmem:[%s4 + $0xc8] sm:$0xf]
  %v2250 = vld [vmem:[%s4 + $0xcc] sm:$0xf]
  %v2251 = vld [vmem:[%s4 + $0xd0] sm:$0xf]
  %v2252 = vld [vmem:[%s4 + $0xd4] sm:$0xf]
  %v2253 = vld [vmem:[%s4 + $0xd8] sm:$0xf]
  %v2254 = vld [vmem:[%s4 + $0xdc] sm:$0xf]
  %v2255 = vld [vmem:[%s4 + $0xe0] sm:$0xf]
  %v2256 = vld [vmem:[%s4 + $0xe4] sm:$0xf]
  %v2257 = vld [vmem:[%s4 + $0xe8] sm:$0xf]
  %v2258 = vld [vmem:[%s4 + $0xec] sm:$0xf]
  %v2259 = vld [vmem:[%s4 + $0xf0] sm:$0xf]
  %v2260 = vld [vmem:[%s4 + $0xf4] sm:$0xf]
  %v2261 = vld [vmem:[%s4 + $0xf8] sm:$0xf]
  %v2262 = vld [vmem:[%s4 + $0xfc] sm:$0xf]
  %v2263 = vld [vmem:[%s4 + $0x100] sm:$0xf]
  %v2264 = vld [vmem:[%s4 + $0x104] sm:$0xf]
  %v2265 = vld [vmem:[%s4 + $0x108] sm:$0xf]
  %v2266 = vld [vmem:[%s4 + $0x10c] sm:$0xf]
  %v2267 = vld [vmem:[%s4 + $0x110] sm:$0xf]
  %v2268 = vld [vmem:[%s4 + $0x114] sm:$0xf]
  %v2273 = vunpack.c.l.b16 %v2063
  %v2274 = vunpack.c.l.b16 %v2064
  %v2275 = vunpack.c.l.b16 %v2065
  %v2276 = vunpack.c.l.b16 %v2066
  %v2277 = vpack.c.b16 %v2274, %v2273
  %v2278 = vpack.c.b16 %v2276, %v2275
  %v2281 = vunpack.c.l.b16 %v2201
  %v2282 = vunpack.c.l.b16 %v2202
  %v2283 = vpack.c.b16 %v2282, %v2281
  %v2286 = vsel %vm323, %v2277, 0
  %v2289 = vsel %vm323, %v2278, 0
  %2291 = vmatpush.bf16.msra.mxu0 0
  %2292 = vmatpush.bf16.msra.mxu0 0
  %2293 = vmatpush.bf16.msra.mxu0 0
  %2294 = vmatpush.bf16.msra.mxu0 0
  %2295 = vmatpush.bf16.msra.mxu0 0
  %2296 = vmatpush.bf16.msra.mxu0 0
  %2297 = vmatpush.bf16.msra.mxu0 0
  %2298 = vmatpush.bf16.msra.mxu0 %v2283
  %2299 = vmatmul.bf16.gmra.mxu0 %v2286
  %v2300 = vpop.f32.mrf.mxu0
  %v2301 = vadd.f32 0.0, %v2300
  %v2302 = vpop.f32.mrf.mxu0
  %v2303 = vadd.f32 0.0, %v2302
  %2304 = vmatmul.bf16.gmra.mxu0 %v2289
  %v2305 = vpop.f32.mrf.mxu0
  %v2306 = vadd.f32 0.0, %v2305
  %v2307 = vpop.f32.mrf.mxu0
  %v2308 = vadd.f32 0.0, %v2307
  %2309 = vdwg.mxu0
  %v2314 = vunpack.c.l.b16 %v2059
  %v2315 = vunpack.c.l.b16 %v2060
  %v2316 = vunpack.c.l.b16 %v2061
  %v2317 = vunpack.c.l.b16 %v2062
  %v2318 = vpack.c.b16 %v2315, %v2314
  %v2319 = vpack.c.b16 %v2317, %v2316
  %v2322 = vunpack.c.l.b16 %v2199
  %v2323 = vunpack.c.l.b16 %v2200
  %v2324 = vpack.c.b16 %v2323, %v2322
  %v2327 = vsel %vm323, %v2318, 0
  %v2330 = vsel %vm323, %v2319, 0
  %2332 = vmatpush.bf16.msra.mxu0 0
  %2333 = vmatpush.bf16.msra.mxu0 0
  %2334 = vmatpush.bf16.msra.mxu0 0
  %2335 = vmatpush.bf16.msra.mxu0 0
  %2336 = vmatpush.bf16.msra.mxu0 0
  %2337 = vmatpush.bf16.msra.mxu0 0
  %2338 = vmatpush.bf16.msra.mxu0 0
  %2339 = vmatpush.bf16.msra.mxu0 %v2324
  %2340 = vmatmul.bf16.gmra.mxu0 %v2327
  %v2341 = vpop.f32.mrf.mxu0
  %v2342 = vadd.f32 %v2301, %v2341
  %v2343 = vpop.f32.mrf.mxu0
  %v2344 = vadd.f32 %v2303, %v2343
  %2345 = vmatmul.bf16.gmra.mxu0 %v2330
  %v2346 = vpop.f32.mrf.mxu0
  %v2347 = vadd.f32 %v2306, %v2346
  %v2348 = vpop.f32.mrf.mxu0
  %v2349 = vadd.f32 %v2308, %v2348
  %2350 = vdwg.mxu0
  %v2355 = vunpack.c.l.b16 %v2067
  %v2356 = vunpack.c.l.b16 %v2068
  %v2357 = vunpack.c.l.b16 %v2069
  %v2358 = vunpack.c.l.b16 %v2070
  %v2359 = vpack.c.b16 %v2356, %v2355
  %v2360 = vpack.c.b16 %v2358, %v2357
  %v2363 = vunpack.c.l.b16 %v2203
  %v2364 = vunpack.c.l.b16 %v2204
  %v2365 = vpack.c.b16 %v2364, %v2363
  %v2368 = vsel %vm323, %v2359, 0
  %v2371 = vsel %vm323, %v2360, 0
  %2373 = vmatpush.bf16.msra.mxu0 0
  %2374 = vmatpush.bf16.msra.mxu0 0
  %2375 = vmatpush.bf16.msra.mxu0 0
  %2376 = vmatpush.bf16.msra.mxu0 0
  %2377 = vmatpush.bf16.msra.mxu0 0
  %2378 = vmatpush.bf16.msra.mxu0 0
  %2379 = vmatpush.bf16.msra.mxu0 0
  %2380 = vmatpush.bf16.msra.mxu0 %v2365
  %2381 = vmatmul.bf16.gmra.mxu0 %v2368
  %v2382 = vpop.f32.mrf.mxu0
  %v2383 = vadd.f32 0.0, %v2382
  %v2384 = vpop.f32.mrf.mxu0
  %v2385 = vadd.f32 0.0, %v2384
  %2386 = vmatmul.bf16.gmra.mxu0 %v2371
  %v2387 = vpop.f32.mrf.mxu0
  %v2388 = vadd.f32 0.0, %v2387
  %v2389 = vpop.f32.mrf.mxu0
  %v2390 = vadd.f32 0.0, %v2389
  %2391 = vdwg.mxu0
  %v2392 = vadd.f32 %v2342, %v2383
  %v2393 = vadd.f32 %v2344, %v2385
  %v2394 = vadd.f32 %v2347, %v2388
  %v2395 = vadd.f32 %v2349, %v2390
  %v2400 = vunpack.c.l.b16 %v2071
  %v2401 = vunpack.c.l.b16 %v2072
  %v2402 = vunpack.c.l.b16 %v2073
  %v2403 = vunpack.c.l.b16 %v2074
  %v2404 = vpack.c.b16 %v2401, %v2400
  %v2405 = vpack.c.b16 %v2403, %v2402
  %v2408 = vunpack.c.l.b16 %v2205
  %v2409 = vunpack.c.l.b16 %v2206
  %v2410 = vpack.c.b16 %v2409, %v2408
  %v2413 = vsel %vm323, %v2404, 0
  %v2416 = vsel %vm323, %v2405, 0
  %2418 = vmatpush.bf16.msra.mxu0 0
  %2419 = vmatpush.bf16.msra.mxu0 0
  %2420 = vmatpush.bf16.msra.mxu0 0
  %2421 = vmatpush.bf16.msra.mxu0 0
  %2422 = vmatpush.bf16.msra.mxu0 0
  %2423 = vmatpush.bf16.msra.mxu0 0
  %2424 = vmatpush.bf16.msra.mxu0 0
  %2425 = vmatpush.bf16.msra.mxu0 %v2410
  %2426 = vmatmul.bf16.gmra.mxu0 %v2413
  %v2427 = vpop.f32.mrf.mxu0
  %v2428 = vadd.f32 0.0, %v2427
  %v2429 = vpop.f32.mrf.mxu0
  %v2430 = vadd.f32 0.0, %v2429
  %2431 = vmatmul.bf16.gmra.mxu0 %v2416
  %v2432 = vpop.f32.mrf.mxu0
  %v2433 = vadd.f32 0.0, %v2432
  %v2434 = vpop.f32.mrf.mxu0
  %v2435 = vadd.f32 0.0, %v2434
  %2436 = vdwg.mxu0
  %v2437 = vadd.f32 %v2392, %v2428
  %v2438 = vadd.f32 %v2393, %v2430
  %v2439 = vadd.f32 %v2394, %v2433
  %v2440 = vadd.f32 %v2395, %v2435
  %v2445 = vunpack.c.l.b16 %v2075
  %v2446 = vunpack.c.l.b16 %v2076
  %v2447 = vunpack.c.l.b16 %v2077
  %v2448 = vunpack.c.l.b16 %v2078
  %v2449 = vpack.c.b16 %v2446, %v2445
  %v2450 = vpack.c.b16 %v2448, %v2447
  %v2453 = vunpack.c.l.b16 %v2207
  %v2454 = vunpack.c.l.b16 %v2208
  %v2455 = vpack.c.b16 %v2454, %v2453
  %v2458 = vsel %vm323, %v2449, 0
  %v2461 = vsel %vm323, %v2450, 0
  %2463 = vmatpush.bf16.msra.mxu0 0
  %2464 = vmatpush.bf16.msra.mxu0 0
  %2465 = vmatpush.bf16.msra.mxu0 0
  %2466 = vmatpush.bf16.msra.mxu0 0
  %2467 = vmatpush.bf16.msra.mxu0 0
  %2468 = vmatpush.bf16.msra.mxu0 0
  %2469 = vmatpush.bf16.msra.mxu0 0
  %2470 = vmatpush.bf16.msra.mxu0 %v2455
  %2471 = vmatmul.bf16.gmra.mxu0 %v2458
  %v2472 = vpop.f32.mrf.mxu0
  %v2473 = vadd.f32 0.0, %v2472
  %v2474 = vpop.f32.mrf.mxu0
  %v2475 = vadd.f32 0.0, %v2474
  %2476 = vmatmul.bf16.gmra.mxu0 %v2461
  %v2477 = vpop.f32.mrf.mxu0
  %v2478 = vadd.f32 0.0, %v2477
  %v2479 = vpop.f32.mrf.mxu0
  %v2480 = vadd.f32 0.0, %v2479
  %2481 = vdwg.mxu0
  %v2482 = vadd.f32 %v2437, %v2473
  %v2483 = vadd.f32 %v2438, %v2475
  %v2484 = vadd.f32 %v2439, %v2478
  %v2485 = vadd.f32 %v2440, %v2480
  %v2490 = vunpack.c.l.b16 %v2079
  %v2491 = vunpack.c.l.b16 %v2080
  %v2492 = vunpack.c.l.b16 %v2081
  %v2493 = vunpack.c.l.b16 %v2082
  %v2494 = vpack.c.b16 %v2491, %v2490
  %v2495 = vpack.c.b16 %v2493, %v2492
  %v2498 = vunpack.c.l.b16 %v2209
  %v2499 = vunpack.c.l.b16 %v2210
  %v2500 = vpack.c.b16 %v2499, %v2498
  %v2503 = vsel %vm323, %v2494, 0
  %v2506 = vsel %vm323, %v2495, 0
  %2508 = vmatpush.bf16.msra.mxu0 0
  %2509 = vmatpush.bf16.msra.mxu0 0
  %2510 = vmatpush.bf16.msra.mxu0 0
  %2511 = vmatpush.bf16.msra.mxu0 0
  %2512 = vmatpush.bf16.msra.mxu0 0
  %2513 = vmatpush.bf16.msra.mxu0 0
  %2514 = vmatpush.bf16.msra.mxu0 0
  %2515 = vmatpush.bf16.msra.mxu0 %v2500
  %2516 = vmatmul.bf16.gmra.mxu0 %v2503
  %v2517 = vpop.f32.mrf.mxu0
  %v2518 = vadd.f32 0.0, %v2517
  %v2519 = vpop.f32.mrf.mxu0
  %v2520 = vadd.f32 0.0, %v2519
  %2521 = vmatmul.bf16.gmra.mxu0 %v2506
  %v2522 = vpop.f32.mrf.mxu0
  %v2523 = vadd.f32 0.0, %v2522
  %v2524 = vpop.f32.mrf.mxu0
  %v2525 = vadd.f32 0.0, %v2524
  %2526 = vdwg.mxu0
  %v2527 = vadd.f32 %v2482, %v2518
  %v2528 = vadd.f32 %v2483, %v2520
  %v2529 = vadd.f32 %v2484, %v2523
  %v2530 = vadd.f32 %v2485, %v2525
  %v2535 = vunpack.c.l.b16 %v2083
  %v2536 = vunpack.c.l.b16 %v2084
  %v2537 = vunpack.c.l.b16 %v2085
  %v2538 = vunpack.c.l.b16 %v2086
  %v2539 = vpack.c.b16 %v2536, %v2535
  %v2540 = vpack.c.b16 %v2538, %v2537
  %v2543 = vunpack.c.l.b16 %v2211
  %v2544 = vunpack.c.l.b16 %v2212
  %v2545 = vpack.c.b16 %v2544, %v2543
  %v2548 = vsel %vm323, %v2539, 0
  %v2551 = vsel %vm323, %v2540, 0
  %2553 = vmatpush.bf16.msra.mxu0 0
  %2554 = vmatpush.bf16.msra.mxu0 0
  %2555 = vmatpush.bf16.msra.mxu0 0
  %2556 = vmatpush.bf16.msra.mxu0 0
  %2557 = vmatpush.bf16.msra.mxu0 0
  %2558 = vmatpush.bf16.msra.mxu0 0
  %2559 = vmatpush.bf16.msra.mxu0 0
  %2560 = vmatpush.bf16.msra.mxu0 %v2545
  %2561 = vmatmul.bf16.gmra.mxu0 %v2548
  %v2562 = vpop.f32.mrf.mxu0
  %v2563 = vadd.f32 0.0, %v2562
  %v2564 = vpop.f32.mrf.mxu0
  %v2565 = vadd.f32 0.0, %v2564
  %2566 = vmatmul.bf16.gmra.mxu0 %v2551
  %v2567 = vpop.f32.mrf.mxu0
  %v2568 = vadd.f32 0.0, %v2567
  %v2569 = vpop.f32.mrf.mxu0
  %v2570 = vadd.f32 0.0, %v2569
  %2571 = vdwg.mxu0
  %v2572 = vadd.f32 %v2527, %v2563
  %v2573 = vadd.f32 %v2528, %v2565
  %v2574 = vadd.f32 %v2529, %v2568
  %v2575 = vadd.f32 %v2530, %v2570
  %v2580 = vunpack.c.l.b16 %v2087
  %v2581 = vunpack.c.l.b16 %v2088
  %v2582 = vunpack.c.l.b16 %v2089
  %v2583 = vunpack.c.l.b16 %v2090
  %v2584 = vpack.c.b16 %v2581, %v2580
  %v2585 = vpack.c.b16 %v2583, %v2582
  %v2588 = vunpack.c.l.b16 %v2213
  %v2589 = vunpack.c.l.b16 %v2214
  %v2590 = vpack.c.b16 %v2589, %v2588
  %v2593 = vsel %vm323, %v2584, 0
  %v2596 = vsel %vm323, %v2585, 0
  %2598 = vmatpush.bf16.msra.mxu0 0
  %2599 = vmatpush.bf16.msra.mxu0 0
  %2600 = vmatpush.bf16.msra.mxu0 0
  %2601 = vmatpush.bf16.msra.mxu0 0
  %2602 = vmatpush.bf16.msra.mxu0 0
  %2603 = vmatpush.bf16.msra.mxu0 0
  %2604 = vmatpush.bf16.msra.mxu0 0
  %2605 = vmatpush.bf16.msra.mxu0 %v2590
  %2606 = vmatmul.bf16.gmra.mxu0 %v2593
  %v2607 = vpop.f32.mrf.mxu0
  %v2608 = vadd.f32 0.0, %v2607
  %v2609 = vpop.f32.mrf.mxu0
  %v2610 = vadd.f32 0.0, %v2609
  %2611 = vmatmul.bf16.gmra.mxu0 %v2596
  %v2612 = vpop.f32.mrf.mxu0
  %v2613 = vadd.f32 0.0, %v2612
  %v2614 = vpop.f32.mrf.mxu0
  %v2615 = vadd.f32 0.0, %v2614
  %2616 = vdwg.mxu0
  %v2617 = vadd.f32 %v2572, %v2608
  %v2618 = vadd.f32 %v2573, %v2610
  %v2619 = vadd.f32 %v2574, %v2613
  %v2620 = vadd.f32 %v2575, %v2615
  %v2625 = vunpack.c.l.b16 %v2091
  %v2626 = vunpack.c.l.b16 %v2092
  %v2627 = vunpack.c.l.b16 %v2093
  %v2628 = vunpack.c.l.b16 %v2094
  %v2629 = vpack.c.b16 %v2626, %v2625
  %v2630 = vpack.c.b16 %v2628, %v2627
  %v2633 = vunpack.c.l.b16 %v2215
  %v2634 = vunpack.c.l.b16 %v2216
  %v2635 = vpack.c.b16 %v2634, %v2633
  %v2638 = vsel %vm323, %v2629, 0
  %v2641 = vsel %vm323, %v2630, 0
  %2643 = vmatpush.bf16.msra.mxu0 0
  %2644 = vmatpush.bf16.msra.mxu0 0
  %2645 = vmatpush.bf16.msra.mxu0 0
  %2646 = vmatpush.bf16.msra.mxu0 0
  %2647 = vmatpush.bf16.msra.mxu0 0
  %2648 = vmatpush.bf16.msra.mxu0 0
  %2649 = vmatpush.bf16.msra.mxu0 0
  %2650 = vmatpush.bf16.msra.mxu0 %v2635
  %2651 = vmatmul.bf16.gmra.mxu0 %v2638
  %v2652 = vpop.f32.mrf.mxu0
  %v2653 = vadd.f32 0.0, %v2652
  %v2654 = vpop.f32.mrf.mxu0
  %v2655 = vadd.f32 0.0, %v2654
  %2656 = vmatmul.bf16.gmra.mxu0 %v2641
  %v2657 = vpop.f32.mrf.mxu0
  %v2658 = vadd.f32 0.0, %v2657
  %v2659 = vpop.f32.mrf.mxu0
  %v2660 = vadd.f32 0.0, %v2659
  %2661 = vdwg.mxu0
  %v2662 = vadd.f32 %v2617, %v2653
  %v2663 = vadd.f32 %v2618, %v2655
  %v2664 = vadd.f32 %v2619, %v2658
  %v2665 = vadd.f32 %v2620, %v2660
  %v2670 = vunpack.c.l.b16 %v2095
  %v2671 = vunpack.c.l.b16 %v2096
  %v2672 = vunpack.c.l.b16 %v2097
  %v2673 = vunpack.c.l.b16 %v2098
  %v2674 = vpack.c.b16 %v2671, %v2670
  %v2675 = vpack.c.b16 %v2673, %v2672
  %v2678 = vunpack.c.l.b16 %v2217
  %v2679 = vunpack.c.l.b16 %v2218
  %v2680 = vpack.c.b16 %v2679, %v2678
  %v2683 = vsel %vm323, %v2674, 0
  %v2686 = vsel %vm323, %v2675, 0
  %2688 = vmatpush.bf16.msra.mxu0 0
  %2689 = vmatpush.bf16.msra.mxu0 0
  %2690 = vmatpush.bf16.msra.mxu0 0
  %2691 = vmatpush.bf16.msra.mxu0 0
  %2692 = vmatpush.bf16.msra.mxu0 0
  %2693 = vmatpush.bf16.msra.mxu0 0
  %2694 = vmatpush.bf16.msra.mxu0 0
  %2695 = vmatpush.bf16.msra.mxu0 %v2680
  %2696 = vmatmul.bf16.gmra.mxu0 %v2683
  %v2697 = vpop.f32.mrf.mxu0
  %v2698 = vadd.f32 0.0, %v2697
  %v2699 = vpop.f32.mrf.mxu0
  %v2700 = vadd.f32 0.0, %v2699
  %2701 = vmatmul.bf16.gmra.mxu0 %v2686
  %v2702 = vpop.f32.mrf.mxu0
  %v2703 = vadd.f32 0.0, %v2702
  %v2704 = vpop.f32.mrf.mxu0
  %v2705 = vadd.f32 0.0, %v2704
  %2706 = vdwg.mxu0
  %v2707 = vadd.f32 %v2662, %v2698
  %v2708 = vadd.f32 %v2663, %v2700
  %v2709 = vadd.f32 %v2664, %v2703
  %v2710 = vadd.f32 %v2665, %v2705
  %v2715 = vunpack.c.l.b16 %v2099
  %v2716 = vunpack.c.l.b16 %v2100
  %v2717 = vunpack.c.l.b16 %v2101
  %v2718 = vunpack.c.l.b16 %v2102
  %v2719 = vpack.c.b16 %v2716, %v2715
  %v2720 = vpack.c.b16 %v2718, %v2717
  %v2723 = vunpack.c.l.b16 %v2219
  %v2724 = vunpack.c.l.b16 %v2220
  %v2725 = vpack.c.b16 %v2724, %v2723
  %v2728 = vsel %vm323, %v2719, 0
  %v2731 = vsel %vm323, %v2720, 0
  %2733 = vmatpush.bf16.msra.mxu0 0
  %2734 = vmatpush.bf16.msra.mxu0 0
  %2735 = vmatpush.bf16.msra.mxu0 0
  %2736 = vmatpush.bf16.msra.mxu0 0
  %2737 = vmatpush.bf16.msra.mxu0 0
  %2738 = vmatpush.bf16.msra.mxu0 0
  %2739 = vmatpush.bf16.msra.mxu0 0
  %2740 = vmatpush.bf16.msra.mxu0 %v2725
  %2741 = vmatmul.bf16.gmra.mxu0 %v2728
  %v2742 = vpop.f32.mrf.mxu0
  %v2743 = vadd.f32 0.0, %v2742
  %v2744 = vpop.f32.mrf.mxu0
  %v2745 = vadd.f32 0.0, %v2744
  %2746 = vmatmul.bf16.gmra.mxu0 %v2731
  %v2747 = vpop.f32.mrf.mxu0
  %v2748 = vadd.f32 0.0, %v2747
  %v2749 = vpop.f32.mrf.mxu0
  %v2750 = vadd.f32 0.0, %v2749
  %2751 = vdwg.mxu0
  %v2752 = vadd.f32 %v2707, %v2743
  %v2753 = vadd.f32 %v2708, %v2745
  %v2754 = vadd.f32 %v2709, %v2748
  %v2755 = vadd.f32 %v2710, %v2750
  %v2760 = vunpack.c.l.b16 %v2103
  %v2761 = vunpack.c.l.b16 %v2104
  %v2762 = vunpack.c.l.b16 %v2105
  %v2763 = vunpack.c.l.b16 %v2106
  %v2764 = vpack.c.b16 %v2761, %v2760
  %v2765 = vpack.c.b16 %v2763, %v2762
  %v2768 = vunpack.c.l.b16 %v2221
  %v2769 = vunpack.c.l.b16 %v2222
  %v2770 = vpack.c.b16 %v2769, %v2768
  %v2773 = vsel %vm323, %v2764, 0
  %v2776 = vsel %vm323, %v2765, 0
  %2778 = vmatpush.bf16.msra.mxu0 0
  %2779 = vmatpush.bf16.msra.mxu0 0
  %2780 = vmatpush.bf16.msra.mxu0 0
  %2781 = vmatpush.bf16.msra.mxu0 0
  %2782 = vmatpush.bf16.msra.mxu0 0
  %2783 = vmatpush.bf16.msra.mxu0 0
  %2784 = vmatpush.bf16.msra.mxu0 0
  %2785 = vmatpush.bf16.msra.mxu0 %v2770
  %2786 = vmatmul.bf16.gmra.mxu0 %v2773
  %v2787 = vpop.f32.mrf.mxu0
  %v2788 = vadd.f32 0.0, %v2787
  %v2789 = vpop.f32.mrf.mxu0
  %v2790 = vadd.f32 0.0, %v2789
  %2791 = vmatmul.bf16.gmra.mxu0 %v2776
  %v2792 = vpop.f32.mrf.mxu0
  %v2793 = vadd.f32 0.0, %v2792
  %v2794 = vpop.f32.mrf.mxu0
  %v2795 = vadd.f32 0.0, %v2794
  %2796 = vdwg.mxu0
  %v2797 = vadd.f32 %v2752, %v2788
  %v2798 = vadd.f32 %v2753, %v2790
  %v2799 = vadd.f32 %v2754, %v2793
  %v2800 = vadd.f32 %v2755, %v2795
  %v2805 = vunpack.c.l.b16 %v2107
  %v2806 = vunpack.c.l.b16 %v2108
  %v2807 = vunpack.c.l.b16 %v2109
  %v2808 = vunpack.c.l.b16 %v2110
  %v2809 = vpack.c.b16 %v2806, %v2805
  %v2810 = vpack.c.b16 %v2808, %v2807
  %v2813 = vunpack.c.l.b16 %v2223
  %v2814 = vunpack.c.l.b16 %v2224
  %v2815 = vpack.c.b16 %v2814, %v2813
  %v2818 = vsel %vm323, %v2809, 0
  %v2821 = vsel %vm323, %v2810, 0
  %2823 = vmatpush.bf16.msra.mxu0 0
  %2824 = vmatpush.bf16.msra.mxu0 0
  %2825 = vmatpush.bf16.msra.mxu0 0
  %2826 = vmatpush.bf16.msra.mxu0 0
  %2827 = vmatpush.bf16.msra.mxu0 0
  %2828 = vmatpush.bf16.msra.mxu0 0
  %2829 = vmatpush.bf16.msra.mxu0 0
  %2830 = vmatpush.bf16.msra.mxu0 %v2815
  %2831 = vmatmul.bf16.gmra.mxu0 %v2818
  %v2832 = vpop.f32.mrf.mxu0
  %v2833 = vadd.f32 0.0, %v2832
  %v2834 = vpop.f32.mrf.mxu0
  %v2835 = vadd.f32 0.0, %v2834
  %2836 = vmatmul.bf16.gmra.mxu0 %v2821
  %v2837 = vpop.f32.mrf.mxu0
  %v2838 = vadd.f32 0.0, %v2837
  %v2839 = vpop.f32.mrf.mxu0
  %v2840 = vadd.f32 0.0, %v2839
  %2841 = vdwg.mxu0
  %v2842 = vadd.f32 %v2797, %v2833
  %v2843 = vadd.f32 %v2798, %v2835
  %v2844 = vadd.f32 %v2799, %v2838
  %v2845 = vadd.f32 %v2800, %v2840
  %v2850 = vunpack.c.l.b16 %v2111
  %v2851 = vunpack.c.l.b16 %v2112
  %v2852 = vunpack.c.l.b16 %v2113
  %v2853 = vunpack.c.l.b16 %v2114
  %v2854 = vpack.c.b16 %v2851, %v2850
  %v2855 = vpack.c.b16 %v2853, %v2852
  %v2858 = vunpack.c.l.b16 %v2225
  %v2859 = vunpack.c.l.b16 %v2226
  %v2860 = vpack.c.b16 %v2859, %v2858
  %v2863 = vsel %vm323, %v2854, 0
  %v2866 = vsel %vm323, %v2855, 0
  %2868 = vmatpush.bf16.msra.mxu0 0
  %2869 = vmatpush.bf16.msra.mxu0 0
  %2870 = vmatpush.bf16.msra.mxu0 0
  %2871 = vmatpush.bf16.msra.mxu0 0
  %2872 = vmatpush.bf16.msra.mxu0 0
  %2873 = vmatpush.bf16.msra.mxu0 0
  %2874 = vmatpush.bf16.msra.mxu0 0
  %2875 = vmatpush.bf16.msra.mxu0 %v2860
  %2876 = vmatmul.bf16.gmra.mxu0 %v2863
  %v2877 = vpop.f32.mrf.mxu0
  %v2878 = vadd.f32 0.0, %v2877
  %v2879 = vpop.f32.mrf.mxu0
  %v2880 = vadd.f32 0.0, %v2879
  %2881 = vmatmul.bf16.gmra.mxu0 %v2866
  %v2882 = vpop.f32.mrf.mxu0
  %v2883 = vadd.f32 0.0, %v2882
  %v2884 = vpop.f32.mrf.mxu0
  %v2885 = vadd.f32 0.0, %v2884
  %2886 = vdwg.mxu0
  %v2887 = vadd.f32 %v2842, %v2878
  %v2888 = vadd.f32 %v2843, %v2880
  %v2889 = vadd.f32 %v2844, %v2883
  %v2890 = vadd.f32 %v2845, %v2885
  %v2895 = vunpack.c.l.b16 %v2115
  %v2896 = vunpack.c.l.b16 %v2116
  %v2897 = vunpack.c.l.b16 %v2117
  %v2898 = vunpack.c.l.b16 %v2118
  %v2899 = vpack.c.b16 %v2896, %v2895
  %v2900 = vpack.c.b16 %v2898, %v2897
  %v2903 = vunpack.c.l.b16 %v2227
  %v2904 = vunpack.c.l.b16 %v2228
  %v2905 = vpack.c.b16 %v2904, %v2903
  %v2908 = vsel %vm323, %v2899, 0
  %v2911 = vsel %vm323, %v2900, 0
  %2913 = vmatpush.bf16.msra.mxu0 0
  %2914 = vmatpush.bf16.msra.mxu0 0
  %2915 = vmatpush.bf16.msra.mxu0 0
  %2916 = vmatpush.bf16.msra.mxu0 0
  %2917 = vmatpush.bf16.msra.mxu0 0
  %2918 = vmatpush.bf16.msra.mxu0 0
  %2919 = vmatpush.bf16.msra.mxu0 0
  %2920 = vmatpush.bf16.msra.mxu0 %v2905
  %2921 = vmatmul.bf16.gmra.mxu0 %v2908
  %v2922 = vpop.f32.mrf.mxu0
  %v2923 = vadd.f32 0.0, %v2922
  %v2924 = vpop.f32.mrf.mxu0
  %v2925 = vadd.f32 0.0, %v2924
  %2926 = vmatmul.bf16.gmra.mxu0 %v2911
  %v2927 = vpop.f32.mrf.mxu0
  %v2928 = vadd.f32 0.0, %v2927
  %v2929 = vpop.f32.mrf.mxu0
  %v2930 = vadd.f32 0.0, %v2929
  %2931 = vdwg.mxu0
  %v2932 = vadd.f32 %v2887, %v2923
  %v2933 = vadd.f32 %v2888, %v2925
  %v2934 = vadd.f32 %v2889, %v2928
  %v2935 = vadd.f32 %v2890, %v2930
  %v2940 = vunpack.c.l.b16 %v2119
  %v2941 = vunpack.c.l.b16 %v2120
  %v2942 = vunpack.c.l.b16 %v2121
  %v2943 = vunpack.c.l.b16 %v2122
  %v2944 = vpack.c.b16 %v2941, %v2940
  %v2945 = vpack.c.b16 %v2943, %v2942
  %v2948 = vunpack.c.l.b16 %v2229
  %v2949 = vunpack.c.l.b16 %v2230
  %v2950 = vpack.c.b16 %v2949, %v2948
  %v2953 = vsel %vm323, %v2944, 0
  %v2956 = vsel %vm323, %v2945, 0
  %2958 = vmatpush.bf16.msra.mxu0 0
  %2959 = vmatpush.bf16.msra.mxu0 0
  %2960 = vmatpush.bf16.msra.mxu0 0
  %2961 = vmatpush.bf16.msra.mxu0 0
  %2962 = vmatpush.bf16.msra.mxu0 0
  %2963 = vmatpush.bf16.msra.mxu0 0
  %2964 = vmatpush.bf16.msra.mxu0 0
  %2965 = vmatpush.bf16.msra.mxu0 %v2950
  %2966 = vmatmul.bf16.gmra.mxu0 %v2953
  %v2967 = vpop.f32.mrf.mxu0
  %v2968 = vadd.f32 0.0, %v2967
  %v2969 = vpop.f32.mrf.mxu0
  %v2970 = vadd.f32 0.0, %v2969
  %2971 = vmatmul.bf16.gmra.mxu0 %v2956
  %v2972 = vpop.f32.mrf.mxu0
  %v2973 = vadd.f32 0.0, %v2972
  %v2974 = vpop.f32.mrf.mxu0
  %v2975 = vadd.f32 0.0, %v2974
  %2976 = vdwg.mxu0
  %v2977 = vadd.f32 %v2932, %v2968
  %v2978 = vadd.f32 %v2933, %v2970
  %v2979 = vadd.f32 %v2934, %v2973
  %v2980 = vadd.f32 %v2935, %v2975
  %v2985 = vunpack.c.l.b16 %v2123
  %v2986 = vunpack.c.l.b16 %v2124
  %v2987 = vunpack.c.l.b16 %v2125
  %v2988 = vunpack.c.l.b16 %v2126
  %v2989 = vpack.c.b16 %v2986, %v2985
  %v2990 = vpack.c.b16 %v2988, %v2987
  %v2993 = vunpack.c.l.b16 %v2231
  %v2994 = vunpack.c.l.b16 %v2232
  %v2995 = vpack.c.b16 %v2994, %v2993
  %v2998 = vsel %vm323, %v2989, 0
  %v3001 = vsel %vm323, %v2990, 0
  %3003 = vmatpush.bf16.msra.mxu0 0
  %3004 = vmatpush.bf16.msra.mxu0 0
  %3005 = vmatpush.bf16.msra.mxu0 0
  %3006 = vmatpush.bf16.msra.mxu0 0
  %3007 = vmatpush.bf16.msra.mxu0 0
  %3008 = vmatpush.bf16.msra.mxu0 0
  %3009 = vmatpush.bf16.msra.mxu0 0
  %3010 = vmatpush.bf16.msra.mxu0 %v2995
  %3011 = vmatmul.bf16.gmra.mxu0 %v2998
  %v3012 = vpop.f32.mrf.mxu0
  %v3013 = vadd.f32 0.0, %v3012
  %v3014 = vpop.f32.mrf.mxu0
  %v3015 = vadd.f32 0.0, %v3014
  %3016 = vmatmul.bf16.gmra.mxu0 %v3001
  %v3017 = vpop.f32.mrf.mxu0
  %v3018 = vadd.f32 0.0, %v3017
  %v3019 = vpop.f32.mrf.mxu0
  %v3020 = vadd.f32 0.0, %v3019
  %3021 = vdwg.mxu0
  %v3022 = vadd.f32 %v2977, %v3013
  %v3023 = vadd.f32 %v2978, %v3015
  %v3024 = vadd.f32 %v2979, %v3018
  %v3025 = vadd.f32 %v2980, %v3020
  %v3030 = vunpack.c.l.b16 %v2127
  %v3031 = vunpack.c.l.b16 %v2128
  %v3032 = vunpack.c.l.b16 %v2129
  %v3033 = vunpack.c.l.b16 %v2130
  %v3034 = vpack.c.b16 %v3031, %v3030
  %v3035 = vpack.c.b16 %v3033, %v3032
  %v3038 = vunpack.c.l.b16 %v2233
  %v3039 = vunpack.c.l.b16 %v2234
  %v3040 = vpack.c.b16 %v3039, %v3038
  %v3043 = vsel %vm323, %v3034, 0
  %v3046 = vsel %vm323, %v3035, 0
  %3048 = vmatpush.bf16.msra.mxu0 0
  %3049 = vmatpush.bf16.msra.mxu0 0
  %3050 = vmatpush.bf16.msra.mxu0 0
  %3051 = vmatpush.bf16.msra.mxu0 0
  %3052 = vmatpush.bf16.msra.mxu0 0
  %3053 = vmatpush.bf16.msra.mxu0 0
  %3054 = vmatpush.bf16.msra.mxu0 0
  %3055 = vmatpush.bf16.msra.mxu0 %v3040
  %3056 = vmatmul.bf16.gmra.mxu0 %v3043
  %v3057 = vpop.f32.mrf.mxu0
  %v3058 = vadd.f32 0.0, %v3057
  %v3059 = vpop.f32.mrf.mxu0
  %v3060 = vadd.f32 0.0, %v3059
  %3061 = vmatmul.bf16.gmra.mxu0 %v3046
  %v3062 = vpop.f32.mrf.mxu0
  %v3063 = vadd.f32 0.0, %v3062
  %v3064 = vpop.f32.mrf.mxu0
  %v3065 = vadd.f32 0.0, %v3064
  %3066 = vdwg.mxu0
  %v3067 = vadd.f32 %v3022, %v3058
  %v3068 = vadd.f32 %v3023, %v3060
  %v3069 = vadd.f32 %v3024, %v3063
  %v3070 = vadd.f32 %v3025, %v3065
  %v3075 = vunpack.c.l.b16 %v2131
  %v3076 = vunpack.c.l.b16 %v2132
  %v3077 = vunpack.c.l.b16 %v2133
  %v3078 = vunpack.c.l.b16 %v2134
  %v3079 = vpack.c.b16 %v3076, %v3075
  %v3080 = vpack.c.b16 %v3078, %v3077
  %v3083 = vunpack.c.l.b16 %v2235
  %v3084 = vunpack.c.l.b16 %v2236
  %v3085 = vpack.c.b16 %v3084, %v3083
  %v3088 = vsel %vm323, %v3079, 0
  %v3091 = vsel %vm323, %v3080, 0
  %3093 = vmatpush.bf16.msra.mxu0 0
  %3094 = vmatpush.bf16.msra.mxu0 0
  %3095 = vmatpush.bf16.msra.mxu0 0
  %3096 = vmatpush.bf16.msra.mxu0 0
  %3097 = vmatpush.bf16.msra.mxu0 0
  %3098 = vmatpush.bf16.msra.mxu0 0
  %3099 = vmatpush.bf16.msra.mxu0 0
  %3100 = vmatpush.bf16.msra.mxu0 %v3085
  %3101 = vmatmul.bf16.gmra.mxu0 %v3088
  %v3102 = vpop.f32.mrf.mxu0
  %v3103 = vadd.f32 0.0, %v3102
  %v3104 = vpop.f32.mrf.mxu0
  %v3105 = vadd.f32 0.0, %v3104
  %3106 = vmatmul.bf16.gmra.mxu0 %v3091
  %v3107 = vpop.f32.mrf.mxu0
  %v3108 = vadd.f32 0.0, %v3107
  %v3109 = vpop.f32.mrf.mxu0
  %v3110 = vadd.f32 0.0, %v3109
  %3111 = vdwg.mxu0
  %v3112 = vadd.f32 %v3067, %v3103
  %v3113 = vadd.f32 %v3068, %v3105
  %v3114 = vadd.f32 %v3069, %v3108
  %v3115 = vadd.f32 %v3070, %v3110
  %v3120 = vunpack.c.l.b16 %v2135
  %v3121 = vunpack.c.l.b16 %v2136
  %v3122 = vunpack.c.l.b16 %v2137
  %v3123 = vunpack.c.l.b16 %v2138
  %v3124 = vpack.c.b16 %v3121, %v3120
  %v3125 = vpack.c.b16 %v3123, %v3122
  %v3128 = vunpack.c.l.b16 %v2237
  %v3129 = vunpack.c.l.b16 %v2238
  %v3130 = vpack.c.b16 %v3129, %v3128
  %v3133 = vsel %vm323, %v3124, 0
  %v3136 = vsel %vm323, %v3125, 0
  %3138 = vmatpush.bf16.msra.mxu0 0
  %3139 = vmatpush.bf16.msra.mxu0 0
  %3140 = vmatpush.bf16.msra.mxu0 0
  %3141 = vmatpush.bf16.msra.mxu0 0
  %3142 = vmatpush.bf16.msra.mxu0 0
  %3143 = vmatpush.bf16.msra.mxu0 0
  %3144 = vmatpush.bf16.msra.mxu0 0
  %3145 = vmatpush.bf16.msra.mxu0 %v3130
  %3146 = vmatmul.bf16.gmra.mxu0 %v3133
  %v3147 = vpop.f32.mrf.mxu0
  %v3148 = vadd.f32 0.0, %v3147
  %v3149 = vpop.f32.mrf.mxu0
  %v3150 = vadd.f32 0.0, %v3149
  %3151 = vmatmul.bf16.gmra.mxu0 %v3136
  %v3152 = vpop.f32.mrf.mxu0
  %v3153 = vadd.f32 0.0, %v3152
  %v3154 = vpop.f32.mrf.mxu0
  %v3155 = vadd.f32 0.0, %v3154
  %3156 = vdwg.mxu0
  %v3157 = vadd.f32 %v3112, %v3148
  %v3158 = vadd.f32 %v3113, %v3150
  %v3159 = vadd.f32 %v3114, %v3153
  %v3160 = vadd.f32 %v3115, %v3155
  %v3165 = vunpack.c.l.b16 %v2139
  %v3166 = vunpack.c.l.b16 %v2140
  %v3167 = vunpack.c.l.b16 %v2141
  %v3168 = vunpack.c.l.b16 %v2142
  %v3169 = vpack.c.b16 %v3166, %v3165
  %v3170 = vpack.c.b16 %v3168, %v3167
  %v3173 = vunpack.c.l.b16 %v2239
  %v3174 = vunpack.c.l.b16 %v2240
  %v3175 = vpack.c.b16 %v3174, %v3173
  %v3178 = vsel %vm323, %v3169, 0
  %v3181 = vsel %vm323, %v3170, 0
  %3183 = vmatpush.bf16.msra.mxu0 0
  %3184 = vmatpush.bf16.msra.mxu0 0
  %3185 = vmatpush.bf16.msra.mxu0 0
  %3186 = vmatpush.bf16.msra.mxu0 0
  %3187 = vmatpush.bf16.msra.mxu0 0
  %3188 = vmatpush.bf16.msra.mxu0 0
  %3189 = vmatpush.bf16.msra.mxu0 0
  %3190 = vmatpush.bf16.msra.mxu0 %v3175
  %3191 = vmatmul.bf16.gmra.mxu0 %v3178
  %v3192 = vpop.f32.mrf.mxu0
  %v3193 = vadd.f32 0.0, %v3192
  %v3194 = vpop.f32.mrf.mxu0
  %v3195 = vadd.f32 0.0, %v3194
  %3196 = vmatmul.bf16.gmra.mxu0 %v3181
  %v3197 = vpop.f32.mrf.mxu0
  %v3198 = vadd.f32 0.0, %v3197
  %v3199 = vpop.f32.mrf.mxu0
  %v3200 = vadd.f32 0.0, %v3199
  %3201 = vdwg.mxu0
  %v3202 = vadd.f32 %v3157, %v3193
  %v3203 = vadd.f32 %v3158, %v3195
  %v3204 = vadd.f32 %v3159, %v3198
  %v3205 = vadd.f32 %v3160, %v3200
  %v3210 = vunpack.c.l.b16 %v2143
  %v3211 = vunpack.c.l.b16 %v2144
  %v3212 = vunpack.c.l.b16 %v2145
  %v3213 = vunpack.c.l.b16 %v2146
  %v3214 = vpack.c.b16 %v3211, %v3210
  %v3215 = vpack.c.b16 %v3213, %v3212
  %v3218 = vunpack.c.l.b16 %v2241
  %v3219 = vunpack.c.l.b16 %v2242
  %v3220 = vpack.c.b16 %v3219, %v3218
  %v3223 = vsel %vm323, %v3214, 0
  %v3226 = vsel %vm323, %v3215, 0
  %3228 = vmatpush.bf16.msra.mxu0 0
  %3229 = vmatpush.bf16.msra.mxu0 0
  %3230 = vmatpush.bf16.msra.mxu0 0
  %3231 = vmatpush.bf16.msra.mxu0 0
  %3232 = vmatpush.bf16.msra.mxu0 0
  %3233 = vmatpush.bf16.msra.mxu0 0
  %3234 = vmatpush.bf16.msra.mxu0 0
  %3235 = vmatpush.bf16.msra.mxu0 %v3220
  %3236 = vmatmul.bf16.gmra.mxu0 %v3223
  %v3237 = vpop.f32.mrf.mxu0
  %v3238 = vadd.f32 0.0, %v3237
  %v3239 = vpop.f32.mrf.mxu0
  %v3240 = vadd.f32 0.0, %v3239
  %3241 = vmatmul.bf16.gmra.mxu0 %v3226
  %v3242 = vpop.f32.mrf.mxu0
  %v3243 = vadd.f32 0.0, %v3242
  %v3244 = vpop.f32.mrf.mxu0
  %v3245 = vadd.f32 0.0, %v3244
  %3246 = vdwg.mxu0
  %v3247 = vadd.f32 %v3202, %v3238
  %v3248 = vadd.f32 %v3203, %v3240
  %v3249 = vadd.f32 %v3204, %v3243
  %v3250 = vadd.f32 %v3205, %v3245
  %v3255 = vunpack.c.l.b16 %v2147
  %v3256 = vunpack.c.l.b16 %v2148
  %v3257 = vunpack.c.l.b16 %v2149
  %v3258 = vunpack.c.l.b16 %v2150
  %v3259 = vpack.c.b16 %v3256, %v3255
  %v3260 = vpack.c.b16 %v3258, %v3257
  %v3263 = vunpack.c.l.b16 %v2243
  %v3264 = vunpack.c.l.b16 %v2244
  %v3265 = vpack.c.b16 %v3264, %v3263
  %v3268 = vsel %vm323, %v3259, 0
  %v3271 = vsel %vm323, %v3260, 0
  %3273 = vmatpush.bf16.msra.mxu0 0
  %3274 = vmatpush.bf16.msra.mxu0 0
  %3275 = vmatpush.bf16.msra.mxu0 0
  %3276 = vmatpush.bf16.msra.mxu0 0
  %3277 = vmatpush.bf16.msra.mxu0 0
  %3278 = vmatpush.bf16.msra.mxu0 0
  %3279 = vmatpush.bf16.msra.mxu0 0
  %3280 = vmatpush.bf16.msra.mxu0 %v3265
  %3281 = vmatmul.bf16.gmra.mxu0 %v3268
  %v3282 = vpop.f32.mrf.mxu0
  %v3283 = vadd.f32 0.0, %v3282
  %v3284 = vpop.f32.mrf.mxu0
  %v3285 = vadd.f32 0.0, %v3284
  %3286 = vmatmul.bf16.gmra.mxu0 %v3271
  %v3287 = vpop.f32.mrf.mxu0
  %v3288 = vadd.f32 0.0, %v3287
  %v3289 = vpop.f32.mrf.mxu0
  %v3290 = vadd.f32 0.0, %v3289
  %3291 = vdwg.mxu0
  %v3292 = vadd.f32 %v3247, %v3283
  %v3293 = vadd.f32 %v3248, %v3285
  %v3294 = vadd.f32 %v3249, %v3288
  %v3295 = vadd.f32 %v3250, %v3290
  %v3300 = vunpack.c.l.b16 %v2151
  %v3301 = vunpack.c.l.b16 %v2152
  %v3302 = vunpack.c.l.b16 %v2153
  %v3303 = vunpack.c.l.b16 %v2154
  %v3304 = vpack.c.b16 %v3301, %v3300
  %v3305 = vpack.c.b16 %v3303, %v3302
  %v3308 = vunpack.c.l.b16 %v2245
  %v3309 = vunpack.c.l.b16 %v2246
  %v3310 = vpack.c.b16 %v3309, %v3308
  %v3313 = vsel %vm323, %v3304, 0
  %v3316 = vsel %vm323, %v3305, 0
  %3318 = vmatpush.bf16.msra.mxu0 0
  %3319 = vmatpush.bf16.msra.mxu0 0
  %3320 = vmatpush.bf16.msra.mxu0 0
  %3321 = vmatpush.bf16.msra.mxu0 0
  %3322 = vmatpush.bf16.msra.mxu0 0
  %3323 = vmatpush.bf16.msra.mxu0 0
  %3324 = vmatpush.bf16.msra.mxu0 0
  %3325 = vmatpush.bf16.msra.mxu0 %v3310
  %3326 = vmatmul.bf16.gmra.mxu0 %v3313
  %v3327 = vpop.f32.mrf.mxu0
  %v3328 = vadd.f32 0.0, %v3327
  %v3329 = vpop.f32.mrf.mxu0
  %v3330 = vadd.f32 0.0, %v3329
  %3331 = vmatmul.bf16.gmra.mxu0 %v3316
  %v3332 = vpop.f32.mrf.mxu0
  %v3333 = vadd.f32 0.0, %v3332
  %v3334 = vpop.f32.mrf.mxu0
  %v3335 = vadd.f32 0.0, %v3334
  %3336 = vdwg.mxu0
  %v3337 = vadd.f32 %v3292, %v3328
  %v3338 = vadd.f32 %v3293, %v3330
  %v3339 = vadd.f32 %v3294, %v3333
  %v3340 = vadd.f32 %v3295, %v3335
  %v3345 = vunpack.c.l.b16 %v2155
  %v3346 = vunpack.c.l.b16 %v2156
  %v3347 = vunpack.c.l.b16 %v2157
  %v3348 = vunpack.c.l.b16 %v2158
  %v3349 = vpack.c.b16 %v3346, %v3345
  %v3350 = vpack.c.b16 %v3348, %v3347
  %v3353 = vunpack.c.l.b16 %v2247
  %v3354 = vunpack.c.l.b16 %v2248
  %v3355 = vpack.c.b16 %v3354, %v3353
  %v3358 = vsel %vm323, %v3349, 0
  %v3361 = vsel %vm323, %v3350, 0
  %3363 = vmatpush.bf16.msra.mxu0 0
  %3364 = vmatpush.bf16.msra.mxu0 0
  %3365 = vmatpush.bf16.msra.mxu0 0
  %3366 = vmatpush.bf16.msra.mxu0 0
  %3367 = vmatpush.bf16.msra.mxu0 0
  %3368 = vmatpush.bf16.msra.mxu0 0
  %3369 = vmatpush.bf16.msra.mxu0 0
  %3370 = vmatpush.bf16.msra.mxu0 %v3355
  %3371 = vmatmul.bf16.gmra.mxu0 %v3358
  %v3372 = vpop.f32.mrf.mxu0
  %v3373 = vadd.f32 0.0, %v3372
  %v3374 = vpop.f32.mrf.mxu0
  %v3375 = vadd.f32 0.0, %v3374
  %3376 = vmatmul.bf16.gmra.mxu0 %v3361
  %v3377 = vpop.f32.mrf.mxu0
  %v3378 = vadd.f32 0.0, %v3377
  %v3379 = vpop.f32.mrf.mxu0
  %v3380 = vadd.f32 0.0, %v3379
  %3381 = vdwg.mxu0
  %v3382 = vadd.f32 %v3337, %v3373
  %v3383 = vadd.f32 %v3338, %v3375
  %v3384 = vadd.f32 %v3339, %v3378
  %v3385 = vadd.f32 %v3340, %v3380
  %v3390 = vunpack.c.l.b16 %v2159
  %v3391 = vunpack.c.l.b16 %v2160
  %v3392 = vunpack.c.l.b16 %v2161
  %v3393 = vunpack.c.l.b16 %v2162
  %v3394 = vpack.c.b16 %v3391, %v3390
  %v3395 = vpack.c.b16 %v3393, %v3392
  %v3398 = vunpack.c.l.b16 %v2249
  %v3399 = vunpack.c.l.b16 %v2250
  %v3400 = vpack.c.b16 %v3399, %v3398
  %v3403 = vsel %vm323, %v3394, 0
  %v3406 = vsel %vm323, %v3395, 0
  %3408 = vmatpush.bf16.msra.mxu0 0
  %3409 = vmatpush.bf16.msra.mxu0 0
  %3410 = vmatpush.bf16.msra.mxu0 0
  %3411 = vmatpush.bf16.msra.mxu0 0
  %3412 = vmatpush.bf16.msra.mxu0 0
  %3413 = vmatpush.bf16.msra.mxu0 0
  %3414 = vmatpush.bf16.msra.mxu0 0
  %3415 = vmatpush.bf16.msra.mxu0 %v3400
  %3416 = vmatmul.bf16.gmra.mxu0 %v3403
  %v3417 = vpop.f32.mrf.mxu0
  %v3418 = vadd.f32 0.0, %v3417
  %v3419 = vpop.f32.mrf.mxu0
  %v3420 = vadd.f32 0.0, %v3419
  %3421 = vmatmul.bf16.gmra.mxu0 %v3406
  %v3422 = vpop.f32.mrf.mxu0
  %v3423 = vadd.f32 0.0, %v3422
  %v3424 = vpop.f32.mrf.mxu0
  %v3425 = vadd.f32 0.0, %v3424
  %3426 = vdwg.mxu0
  %v3427 = vadd.f32 %v3382, %v3418
  %v3428 = vadd.f32 %v3383, %v3420
  %v3429 = vadd.f32 %v3384, %v3423
  %v3430 = vadd.f32 %v3385, %v3425
  %v3435 = vunpack.c.l.b16 %v2163
  %v3436 = vunpack.c.l.b16 %v2164
  %v3437 = vunpack.c.l.b16 %v2165
  %v3438 = vunpack.c.l.b16 %v2166
  %v3439 = vpack.c.b16 %v3436, %v3435
  %v3440 = vpack.c.b16 %v3438, %v3437
  %v3443 = vunpack.c.l.b16 %v2251
  %v3444 = vunpack.c.l.b16 %v2252
  %v3445 = vpack.c.b16 %v3444, %v3443
  %v3448 = vsel %vm323, %v3439, 0
  %v3451 = vsel %vm323, %v3440, 0
  %3453 = vmatpush.bf16.msra.mxu0 0
  %3454 = vmatpush.bf16.msra.mxu0 0
  %3455 = vmatpush.bf16.msra.mxu0 0
  %3456 = vmatpush.bf16.msra.mxu0 0
  %3457 = vmatpush.bf16.msra.mxu0 0
  %3458 = vmatpush.bf16.msra.mxu0 0
  %3459 = vmatpush.bf16.msra.mxu0 0
  %3460 = vmatpush.bf16.msra.mxu0 %v3445
  %3461 = vmatmul.bf16.gmra.mxu0 %v3448
  %v3462 = vpop.f32.mrf.mxu0
  %v3463 = vadd.f32 0.0, %v3462
  %v3464 = vpop.f32.mrf.mxu0
  %v3465 = vadd.f32 0.0, %v3464
  %3466 = vmatmul.bf16.gmra.mxu0 %v3451
  %v3467 = vpop.f32.mrf.mxu0
  %v3468 = vadd.f32 0.0, %v3467
  %v3469 = vpop.f32.mrf.mxu0
  %v3470 = vadd.f32 0.0, %v3469
  %3471 = vdwg.mxu0
  %v3472 = vadd.f32 %v3427, %v3463
  %v3473 = vadd.f32 %v3428, %v3465
  %v3474 = vadd.f32 %v3429, %v3468
  %v3475 = vadd.f32 %v3430, %v3470
  %v3480 = vunpack.c.l.b16 %v2167
  %v3481 = vunpack.c.l.b16 %v2168
  %v3482 = vunpack.c.l.b16 %v2169
  %v3483 = vunpack.c.l.b16 %v2170
  %v3484 = vpack.c.b16 %v3481, %v3480
  %v3485 = vpack.c.b16 %v3483, %v3482
  %v3488 = vunpack.c.l.b16 %v2253
  %v3489 = vunpack.c.l.b16 %v2254
  %v3490 = vpack.c.b16 %v3489, %v3488
  %v3493 = vsel %vm323, %v3484, 0
  %v3496 = vsel %vm323, %v3485, 0
  %3498 = vmatpush.bf16.msra.mxu0 0
  %3499 = vmatpush.bf16.msra.mxu0 0
  %3500 = vmatpush.bf16.msra.mxu0 0
  %3501 = vmatpush.bf16.msra.mxu0 0
  %3502 = vmatpush.bf16.msra.mxu0 0
  %3503 = vmatpush.bf16.msra.mxu0 0
  %3504 = vmatpush.bf16.msra.mxu0 0
  %3505 = vmatpush.bf16.msra.mxu0 %v3490
  %3506 = vmatmul.bf16.gmra.mxu0 %v3493
  %v3507 = vpop.f32.mrf.mxu0
  %v3508 = vadd.f32 0.0, %v3507
  %v3509 = vpop.f32.mrf.mxu0
  %v3510 = vadd.f32 0.0, %v3509
  %3511 = vmatmul.bf16.gmra.mxu0 %v3496
  %v3512 = vpop.f32.mrf.mxu0
  %v3513 = vadd.f32 0.0, %v3512
  %v3514 = vpop.f32.mrf.mxu0
  %v3515 = vadd.f32 0.0, %v3514
  %3516 = vdwg.mxu0
  %v3517 = vadd.f32 %v3472, %v3508
  %v3518 = vadd.f32 %v3473, %v3510
  %v3519 = vadd.f32 %v3474, %v3513
  %v3520 = vadd.f32 %v3475, %v3515
  %v3525 = vunpack.c.l.b16 %v2171
  %v3526 = vunpack.c.l.b16 %v2172
  %v3527 = vunpack.c.l.b16 %v2173
  %v3528 = vunpack.c.l.b16 %v2174
  %v3529 = vpack.c.b16 %v3526, %v3525
  %v3530 = vpack.c.b16 %v3528, %v3527
  %v3533 = vunpack.c.l.b16 %v2255
  %v3534 = vunpack.c.l.b16 %v2256
  %v3535 = vpack.c.b16 %v3534, %v3533
  %v3538 = vsel %vm323, %v3529, 0
  %v3541 = vsel %vm323, %v3530, 0
  %3543 = vmatpush.bf16.msra.mxu0 0
  %3544 = vmatpush.bf16.msra.mxu0 0
  %3545 = vmatpush.bf16.msra.mxu0 0
  %3546 = vmatpush.bf16.msra.mxu0 0
  %3547 = vmatpush.bf16.msra.mxu0 0
  %3548 = vmatpush.bf16.msra.mxu0 0
  %3549 = vmatpush.bf16.msra.mxu0 0
  %3550 = vmatpush.bf16.msra.mxu0 %v3535
  %3551 = vmatmul.bf16.gmra.mxu0 %v3538
  %v3552 = vpop.f32.mrf.mxu0
  %v3553 = vadd.f32 0.0, %v3552
  %v3554 = vpop.f32.mrf.mxu0
  %v3555 = vadd.f32 0.0, %v3554
  %3556 = vmatmul.bf16.gmra.mxu0 %v3541
  %v3557 = vpop.f32.mrf.mxu0
  %v3558 = vadd.f32 0.0, %v3557
  %v3559 = vpop.f32.mrf.mxu0
  %v3560 = vadd.f32 0.0, %v3559
  %3561 = vdwg.mxu0
  %v3562 = vadd.f32 %v3517, %v3553
  %v3563 = vadd.f32 %v3518, %v3555
  %v3564 = vadd.f32 %v3519, %v3558
  %v3565 = vadd.f32 %v3520, %v3560
  %v3570 = vunpack.c.l.b16 %v2175
  %v3571 = vunpack.c.l.b16 %v2176
  %v3572 = vunpack.c.l.b16 %v2177
  %v3573 = vunpack.c.l.b16 %v2178
  %v3574 = vpack.c.b16 %v3571, %v3570
  %v3575 = vpack.c.b16 %v3573, %v3572
  %v3578 = vunpack.c.l.b16 %v2257
  %v3579 = vunpack.c.l.b16 %v2258
  %v3580 = vpack.c.b16 %v3579, %v3578
  %v3583 = vsel %vm323, %v3574, 0
  %v3586 = vsel %vm323, %v3575, 0
  %3588 = vmatpush.bf16.msra.mxu0 0
  %3589 = vmatpush.bf16.msra.mxu0 0
  %3590 = vmatpush.bf16.msra.mxu0 0
  %3591 = vmatpush.bf16.msra.mxu0 0
  %3592 = vmatpush.bf16.msra.mxu0 0
  %3593 = vmatpush.bf16.msra.mxu0 0
  %3594 = vmatpush.bf16.msra.mxu0 0
  %3595 = vmatpush.bf16.msra.mxu0 %v3580
  %3596 = vmatmul.bf16.gmra.mxu0 %v3583
  %v3597 = vpop.f32.mrf.mxu0
  %v3598 = vadd.f32 0.0, %v3597
  %v3599 = vpop.f32.mrf.mxu0
  %v3600 = vadd.f32 0.0, %v3599
  %3601 = vmatmul.bf16.gmra.mxu0 %v3586
  %v3602 = vpop.f32.mrf.mxu0
  %v3603 = vadd.f32 0.0, %v3602
  %v3604 = vpop.f32.mrf.mxu0
  %v3605 = vadd.f32 0.0, %v3604
  %3606 = vdwg.mxu0
  %v3607 = vadd.f32 %v3562, %v3598
  %v3608 = vadd.f32 %v3563, %v3600
  %v3609 = vadd.f32 %v3564, %v3603
  %v3610 = vadd.f32 %v3565, %v3605
  %v3615 = vunpack.c.l.b16 %v2179
  %v3616 = vunpack.c.l.b16 %v2180
  %v3617 = vunpack.c.l.b16 %v2181
  %v3618 = vunpack.c.l.b16 %v2182
  %v3619 = vpack.c.b16 %v3616, %v3615
  %v3620 = vpack.c.b16 %v3618, %v3617
  %v3623 = vunpack.c.l.b16 %v2259
  %v3624 = vunpack.c.l.b16 %v2260
  %v3625 = vpack.c.b16 %v3624, %v3623
  %v3628 = vsel %vm323, %v3619, 0
  %v3631 = vsel %vm323, %v3620, 0
  %3633 = vmatpush.bf16.msra.mxu0 0
  %3634 = vmatpush.bf16.msra.mxu0 0
  %3635 = vmatpush.bf16.msra.mxu0 0
  %3636 = vmatpush.bf16.msra.mxu0 0
  %3637 = vmatpush.bf16.msra.mxu0 0
  %3638 = vmatpush.bf16.msra.mxu0 0
  %3639 = vmatpush.bf16.msra.mxu0 0
  %3640 = vmatpush.bf16.msra.mxu0 %v3625
  %3641 = vmatmul.bf16.gmra.mxu0 %v3628
  %v3642 = vpop.f32.mrf.mxu0
  %v3643 = vadd.f32 0.0, %v3642
  %v3644 = vpop.f32.mrf.mxu0
  %v3645 = vadd.f32 0.0, %v3644
  %3646 = vmatmul.bf16.gmra.mxu0 %v3631
  %v3647 = vpop.f32.mrf.mxu0
  %v3648 = vadd.f32 0.0, %v3647
  %v3649 = vpop.f32.mrf.mxu0
  %v3650 = vadd.f32 0.0, %v3649
  %3651 = vdwg.mxu0
  %v3652 = vadd.f32 %v3607, %v3643
  %v3653 = vadd.f32 %v3608, %v3645
  %v3654 = vadd.f32 %v3609, %v3648
  %v3655 = vadd.f32 %v3610, %v3650
  %v3660 = vunpack.c.l.b16 %v2183
  %v3661 = vunpack.c.l.b16 %v2184
  %v3662 = vunpack.c.l.b16 %v2185
  %v3663 = vunpack.c.l.b16 %v2186
  %v3664 = vpack.c.b16 %v3661, %v3660
  %v3665 = vpack.c.b16 %v3663, %v3662
  %v3668 = vunpack.c.l.b16 %v2261
  %v3669 = vunpack.c.l.b16 %v2262
  %v3670 = vpack.c.b16 %v3669, %v3668
  %v3673 = vsel %vm323, %v3664, 0
  %v3676 = vsel %vm323, %v3665, 0
  %3678 = vmatpush.bf16.msra.mxu0 0
  %3679 = vmatpush.bf16.msra.mxu0 0
  %3680 = vmatpush.bf16.msra.mxu0 0
  %3681 = vmatpush.bf16.msra.mxu0 0
  %3682 = vmatpush.bf16.msra.mxu0 0
  %3683 = vmatpush.bf16.msra.mxu0 0
  %3684 = vmatpush.bf16.msra.mxu0 0
  %3685 = vmatpush.bf16.msra.mxu0 %v3670
  %3686 = vmatmul.bf16.gmra.mxu0 %v3673
  %v3687 = vpop.f32.mrf.mxu0
  %v3688 = vadd.f32 0.0, %v3687
  %v3689 = vpop.f32.mrf.mxu0
  %v3690 = vadd.f32 0.0, %v3689
  %3691 = vmatmul.bf16.gmra.mxu0 %v3676
  %v3692 = vpop.f32.mrf.mxu0
  %v3693 = vadd.f32 0.0, %v3692
  %v3694 = vpop.f32.mrf.mxu0
  %v3695 = vadd.f32 0.0, %v3694
  %3696 = vdwg.mxu0
  %v3697 = vadd.f32 %v3652, %v3688
  %v3698 = vadd.f32 %v3653, %v3690
  %v3699 = vadd.f32 %v3654, %v3693
  %v3700 = vadd.f32 %v3655, %v3695
  %v3705 = vunpack.c.l.b16 %v2187
  %v3706 = vunpack.c.l.b16 %v2188
  %v3707 = vunpack.c.l.b16 %v2189
  %v3708 = vunpack.c.l.b16 %v2190
  %v3709 = vpack.c.b16 %v3706, %v3705
  %v3710 = vpack.c.b16 %v3708, %v3707
  %v3713 = vunpack.c.l.b16 %v2263
  %v3714 = vunpack.c.l.b16 %v2264
  %v3715 = vpack.c.b16 %v3714, %v3713
  %v3718 = vsel %vm323, %v3709, 0
  %v3721 = vsel %vm323, %v3710, 0
  %3723 = vmatpush.bf16.msra.mxu0 0
  %3724 = vmatpush.bf16.msra.mxu0 0
  %3725 = vmatpush.bf16.msra.mxu0 0
  %3726 = vmatpush.bf16.msra.mxu0 0
  %3727 = vmatpush.bf16.msra.mxu0 0
  %3728 = vmatpush.bf16.msra.mxu0 0
  %3729 = vmatpush.bf16.msra.mxu0 0
  %3730 = vmatpush.bf16.msra.mxu0 %v3715
  %3731 = vmatmul.bf16.gmra.mxu0 %v3718
  %v3732 = vpop.f32.mrf.mxu0
  %v3733 = vadd.f32 0.0, %v3732
  %v3734 = vpop.f32.mrf.mxu0
  %v3735 = vadd.f32 0.0, %v3734
  %3736 = vmatmul.bf16.gmra.mxu0 %v3721
  %v3737 = vpop.f32.mrf.mxu0
  %v3738 = vadd.f32 0.0, %v3737
  %v3739 = vpop.f32.mrf.mxu0
  %v3740 = vadd.f32 0.0, %v3739
  %3741 = vdwg.mxu0
  %v3742 = vadd.f32 %v3697, %v3733
  %v3743 = vadd.f32 %v3698, %v3735
  %v3744 = vadd.f32 %v3699, %v3738
  %v3745 = vadd.f32 %v3700, %v3740
  %v3750 = vunpack.c.l.b16 %v2191
  %v3751 = vunpack.c.l.b16 %v2192
  %v3752 = vunpack.c.l.b16 %v2193
  %v3753 = vunpack.c.l.b16 %v2194
  %v3754 = vpack.c.b16 %v3751, %v3750
  %v3755 = vpack.c.b16 %v3753, %v3752
  %v3758 = vunpack.c.l.b16 %v2265
  %v3759 = vunpack.c.l.b16 %v2266
  %v3760 = vpack.c.b16 %v3759, %v3758
  %v3763 = vsel %vm323, %v3754, 0
  %v3766 = vsel %vm323, %v3755, 0
  %3768 = vmatpush.bf16.msra.mxu0 0
  %3769 = vmatpush.bf16.msra.mxu0 0
  %3770 = vmatpush.bf16.msra.mxu0 0
  %3771 = vmatpush.bf16.msra.mxu0 0
  %3772 = vmatpush.bf16.msra.mxu0 0
  %3773 = vmatpush.bf16.msra.mxu0 0
  %3774 = vmatpush.bf16.msra.mxu0 0
  %3775 = vmatpush.bf16.msra.mxu0 %v3760
  %3776 = vmatmul.bf16.gmra.mxu0 %v3763
  %v3777 = vpop.f32.mrf.mxu0
  %v3778 = vadd.f32 0.0, %v3777
  %v3779 = vpop.f32.mrf.mxu0
  %v3780 = vadd.f32 0.0, %v3779
  %3781 = vmatmul.bf16.gmra.mxu0 %v3766
  %v3782 = vpop.f32.mrf.mxu0
  %v3783 = vadd.f32 0.0, %v3782
  %v3784 = vpop.f32.mrf.mxu0
  %v3785 = vadd.f32 0.0, %v3784
  %3786 = vdwg.mxu0
  %v3787 = vadd.f32 %v3742, %v3778
  %v3788 = vadd.f32 %v3743, %v3780
  %v3789 = vadd.f32 %v3744, %v3783
  %v3790 = vadd.f32 %v3745, %v3785
  %v3795 = vunpack.c.l.b16 %v2195
  %v3796 = vunpack.c.l.b16 %v2196
  %v3797 = vunpack.c.l.b16 %v2197
  %v3798 = vunpack.c.l.b16 %v2198
  %v3799 = vpack.c.b16 %v3796, %v3795
  %v3800 = vpack.c.b16 %v3798, %v3797
  %v3803 = vunpack.c.l.b16 %v2267
  %v3804 = vunpack.c.l.b16 %v2268
  %v3805 = vpack.c.b16 %v3804, %v3803
  %v3808 = vsel %vm323, %v3799, 0
  %v3811 = vsel %vm323, %v3800, 0
  %3813 = vmatpush.bf16.msra.mxu0 0
  %3814 = vmatpush.bf16.msra.mxu0 0
  %3815 = vmatpush.bf16.msra.mxu0 0
  %3816 = vmatpush.bf16.msra.mxu0 0
  %3817 = vmatpush.bf16.msra.mxu0 0
  %3818 = vmatpush.bf16.msra.mxu0 0
  %3819 = vmatpush.bf16.msra.mxu0 0
  %3820 = vmatpush.bf16.msra.mxu0 %v3805
  %3821 = vmatmul.bf16.gmra.mxu0 %v3808
  %v3822 = vpop.f32.mrf.mxu0
  %v3823 = vadd.f32 0.0, %v3822
  %v3824 = vpop.f32.mrf.mxu0
  %v3825 = vadd.f32 0.0, %v3824
  %3826 = vmatmul.bf16.gmra.mxu0 %v3811
  %v3827 = vpop.f32.mrf.mxu0
  %v3828 = vadd.f32 0.0, %v3827
  %v3829 = vpop.f32.mrf.mxu0
  %v3830 = vadd.f32 0.0, %v3829
  %3831 = vdwg.mxu0
  %v3832 = vadd.f32 %v3787, %v3823
  %v3833 = vadd.f32 %v3788, %v3825
  %v3834 = vadd.f32 %v3789, %v3828
  %v3835 = vadd.f32 %v3790, %v3830
  %v3836 = vld [vmem:[%s5] sm:$0x1]
  %v3838 = vperm.slane %v3836, 0
  %v3840 = vadd.f32 %v3832, %v3838
  %v3841 = vadd.f32 %v3833, %v3838
  %v3842 = vadd.f32 %v3834, %v3838
  %v3843 = vadd.f32 %v3835, %v3838
  %vm3844 = vcmask 261120
  %3845 = vst.msk [vmem:[%s16] sm:$0xff] %vm3844, %v3840
  %3846 = vst.msk [vmem:[%s16 + $0x8] sm:$0xff] %vm3844, %v3841
  %3847 = vst.msk [vmem:[%s16 + $0x10] sm:$0xff] %vm3844, %v3842
  %3848 = vst.msk [vmem:[%s16 + $0x18] sm:$0xff] %vm3844, %v3843
  %vm3849 = vcmp.ge.f32.partialorder %v3840, 0.0
  %vm3850 = vcmp.ge.f32.partialorder %v3841, 0.0
  %vm3851 = vcmp.ge.f32.partialorder %v3842, 0.0
  %vm3852 = vcmp.ge.f32.partialorder %v3843, 0.0
  %v3853 = vmul.f32 %v3840, 0.1
  %v3854 = vmul.f32 %v3841, 0.1
  %v3855 = vmul.f32 %v3842, 0.1
  %v3856 = vmul.f32 %v3843, 0.1
  %v3857 = vsel %vm3849, %v3840, %v3853
  %v3858 = vsel %vm3850, %v3841, %v3854
  %v3859 = vsel %vm3851, %v3842, %v3855
  %v3860 = vsel %vm3852, %v3843, %v3856
  %v3861 = vpack.c.bf16 %v3858, %v3857
  %v3862 = vpack.c.bf16 %v3860, %v3859
  %v3863 = vld [vmem:[%s6] sm:$0xf]
  %v3864 = vld [vmem:[%s6 + $0x4] sm:$0xf]
  %v3865 = vld [vmem:[%s6 + $0x8] sm:$0xf]
  %v3866 = vld [vmem:[%s6 + $0xc] sm:$0xf]
  %v3867 = vld [vmem:[%s6 + $0x10] sm:$0xf]
  %v3868 = vld [vmem:[%s6 + $0x14] sm:$0xf]
  %v3869 = vld [vmem:[%s6 + $0x18] sm:$0xf]
  %v3870 = vld [vmem:[%s6 + $0x1c] sm:$0xf]
  %v3871 = vld [vmem:[%s6 + $0x20] sm:$0xf]
  %v3872 = vld [vmem:[%s6 + $0x24] sm:$0xf]
  %v3873 = vld [vmem:[%s6 + $0x28] sm:$0xf]
  %v3874 = vld [vmem:[%s6 + $0x2c] sm:$0xf]
  %v3875 = vld [vmem:[%s6 + $0x30] sm:$0xf]
  %v3876 = vld [vmem:[%s6 + $0x34] sm:$0xf]
  %v3877 = vld [vmem:[%s6 + $0x38] sm:$0xf]
  %v3878 = vld [vmem:[%s6 + $0x3c] sm:$0xf]
  %v3879 = vld [vmem:[%s6 + $0x40] sm:$0xf]
  %v3880 = vld [vmem:[%s6 + $0x44] sm:$0xf]
  %v3881 = vld [vmem:[%s6 + $0x48] sm:$0xf]
  %v3882 = vld [vmem:[%s6 + $0x4c] sm:$0xf]
  %v3883 = vld [vmem:[%s6 + $0x50] sm:$0xf]
  %v3884 = vld [vmem:[%s6 + $0x54] sm:$0xf]
  %v3885 = vld [vmem:[%s6 + $0x58] sm:$0xf]
  %v3886 = vld [vmem:[%s6 + $0x5c] sm:$0xf]
  %v3887 = vld [vmem:[%s6 + $0x60] sm:$0xf]
  %v3888 = vld [vmem:[%s6 + $0x64] sm:$0xf]
  %v3889 = vld [vmem:[%s6 + $0x68] sm:$0xf]
  %v3890 = vld [vmem:[%s6 + $0x6c] sm:$0xf]
  %v3919 = vunpack.c.l.b16 %v3863
  %v3920 = vunpack.c.l.b16 %v3864
  %v3921 = vunpack.c.l.b16 %v3865
  %v3922 = vunpack.c.l.b16 %v3866
  %v3923 = vunpack.c.l.b16 %v3867
  %v3924 = vunpack.c.l.b16 %v3868
  %v3925 = vunpack.c.l.b16 %v3869
  %v3926 = vunpack.c.l.b16 %v3870
  %v3927 = vunpack.c.l.b16 %v3871
  %v3928 = vunpack.c.l.b16 %v3872
  %v3929 = vunpack.c.l.b16 %v3873
  %v3930 = vunpack.c.l.b16 %v3874
  %v3931 = vunpack.c.l.b16 %v3875
  %v3932 = vunpack.c.l.b16 %v3876
  %v3933 = vunpack.c.l.b16 %v3877
  %v3934 = vunpack.c.l.b16 %v3878
  %v3935 = vunpack.c.l.b16 %v3879
  %v3936 = vunpack.c.l.b16 %v3880
  %v3937 = vunpack.c.l.b16 %v3881
  %v3938 = vunpack.c.l.b16 %v3882
  %v3939 = vunpack.c.l.b16 %v3883
  %v3940 = vunpack.c.l.b16 %v3884
  %v3941 = vunpack.c.l.b16 %v3885
  %v3942 = vunpack.c.l.b16 %v3886
  %v3943 = vunpack.c.l.b16 %v3887
  %v3944 = vunpack.c.l.b16 %v3888
  %v3945 = vunpack.c.l.b16 %v3889
  %v3946 = vunpack.c.l.b16 %v3890
  %v3947 = vpack.c.b16 %v3920, %v3919
  %v3948 = vpack.c.b16 %v3922, %v3921
  %v3949 = vpack.c.b16 %v3924, %v3923
  %v3950 = vpack.c.b16 %v3926, %v3925
  %v3951 = vpack.c.b16 %v3928, %v3927
  %v3952 = vpack.c.b16 %v3930, %v3929
  %v3953 = vpack.c.b16 %v3932, %v3931
  %v3954 = vpack.c.b16 %v3934, %v3933
  %v3955 = vpack.c.b16 %v3936, %v3935
  %v3956 = vpack.c.b16 %v3938, %v3937
  %v3957 = vpack.c.b16 %v3940, %v3939
  %v3958 = vpack.c.b16 %v3942, %v3941
  %v3959 = vpack.c.b16 %v3944, %v3943
  %v3960 = vpack.c.b16 %v3946, %v3945
  %v3962 = vsel %vm3844, %v3947, 0
  %v3965 = vsel %vm3844, %v3948, 0
  %v3968 = vsel %vm3844, %v3949, 0
  %v3971 = vsel %vm3844, %v3950, 0
  %v3974 = vsel %vm3844, %v3951, 0
  %v3977 = vsel %vm3844, %v3952, 0
  %v3980 = vsel %vm3844, %v3953, 0
  %v3983 = vsel %vm3844, %v3954, 0
  %v3986 = vsel %vm3844, %v3955, 0
  %v3989 = vsel %vm3844, %v3956, 0
  %v3992 = vsel %vm3844, %v3957, 0
  %v3995 = vsel %vm3844, %v3958, 0
  %v3998 = vsel %vm3844, %v3959, 0
  %v4001 = vsel %vm3844, %v3960, 0
  %4003 = vmatpush.bf16.msra.mxu0 0
  %4004 = vmatpush.bf16.msra.mxu0 0
  %4005 = vmatpush.bf16.msra.mxu0 0
  %4006 = vmatpush.bf16.msra.mxu0 0
  %4007 = vmatpush.bf16.msra.mxu0 0
  %4008 = vmatpush.bf16.msra.mxu0 0
  %4009 = vmatpush.bf16.msra.mxu0 %v3862
  %4010 = vmatpush.bf16.msra.mxu0 %v3861
  %4011 = vmatmul.bf16.gmra.mxu0 %v3962
  %v4012 = vpop.f32.mrf.mxu0
  %v4013 = vadd.f32 0.0, %v4012
  %v4014 = vpop.f32.mrf.mxu0
  %v4015 = vadd.f32 0.0, %v4014
  %4016 = vmatmul.bf16.gmra.mxu0 %v3965
  %v4017 = vpop.f32.mrf.mxu0
  %v4018 = vadd.f32 0.0, %v4017
  %v4019 = vpop.f32.mrf.mxu0
  %v4020 = vadd.f32 0.0, %v4019
  %4021 = vmatmul.bf16.gmra.mxu0 %v3968
  %v4022 = vpop.f32.mrf.mxu0
  %v4023 = vadd.f32 0.0, %v4022
  %v4024 = vpop.f32.mrf.mxu0
  %v4025 = vadd.f32 0.0, %v4024
  %4026 = vmatmul.bf16.gmra.mxu0 %v3971
  %v4027 = vpop.f32.mrf.mxu0
  %v4028 = vadd.f32 0.0, %v4027
  %v4029 = vpop.f32.mrf.mxu0
  %v4030 = vadd.f32 0.0, %v4029
  %4031 = vmatmul.bf16.gmra.mxu0 %v3974
  %v4032 = vpop.f32.mrf.mxu0
  %v4033 = vadd.f32 0.0, %v4032
  %v4034 = vpop.f32.mrf.mxu0
  %v4035 = vadd.f32 0.0, %v4034
  %4036 = vmatmul.bf16.gmra.mxu0 %v3977
  %v4037 = vpop.f32.mrf.mxu0
  %v4038 = vadd.f32 0.0, %v4037
  %v4039 = vpop.f32.mrf.mxu0
  %v4040 = vadd.f32 0.0, %v4039
  %4041 = vmatmul.bf16.gmra.mxu0 %v3980
  %v4042 = vpop.f32.mrf.mxu0
  %v4043 = vadd.f32 0.0, %v4042
  %v4044 = vpop.f32.mrf.mxu0
  %v4045 = vadd.f32 0.0, %v4044
  %4046 = vmatmul.bf16.gmra.mxu0 %v3983
  %v4047 = vpop.f32.mrf.mxu0
  %v4048 = vadd.f32 0.0, %v4047
  %v4049 = vpop.f32.mrf.mxu0
  %v4050 = vadd.f32 0.0, %v4049
  %4051 = vmatmul.bf16.gmra.mxu0 %v3986
  %v4052 = vpop.f32.mrf.mxu0
  %v4053 = vadd.f32 0.0, %v4052
  %v4054 = vpop.f32.mrf.mxu0
  %v4055 = vadd.f32 0.0, %v4054
  %4056 = vmatmul.bf16.gmra.mxu0 %v3989
  %v4057 = vpop.f32.mrf.mxu0
  %v4058 = vadd.f32 0.0, %v4057
  %v4059 = vpop.f32.mrf.mxu0
  %v4060 = vadd.f32 0.0, %v4059
  %4061 = vmatmul.bf16.gmra.mxu0 %v3992
  %v4062 = vpop.f32.mrf.mxu0
  %v4063 = vadd.f32 0.0, %v4062
  %v4064 = vpop.f32.mrf.mxu0
  %v4065 = vadd.f32 0.0, %v4064
  %4066 = vmatmul.bf16.gmra.mxu0 %v3995
  %v4067 = vpop.f32.mrf.mxu0
  %v4068 = vadd.f32 0.0, %v4067
  %v4069 = vpop.f32.mrf.mxu0
  %v4070 = vadd.f32 0.0, %v4069
  %4071 = vmatmul.bf16.gmra.mxu0 %v3998
  %v4072 = vpop.f32.mrf.mxu0
  %v4073 = vadd.f32 0.0, %v4072
  %v4074 = vpop.f32.mrf.mxu0
  %v4075 = vadd.f32 0.0, %v4074
  %4076 = vmatmul.bf16.gmra.mxu0 %v4001
  %v4077 = vpop.f32.mrf.mxu0
  %v4078 = vadd.f32 0.0, %v4077
  %v4079 = vpop.f32.mrf.mxu0
  %v4080 = vadd.f32 0.0, %v4079
  %4081 = vdwg.mxu0
  %v4082 = vpack.c.bf16 %v4013, %v4013
  %v4083 = vpack.c.bf16 %v4015, %v4015
  %v4084 = vpack.c.bf16 %v4018, %v4018
  %v4085 = vpack.c.bf16 %v4020, %v4020
  %v4086 = vpack.c.bf16 %v4023, %v4023
  %v4087 = vpack.c.bf16 %v4025, %v4025
  %v4088 = vpack.c.bf16 %v4028, %v4028
  %v4089 = vpack.c.bf16 %v4030, %v4030
  %v4090 = vpack.c.bf16 %v4033, %v4033
  %v4091 = vpack.c.bf16 %v4035, %v4035
  %v4092 = vpack.c.bf16 %v4038, %v4038
  %v4093 = vpack.c.bf16 %v4040, %v4040
  %v4094 = vpack.c.bf16 %v4043, %v4043
  %v4095 = vpack.c.bf16 %v4045, %v4045
  %v4096 = vpack.c.bf16 %v4048, %v4048
  %v4097 = vpack.c.bf16 %v4050, %v4050
  %v4098 = vpack.c.bf16 %v4053, %v4053
  %v4099 = vpack.c.bf16 %v4055, %v4055
  %v4100 = vpack.c.bf16 %v4058, %v4058
  %v4101 = vpack.c.bf16 %v4060, %v4060
  %v4102 = vpack.c.bf16 %v4063, %v4063
  %v4103 = vpack.c.bf16 %v4065, %v4065
  %v4104 = vpack.c.bf16 %v4068, %v4068
  %v4105 = vpack.c.bf16 %v4070, %v4070
  %v4106 = vpack.c.bf16 %v4073, %v4073
  %v4107 = vpack.c.bf16 %v4075, %v4075
  %v4108 = vpack.c.bf16 %v4078, %v4078
  %v4109 = vpack.c.bf16 %v4080, %v4080
  %v4110 = vld [vmem:[%s7 + $0xe0] sm:$0xf]
  %v4111 = vld [vmem:[%s7 + $0xe4] sm:$0xf]
  %v4112 = vld [vmem:[%s7 + $0xe8] sm:$0xf]
  %v4113 = vld [vmem:[%s7 + $0xec] sm:$0xf]
  %v4114 = vld [vmem:[%s7 + $0xf0] sm:$0xf]
  %v4115 = vld [vmem:[%s7 + $0xf4] sm:$0xf]
  %v4116 = vld [vmem:[%s7 + $0xf8] sm:$0xf]
  %v4117 = vld [vmem:[%s7 + $0xfc] sm:$0xf]
  %v4118 = vld [vmem:[%s7 + $0x100] sm:$0xf]
  %v4119 = vld [vmem:[%s7 + $0x104] sm:$0xf]
  %v4120 = vld [vmem:[%s7 + $0x108] sm:$0xf]
  %v4121 = vld [vmem:[%s7 + $0x10c] sm:$0xf]
  %v4122 = vld [vmem:[%s7 + $0x110] sm:$0xf]
  %v4123 = vld [vmem:[%s7 + $0x114] sm:$0xf]
  %v4124 = vld [vmem:[%s7 + $0x118] sm:$0xf]
  %v4125 = vld [vmem:[%s7 + $0x11c] sm:$0xf]
  %v4126 = vld [vmem:[%s7 + $0x120] sm:$0xf]
  %v4127 = vld [vmem:[%s7 + $0x124] sm:$0xf]
  %v4128 = vld [vmem:[%s7 + $0x128] sm:$0xf]
  %v4129 = vld [vmem:[%s7 + $0x12c] sm:$0xf]
  %v4130 = vld [vmem:[%s7 + $0x130] sm:$0xf]
  %v4131 = vld [vmem:[%s7 + $0x134] sm:$0xf]
  %v4132 = vld [vmem:[%s7 + $0x138] sm:$0xf]
  %v4133 = vld [vmem:[%s7 + $0x13c] sm:$0xf]
  %v4134 = vld [vmem:[%s7 + $0x140] sm:$0xf]
  %v4135 = vld [vmem:[%s7 + $0x144] sm:$0xf]
  %v4136 = vld [vmem:[%s7 + $0x148] sm:$0xf]
  %v4137 = vld [vmem:[%s7 + $0x14c] sm:$0xf]
  %v4138 = vld [vmem:[%s7 + $0x150] sm:$0xf]
  %v4139 = vld [vmem:[%s7 + $0x154] sm:$0xf]
  %v4140 = vld [vmem:[%s7 + $0x158] sm:$0xf]
  %v4141 = vld [vmem:[%s7 + $0x15c] sm:$0xf]
  %v4142 = vld [vmem:[%s7 + $0x160] sm:$0xf]
  %v4143 = vld [vmem:[%s7 + $0x164] sm:$0xf]
  %v4144 = vld [vmem:[%s7 + $0x168] sm:$0xf]
  %v4145 = vld [vmem:[%s7 + $0x16c] sm:$0xf]
  %v4146 = vld [vmem:[%s7 + $0x170] sm:$0xf]
  %v4147 = vld [vmem:[%s7 + $0x174] sm:$0xf]
  %v4148 = vld [vmem:[%s7 + $0x178] sm:$0xf]
  %v4149 = vld [vmem:[%s7 + $0x17c] sm:$0xf]
  %v4150 = vld [vmem:[%s7 + $0x180] sm:$0xf]
  %v4151 = vld [vmem:[%s7 + $0x184] sm:$0xf]
  %v4152 = vld [vmem:[%s7 + $0x188] sm:$0xf]
  %v4153 = vld [vmem:[%s7 + $0x18c] sm:$0xf]
  %v4154 = vld [vmem:[%s7 + $0x190] sm:$0xf]
  %v4155 = vld [vmem:[%s7 + $0x194] sm:$0xf]
  %v4156 = vld [vmem:[%s7 + $0x198] sm:$0xf]
  %v4157 = vld [vmem:[%s7 + $0x19c] sm:$0xf]
  %v4158 = vld [vmem:[%s7 + $0x1a0] sm:$0xf]
  %v4159 = vld [vmem:[%s7 + $0x1a4] sm:$0xf]
  %v4160 = vld [vmem:[%s7 + $0x1a8] sm:$0xf]
  %v4161 = vld [vmem:[%s7 + $0x1ac] sm:$0xf]
  %v4162 = vld [vmem:[%s7 + $0x1b0] sm:$0xf]
  %v4163 = vld [vmem:[%s7 + $0x1b4] sm:$0xf]
  %v4164 = vld [vmem:[%s7 + $0x1b8] sm:$0xf]
  %v4165 = vld [vmem:[%s7 + $0x1bc] sm:$0xf]
  %v4168 = vunpack.c.l.b16 %v4084
  %v4169 = vunpack.c.l.b16 %v4085
  %v4170 = vpack.c.b16 %v4169, %v4168
  %v4175 = vunpack.c.l.b16 %v4114
  %v4176 = vunpack.c.l.b16 %v4115
  %v4177 = vunpack.c.l.b16 %v4116
  %v4178 = vunpack.c.l.b16 %v4117
  %v4179 = vpack.c.b16 %v4176, %v4175
  %v4180 = vpack.c.b16 %v4178, %v4177
  %v4184 = vsel %vm3844, %v4170, 0
  %4186 = vmatpush.bf16.msra.mxu0 0
  %4187 = vmatpush.bf16.msra.mxu0 0
  %4188 = vmatpush.bf16.msra.mxu0 0
  %4189 = vmatpush.bf16.msra.mxu0 0
  %4190 = vmatpush.bf16.msra.mxu0 0
  %4191 = vmatpush.bf16.msra.mxu0 0
  %4192 = vmatpush.bf16.msra.mxu0 %v4180
  %4193 = vmatpush.bf16.msra.mxu0 %v4179
  %4194 = vmatmul.bf16.gmra.mxu0 %v4184
  %v4195 = vpop.f32.mrf.mxu0
  %v4196 = vadd.f32 0.0, %v4195
  %v4197 = vpop.f32.mrf.mxu0
  %v4198 = vadd.f32 0.0, %v4197
  %4199 = vdwg.mxu0
  %v4202 = vunpack.c.l.b16 %v4082
  %v4203 = vunpack.c.l.b16 %v4083
  %v4204 = vpack.c.b16 %v4203, %v4202
  %v4209 = vunpack.c.l.b16 %v4110
  %v4210 = vunpack.c.l.b16 %v4111
  %v4211 = vunpack.c.l.b16 %v4112
  %v4212 = vunpack.c.l.b16 %v4113
  %v4213 = vpack.c.b16 %v4210, %v4209
  %v4214 = vpack.c.b16 %v4212, %v4211
  %v4218 = vsel %vm3844, %v4204, 0
  %4220 = vmatpush.bf16.msra.mxu0 0
  %4221 = vmatpush.bf16.msra.mxu0 0
  %4222 = vmatpush.bf16.msra.mxu0 0
  %4223 = vmatpush.bf16.msra.mxu0 0
  %4224 = vmatpush.bf16.msra.mxu0 0
  %4225 = vmatpush.bf16.msra.mxu0 0
  %4226 = vmatpush.bf16.msra.mxu0 %v4214
  %4227 = vmatpush.bf16.msra.mxu0 %v4213
  %4228 = vmatmul.bf16.gmra.mxu0 %v4218
  %v4229 = vpop.f32.mrf.mxu0
  %v4230 = vadd.f32 %v4196, %v4229
  %v4231 = vpop.f32.mrf.mxu0
  %v4232 = vadd.f32 %v4198, %v4231
  %4233 = vdwg.mxu0
  %v4236 = vunpack.c.l.b16 %v4086
  %v4237 = vunpack.c.l.b16 %v4087
  %v4238 = vpack.c.b16 %v4237, %v4236
  %v4243 = vunpack.c.l.b16 %v4118
  %v4244 = vunpack.c.l.b16 %v4119
  %v4245 = vunpack.c.l.b16 %v4120
  %v4246 = vunpack.c.l.b16 %v4121
  %v4247 = vpack.c.b16 %v4244, %v4243
  %v4248 = vpack.c.b16 %v4246, %v4245
  %v4252 = vsel %vm3844, %v4238, 0
  %4254 = vmatpush.bf16.msra.mxu0 0
  %4255 = vmatpush.bf16.msra.mxu0 0
  %4256 = vmatpush.bf16.msra.mxu0 0
  %4257 = vmatpush.bf16.msra.mxu0 0
  %4258 = vmatpush.bf16.msra.mxu0 0
  %4259 = vmatpush.bf16.msra.mxu0 0
  %4260 = vmatpush.bf16.msra.mxu0 %v4248
  %4261 = vmatpush.bf16.msra.mxu0 %v4247
  %4262 = vmatmul.bf16.gmra.mxu0 %v4252
  %v4263 = vpop.f32.mrf.mxu0
  %v4264 = vadd.f32 0.0, %v4263
  %v4265 = vpop.f32.mrf.mxu0
  %v4266 = vadd.f32 0.0, %v4265
  %4267 = vdwg.mxu0
  %v4268 = vadd.f32 %v4230, %v4264
  %v4269 = vadd.f32 %v4232, %v4266
  %v4272 = vunpack.c.l.b16 %v4088
  %v4273 = vunpack.c.l.b16 %v4089
  %v4274 = vpack.c.b16 %v4273, %v4272
  %v4279 = vunpack.c.l.b16 %v4122
  %v4280 = vunpack.c.l.b16 %v4123
  %v4281 = vunpack.c.l.b16 %v4124
  %v4282 = vunpack.c.l.b16 %v4125
  %v4283 = vpack.c.b16 %v4280, %v4279
  %v4284 = vpack.c.b16 %v4282, %v4281
  %v4288 = vsel %vm3844, %v4274, 0
  %4290 = vmatpush.bf16.msra.mxu0 0
  %4291 = vmatpush.bf16.msra.mxu0 0
  %4292 = vmatpush.bf16.msra.mxu0 0
  %4293 = vmatpush.bf16.msra.mxu0 0
  %4294 = vmatpush.bf16.msra.mxu0 0
  %4295 = vmatpush.bf16.msra.mxu0 0
  %4296 = vmatpush.bf16.msra.mxu0 %v4284
  %4297 = vmatpush.bf16.msra.mxu0 %v4283
  %4298 = vmatmul.bf16.gmra.mxu0 %v4288
  %v4299 = vpop.f32.mrf.mxu0
  %v4300 = vadd.f32 0.0, %v4299
  %v4301 = vpop.f32.mrf.mxu0
  %v4302 = vadd.f32 0.0, %v4301
  %4303 = vdwg.mxu0
  %v4304 = vadd.f32 %v4268, %v4300
  %v4305 = vadd.f32 %v4269, %v4302
  %v4308 = vunpack.c.l.b16 %v4090
  %v4309 = vunpack.c.l.b16 %v4091
  %v4310 = vpack.c.b16 %v4309, %v4308
  %v4315 = vunpack.c.l.b16 %v4126
  %v4316 = vunpack.c.l.b16 %v4127
  %v4317 = vunpack.c.l.b16 %v4128
  %v4318 = vunpack.c.l.b16 %v4129
  %v4319 = vpack.c.b16 %v4316, %v4315
  %v4320 = vpack.c.b16 %v4318, %v4317
  %v4324 = vsel %vm3844, %v4310, 0
  %4326 = vmatpush.bf16.msra.mxu0 0
  %4327 = vmatpush.bf16.msra.mxu0 0
  %4328 = vmatpush.bf16.msra.mxu0 0
  %4329 = vmatpush.bf16.msra.mxu0 0
  %4330 = vmatpush.bf16.msra.mxu0 0
  %4331 = vmatpush.bf16.msra.mxu0 0
  %4332 = vmatpush.bf16.msra.mxu0 %v4320
  %4333 = vmatpush.bf16.msra.mxu0 %v4319
  %4334 = vmatmul.bf16.gmra.mxu0 %v4324
  %v4335 = vpop.f32.mrf.mxu0
  %v4336 = vadd.f32 0.0, %v4335
  %v4337 = vpop.f32.mrf.mxu0
  %v4338 = vadd.f32 0.0, %v4337
  %4339 = vdwg.mxu0
  %v4340 = vadd.f32 %v4304, %v4336
  %v4341 = vadd.f32 %v4305, %v4338
  %v4344 = vunpack.c.l.b16 %v4092
  %v4345 = vunpack.c.l.b16 %v4093
  %v4346 = vpack.c.b16 %v4345, %v4344
  %v4351 = vunpack.c.l.b16 %v4130
  %v4352 = vunpack.c.l.b16 %v4131
  %v4353 = vunpack.c.l.b16 %v4132
  %v4354 = vunpack.c.l.b16 %v4133
  %v4355 = vpack.c.b16 %v4352, %v4351
  %v4356 = vpack.c.b16 %v4354, %v4353
  %v4360 = vsel %vm3844, %v4346, 0
  %4362 = vmatpush.bf16.msra.mxu0 0
  %4363 = vmatpush.bf16.msra.mxu0 0
  %4364 = vmatpush.bf16.msra.mxu0 0
  %4365 = vmatpush.bf16.msra.mxu0 0
  %4366 = vmatpush.bf16.msra.mxu0 0
  %4367 = vmatpush.bf16.msra.mxu0 0
  %4368 = vmatpush.bf16.msra.mxu0 %v4356
  %4369 = vmatpush.bf16.msra.mxu0 %v4355
  %4370 = vmatmul.bf16.gmra.mxu0 %v4360
  %v4371 = vpop.f32.mrf.mxu0
  %v4372 = vadd.f32 0.0, %v4371
  %v4373 = vpop.f32.mrf.mxu0
  %v4374 = vadd.f32 0.0, %v4373
  %4375 = vdwg.mxu0
  %v4376 = vadd.f32 %v4340, %v4372
  %v4377 = vadd.f32 %v4341, %v4374
  %v4380 = vunpack.c.l.b16 %v4094
  %v4381 = vunpack.c.l.b16 %v4095
  %v4382 = vpack.c.b16 %v4381, %v4380
  %v4387 = vunpack.c.l.b16 %v4134
  %v4388 = vunpack.c.l.b16 %v4135
  %v4389 = vunpack.c.l.b16 %v4136
  %v4390 = vunpack.c.l.b16 %v4137
  %v4391 = vpack.c.b16 %v4388, %v4387
  %v4392 = vpack.c.b16 %v4390, %v4389
  %v4396 = vsel %vm3844, %v4382, 0
  %4398 = vmatpush.bf16.msra.mxu0 0
  %4399 = vmatpush.bf16.msra.mxu0 0
  %4400 = vmatpush.bf16.msra.mxu0 0
  %4401 = vmatpush.bf16.msra.mxu0 0
  %4402 = vmatpush.bf16.msra.mxu0 0
  %4403 = vmatpush.bf16.msra.mxu0 0
  %4404 = vmatpush.bf16.msra.mxu0 %v4392
  %4405 = vmatpush.bf16.msra.mxu0 %v4391
  %4406 = vmatmul.bf16.gmra.mxu0 %v4396
  %v4407 = vpop.f32.mrf.mxu0
  %v4408 = vadd.f32 0.0, %v4407
  %v4409 = vpop.f32.mrf.mxu0
  %v4410 = vadd.f32 0.0, %v4409
  %4411 = vdwg.mxu0
  %v4412 = vadd.f32 %v4376, %v4408
  %v4413 = vadd.f32 %v4377, %v4410
  %v4416 = vunpack.c.l.b16 %v4096
  %v4417 = vunpack.c.l.b16 %v4097
  %v4418 = vpack.c.b16 %v4417, %v4416
  %v4423 = vunpack.c.l.b16 %v4138
  %v4424 = vunpack.c.l.b16 %v4139
  %v4425 = vunpack.c.l.b16 %v4140
  %v4426 = vunpack.c.l.b16 %v4141
  %v4427 = vpack.c.b16 %v4424, %v4423
  %v4428 = vpack.c.b16 %v4426, %v4425
  %v4432 = vsel %vm3844, %v4418, 0
  %4434 = vmatpush.bf16.msra.mxu0 0
  %4435 = vmatpush.bf16.msra.mxu0 0
  %4436 = vmatpush.bf16.msra.mxu0 0
  %4437 = vmatpush.bf16.msra.mxu0 0
  %4438 = vmatpush.bf16.msra.mxu0 0
  %4439 = vmatpush.bf16.msra.mxu0 0
  %4440 = vmatpush.bf16.msra.mxu0 %v4428
  %4441 = vmatpush.bf16.msra.mxu0 %v4427
  %4442 = vmatmul.bf16.gmra.mxu0 %v4432
  %v4443 = vpop.f32.mrf.mxu0
  %v4444 = vadd.f32 0.0, %v4443
  %v4445 = vpop.f32.mrf.mxu0
  %v4446 = vadd.f32 0.0, %v4445
  %4447 = vdwg.mxu0
  %v4448 = vadd.f32 %v4412, %v4444
  %v4449 = vadd.f32 %v4413, %v4446
  %v4452 = vunpack.c.l.b16 %v4098
  %v4453 = vunpack.c.l.b16 %v4099
  %v4454 = vpack.c.b16 %v4453, %v4452
  %v4459 = vunpack.c.l.b16 %v4142
  %v4460 = vunpack.c.l.b16 %v4143
  %v4461 = vunpack.c.l.b16 %v4144
  %v4462 = vunpack.c.l.b16 %v4145
  %v4463 = vpack.c.b16 %v4460, %v4459
  %v4464 = vpack.c.b16 %v4462, %v4461
  %v4468 = vsel %vm3844, %v4454, 0
  %4470 = vmatpush.bf16.msra.mxu0 0
  %4471 = vmatpush.bf16.msra.mxu0 0
  %4472 = vmatpush.bf16.msra.mxu0 0
  %4473 = vmatpush.bf16.msra.mxu0 0
  %4474 = vmatpush.bf16.msra.mxu0 0
  %4475 = vmatpush.bf16.msra.mxu0 0
  %4476 = vmatpush.bf16.msra.mxu0 %v4464
  %4477 = vmatpush.bf16.msra.mxu0 %v4463
  %4478 = vmatmul.bf16.gmra.mxu0 %v4468
  %v4479 = vpop.f32.mrf.mxu0
  %v4480 = vadd.f32 0.0, %v4479
  %v4481 = vpop.f32.mrf.mxu0
  %v4482 = vadd.f32 0.0, %v4481
  %4483 = vdwg.mxu0
  %v4484 = vadd.f32 %v4448, %v4480
  %v4485 = vadd.f32 %v4449, %v4482
  %v4488 = vunpack.c.l.b16 %v4100
  %v4489 = vunpack.c.l.b16 %v4101
  %v4490 = vpack.c.b16 %v4489, %v4488
  %v4495 = vunpack.c.l.b16 %v4146
  %v4496 = vunpack.c.l.b16 %v4147
  %v4497 = vunpack.c.l.b16 %v4148
  %v4498 = vunpack.c.l.b16 %v4149
  %v4499 = vpack.c.b16 %v4496, %v4495
  %v4500 = vpack.c.b16 %v4498, %v4497
  %v4504 = vsel %vm3844, %v4490, 0
  %4506 = vmatpush.bf16.msra.mxu0 0
  %4507 = vmatpush.bf16.msra.mxu0 0
  %4508 = vmatpush.bf16.msra.mxu0 0
  %4509 = vmatpush.bf16.msra.mxu0 0
  %4510 = vmatpush.bf16.msra.mxu0 0
  %4511 = vmatpush.bf16.msra.mxu0 0
  %4512 = vmatpush.bf16.msra.mxu0 %v4500
  %4513 = vmatpush.bf16.msra.mxu0 %v4499
  %4514 = vmatmul.bf16.gmra.mxu0 %v4504
  %v4515 = vpop.f32.mrf.mxu0
  %v4516 = vadd.f32 0.0, %v4515
  %v4517 = vpop.f32.mrf.mxu0
  %v4518 = vadd.f32 0.0, %v4517
  %4519 = vdwg.mxu0
  %v4520 = vadd.f32 %v4484, %v4516
  %v4521 = vadd.f32 %v4485, %v4518
  %v4524 = vunpack.c.l.b16 %v4102
  %v4525 = vunpack.c.l.b16 %v4103
  %v4526 = vpack.c.b16 %v4525, %v4524
  %v4531 = vunpack.c.l.b16 %v4150
  %v4532 = vunpack.c.l.b16 %v4151
  %v4533 = vunpack.c.l.b16 %v4152
  %v4534 = vunpack.c.l.b16 %v4153
  %v4535 = vpack.c.b16 %v4532, %v4531
  %v4536 = vpack.c.b16 %v4534, %v4533
  %v4540 = vsel %vm3844, %v4526, 0
  %4542 = vmatpush.bf16.msra.mxu0 0
  %4543 = vmatpush.bf16.msra.mxu0 0
  %4544 = vmatpush.bf16.msra.mxu0 0
  %4545 = vmatpush.bf16.msra.mxu0 0
  %4546 = vmatpush.bf16.msra.mxu0 0
  %4547 = vmatpush.bf16.msra.mxu0 0
  %4548 = vmatpush.bf16.msra.mxu0 %v4536
  %4549 = vmatpush.bf16.msra.mxu0 %v4535
  %4550 = vmatmul.bf16.gmra.mxu0 %v4540
  %v4551 = vpop.f32.mrf.mxu0
  %v4552 = vadd.f32 0.0, %v4551
  %v4553 = vpop.f32.mrf.mxu0
  %v4554 = vadd.f32 0.0, %v4553
  %4555 = vdwg.mxu0
  %v4556 = vadd.f32 %v4520, %v4552
  %v4557 = vadd.f32 %v4521, %v4554
  %v4560 = vunpack.c.l.b16 %v4104
  %v4561 = vunpack.c.l.b16 %v4105
  %v4562 = vpack.c.b16 %v4561, %v4560
  %v4567 = vunpack.c.l.b16 %v4154
  %v4568 = vunpack.c.l.b16 %v4155
  %v4569 = vunpack.c.l.b16 %v4156
  %v4570 = vunpack.c.l.b16 %v4157
  %v4571 = vpack.c.b16 %v4568, %v4567
  %v4572 = vpack.c.b16 %v4570, %v4569
  %v4576 = vsel %vm3844, %v4562, 0
  %4578 = vmatpush.bf16.msra.mxu0 0
  %4579 = vmatpush.bf16.msra.mxu0 0
  %4580 = vmatpush.bf16.msra.mxu0 0
  %4581 = vmatpush.bf16.msra.mxu0 0
  %4582 = vmatpush.bf16.msra.mxu0 0
  %4583 = vmatpush.bf16.msra.mxu0 0
  %4584 = vmatpush.bf16.msra.mxu0 %v4572
  %4585 = vmatpush.bf16.msra.mxu0 %v4571
  %4586 = vmatmul.bf16.gmra.mxu0 %v4576
  %v4587 = vpop.f32.mrf.mxu0
  %v4588 = vadd.f32 0.0, %v4587
  %v4589 = vpop.f32.mrf.mxu0
  %v4590 = vadd.f32 0.0, %v4589
  %4591 = vdwg.mxu0
  %v4592 = vadd.f32 %v4556, %v4588
  %v4593 = vadd.f32 %v4557, %v4590
  %v4596 = vunpack.c.l.b16 %v4106
  %v4597 = vunpack.c.l.b16 %v4107
  %v4598 = vpack.c.b16 %v4597, %v4596
  %v4603 = vunpack.c.l.b16 %v4158
  %v4604 = vunpack.c.l.b16 %v4159
  %v4605 = vunpack.c.l.b16 %v4160
  %v4606 = vunpack.c.l.b16 %v4161
  %v4607 = vpack.c.b16 %v4604, %v4603
  %v4608 = vpack.c.b16 %v4606, %v4605
  %v4612 = vsel %vm3844, %v4598, 0
  %4614 = vmatpush.bf16.msra.mxu0 0
  %4615 = vmatpush.bf16.msra.mxu0 0
  %4616 = vmatpush.bf16.msra.mxu0 0
  %4617 = vmatpush.bf16.msra.mxu0 0
  %4618 = vmatpush.bf16.msra.mxu0 0
  %4619 = vmatpush.bf16.msra.mxu0 0
  %4620 = vmatpush.bf16.msra.mxu0 %v4608
  %4621 = vmatpush.bf16.msra.mxu0 %v4607
  %4622 = vmatmul.bf16.gmra.mxu0 %v4612
  %v4623 = vpop.f32.mrf.mxu0
  %v4624 = vadd.f32 0.0, %v4623
  %v4625 = vpop.f32.mrf.mxu0
  %v4626 = vadd.f32 0.0, %v4625
  %4627 = vdwg.mxu0
  %v4628 = vadd.f32 %v4592, %v4624
  %v4629 = vadd.f32 %v4593, %v4626
  %v4632 = vunpack.c.l.b16 %v4108
  %v4633 = vunpack.c.l.b16 %v4109
  %v4634 = vpack.c.b16 %v4633, %v4632
  %v4639 = vunpack.c.l.b16 %v4162
  %v4640 = vunpack.c.l.b16 %v4163
  %v4641 = vunpack.c.l.b16 %v4164
  %v4642 = vunpack.c.l.b16 %v4165
  %v4643 = vpack.c.b16 %v4640, %v4639
  %v4644 = vpack.c.b16 %v4642, %v4641
  %v4648 = vsel %vm3844, %v4634, 0
  %4650 = vmatpush.bf16.msra.mxu0 0
  %4651 = vmatpush.bf16.msra.mxu0 0
  %4652 = vmatpush.bf16.msra.mxu0 0
  %4653 = vmatpush.bf16.msra.mxu0 0
  %4654 = vmatpush.bf16.msra.mxu0 0
  %4655 = vmatpush.bf16.msra.mxu0 0
  %4656 = vmatpush.bf16.msra.mxu0 %v4644
  %4657 = vmatpush.bf16.msra.mxu0 %v4643
  %4658 = vmatmul.bf16.gmra.mxu0 %v4648
  %v4659 = vpop.f32.mrf.mxu0
  %v4660 = vadd.f32 0.0, %v4659
  %v4661 = vpop.f32.mrf.mxu0
  %v4662 = vadd.f32 0.0, %v4661
  %4663 = vdwg.mxu0
  %v4664 = vadd.f32 %v4628, %v4660
  %v4665 = vadd.f32 %v4629, %v4662
  %v4666 = vld [vmem:[%s8] sm:$0x1]
  %v4668 = vperm.slane %v4666, 0
  %v4670 = vadd.f32 %v4664, %v4668
  %v4671 = vadd.f32 %v4665, %v4668
  %4672 = vst.msk [vmem:[%s17] sm:$0xff] %vm3844, %v4670
  %4673 = vst.msk [vmem:[%s17 + $0x8] sm:$0xff] %vm3844, %v4671
  %vm4674 = vcmp.ge.f32.partialorder %v4670, 0.0
  %vm4675 = vcmp.ge.f32.partialorder %v4671, 0.0
  %v4676 = vmul.f32 %v4670, 0.1
  %v4677 = vmul.f32 %v4671, 0.1
  %v4678 = vsel %vm4674, %v4670, %v4676
  %v4679 = vsel %vm4675, %v4671, %v4677
  %v4680 = vpack.c.bf16 %v4679, %v4678
  %v4681 = vld [vmem:[%s9] sm:$0xf]
  %v4682 = vld [vmem:[%s9 + $0x4] sm:$0xf]
  %v4683 = vld [vmem:[%s9 + $0x8] sm:$0xf]
  %v4684 = vld [vmem:[%s9 + $0xc] sm:$0xf]
  %v4685 = vld [vmem:[%s9 + $0x10] sm:$0xf]
  %v4686 = vld [vmem:[%s9 + $0x14] sm:$0xf]
  %v4693 = vunpack.c.l.b16 %v4681
  %v4694 = vunpack.c.l.b16 %v4682
  %v4695 = vunpack.c.l.b16 %v4683
  %v4696 = vunpack.c.l.b16 %v4684
  %v4697 = vunpack.c.l.b16 %v4685
  %v4698 = vunpack.c.l.b16 %v4686
  %v4699 = vpack.c.b16 %v4694, %v4693
  %v4700 = vpack.c.b16 %v4696, %v4695
  %v4701 = vpack.c.b16 %v4698, %v4697
  %v4703 = vsel %vm323, %v4699, 0
  %v4706 = vsel %vm323, %v4700, 0
  %v4709 = vsel %vm323, %v4701, 0
  %4711 = vmatpush.bf16.msra.mxu0 0
  %4712 = vmatpush.bf16.msra.mxu0 0
  %4713 = vmatpush.bf16.msra.mxu0 0
  %4714 = vmatpush.bf16.msra.mxu0 0
  %4715 = vmatpush.bf16.msra.mxu0 0
  %4716 = vmatpush.bf16.msra.mxu0 0
  %4717 = vmatpush.bf16.msra.mxu0 0
  %4718 = vmatpush.bf16.msra.mxu0 %v4680
  %4719 = vmatmul.bf16.gmra.mxu0 %v4703
  %v4720 = vpop.f32.mrf.mxu0
  %v4721 = vadd.f32 0.0, %v4720
  %v4722 = vpop.f32.mrf.mxu0
  %v4723 = vadd.f32 0.0, %v4722
  %4724 = vmatmul.bf16.gmra.mxu0 %v4706
  %v4725 = vpop.f32.mrf.mxu0
  %v4726 = vadd.f32 0.0, %v4725
  %v4727 = vpop.f32.mrf.mxu0
  %v4728 = vadd.f32 0.0, %v4727
  %4729 = vmatmul.bf16.gmra.mxu0 %v4709
  %v4730 = vpop.f32.mrf.mxu0
  %v4731 = vadd.f32 0.0, %v4730
  %v4732 = vpop.f32.mrf.mxu0
  %v4733 = vadd.f32 0.0, %v4732
  %4734 = vdwg.mxu0
  %v4735 = vpack.c.bf16 %v4721, %v4721
  %v4736 = vpack.c.bf16 %v4723, %v4723
  %v4737 = vpack.c.bf16 %v4726, %v4726
  %v4738 = vpack.c.bf16 %v4728, %v4728
  %v4739 = vpack.c.bf16 %v4731, %v4731
  %v4740 = vpack.c.bf16 %v4733, %v4733
  %v4741 = vld [vmem:[%s10 + $0x60] sm:$0xf]
  %v4742 = vld [vmem:[%s10 + $0x64] sm:$0xf]
  %v4743 = vld [vmem:[%s10 + $0x68] sm:$0xf]
  %v4744 = vld [vmem:[%s10 + $0x6c] sm:$0xf]
  %v4745 = vld [vmem:[%s10 + $0x70] sm:$0xf]
  %v4746 = vld [vmem:[%s10 + $0x74] sm:$0xf]
  %v4747 = vld [vmem:[%s10 + $0x78] sm:$0xf]
  %v4748 = vld [vmem:[%s10 + $0x7c] sm:$0xf]
  %v4749 = vld [vmem:[%s10 + $0x80] sm:$0xf]
  %v4750 = vld [vmem:[%s10 + $0x84] sm:$0xf]
  %v4751 = vld [vmem:[%s10 + $0x88] sm:$0xf]
  %v4752 = vld [vmem:[%s10 + $0x8c] sm:$0xf]
  %v4755 = vunpack.c.l.b16 %v4737
  %v4756 = vunpack.c.l.b16 %v4738
  %v4757 = vpack.c.b16 %v4756, %v4755
  %v4762 = vunpack.c.l.b16 %v4745
  %v4763 = vunpack.c.l.b16 %v4746
  %v4764 = vunpack.c.l.b16 %v4747
  %v4765 = vunpack.c.l.b16 %v4748
  %v4766 = vpack.c.b16 %v4763, %v4762
  %v4767 = vpack.c.b16 %v4765, %v4764
  %v4771 = vsel %vm3844, %v4757, 0
  %4773 = vmatpush.bf16.msra.mxu0 0
  %4774 = vmatpush.bf16.msra.mxu0 0
  %4775 = vmatpush.bf16.msra.mxu0 0
  %4776 = vmatpush.bf16.msra.mxu0 0
  %4777 = vmatpush.bf16.msra.mxu0 0
  %4778 = vmatpush.bf16.msra.mxu0 0
  %4779 = vmatpush.bf16.msra.mxu0 %v4767
  %4780 = vmatpush.bf16.msra.mxu0 %v4766
  %4781 = vmatmul.bf16.gmra.mxu0 %v4771
  %v4782 = vpop.f32.mrf.mxu0
  %v4783 = vadd.f32 0.0, %v4782
  %v4784 = vpop.f32.mrf.mxu0
  %v4785 = vadd.f32 0.0, %v4784
  %4786 = vdwg.mxu0
  %v4789 = vunpack.c.l.b16 %v4735
  %v4790 = vunpack.c.l.b16 %v4736
  %v4791 = vpack.c.b16 %v4790, %v4789
  %v4796 = vunpack.c.l.b16 %v4741
  %v4797 = vunpack.c.l.b16 %v4742
  %v4798 = vunpack.c.l.b16 %v4743
  %v4799 = vunpack.c.l.b16 %v4744
  %v4800 = vpack.c.b16 %v4797, %v4796
  %v4801 = vpack.c.b16 %v4799, %v4798
  %v4805 = vsel %vm3844, %v4791, 0
  %4807 = vmatpush.bf16.msra.mxu0 0
  %4808 = vmatpush.bf16.msra.mxu0 0
  %4809 = vmatpush.bf16.msra.mxu0 0
  %4810 = vmatpush.bf16.msra.mxu0 0
  %4811 = vmatpush.bf16.msra.mxu0 0
  %4812 = vmatpush.bf16.msra.mxu0 0
  %4813 = vmatpush.bf16.msra.mxu0 %v4801
  %4814 = vmatpush.bf16.msra.mxu0 %v4800
  %4815 = vmatmul.bf16.gmra.mxu0 %v4805
  %v4816 = vpop.f32.mrf.mxu0
  %v4817 = vadd.f32 %v4783, %v4816
  %v4818 = vpop.f32.mrf.mxu0
  %v4819 = vadd.f32 %v4785, %v4818
  %4820 = vdwg.mxu0
  %v4823 = vunpack.c.l.b16 %v4739
  %v4824 = vunpack.c.l.b16 %v4740
  %v4825 = vpack.c.b16 %v4824, %v4823
  %v4830 = vunpack.c.l.b16 %v4749
  %v4831 = vunpack.c.l.b16 %v4750
  %v4832 = vunpack.c.l.b16 %v4751
  %v4833 = vunpack.c.l.b16 %v4752
  %v4834 = vpack.c.b16 %v4831, %v4830
  %v4835 = vpack.c.b16 %v4833, %v4832
  %v4839 = vsel %vm3844, %v4825, 0
  %4841 = vmatpush.bf16.msra.mxu0 0
  %4842 = vmatpush.bf16.msra.mxu0 0
  %4843 = vmatpush.bf16.msra.mxu0 0
  %4844 = vmatpush.bf16.msra.mxu0 0
  %4845 = vmatpush.bf16.msra.mxu0 0
  %4846 = vmatpush.bf16.msra.mxu0 0
  %4847 = vmatpush.bf16.msra.mxu0 %v4835
  %4848 = vmatpush.bf16.msra.mxu0 %v4834
  %4849 = vmatmul.bf16.gmra.mxu0 %v4839
  %v4850 = vpop.f32.mrf.mxu0
  %v4851 = vadd.f32 0.0, %v4850
  %v4852 = vpop.f32.mrf.mxu0
  %v4853 = vadd.f32 0.0, %v4852
  %4854 = vdwg.mxu0
  %v4855 = vadd.f32 %v4817, %v4851
  %v4856 = vadd.f32 %v4819, %v4853
  %v4857 = vld [vmem:[%s11] sm:$0x1]
  %v4859 = vperm.slane %v4857, 0
  %v4861 = vadd.f32 %v4855, %v4859
  %v4862 = vadd.f32 %v4856, %v4859
  %4863 = vst.msk [vmem:[%s18] sm:$0xff] %vm3844, %v4861
  %4864 = vst.msk [vmem:[%s18 + $0x8] sm:$0xff] %vm3844, %v4862
  %vm4865 = vcmp.ge.f32.partialorder %v4861, 0.0
  %vm4866 = vcmp.ge.f32.partialorder %v4862, 0.0
  %v4867 = vmul.f32 %v4861, 0.1
  %v4868 = vmul.f32 %v4862, 0.1
  %v4869 = vsel %vm4865, %v4861, %v4867
  %v4870 = vsel %vm4866, %v4862, %v4868
  %v4871 = vpack.c.bf16 %v4870, %v4869
  %v4872 = vld [vmem:[%s12] sm:$0xf]
  %v4873 = vld [vmem:[%s12 + $0x4] sm:$0xf]
  %v4876 = vunpack.c.l.b16 %v4872
  %v4877 = vunpack.c.l.b16 %v4873
  %v4878 = vpack.c.b16 %v4877, %v4876
  %v4880 = vsel %vm323, %v4878, 0
  %4882 = vmatpush.bf16.msra.mxu0 0
  %4883 = vmatpush.bf16.msra.mxu0 0
  %4884 = vmatpush.bf16.msra.mxu0 0
  %4885 = vmatpush.bf16.msra.mxu0 0
  %4886 = vmatpush.bf16.msra.mxu0 0
  %4887 = vmatpush.bf16.msra.mxu0 0
  %4888 = vmatpush.bf16.msra.mxu0 0
  %4889 = vmatpush.bf16.msra.mxu0 %v4871
  %4890 = vmatmul.bf16.gmra.mxu0 %v4880
  %v4891 = vpop.f32.mrf.mxu0
  %v4892 = vadd.f32 0.0, %v4891
  %v4893 = vpop.f32.mrf.mxu0
  %v4894 = vadd.f32 0.0, %v4893
  %4895 = vdwg.mxu0
  %v4896 = vpack.c.bf16 %v4894, %v4892
  %v4897 = vld [vmem:[%s13 + $0x10] sm:$0xf]
  %v4898 = vld [vmem:[%s13 + $0x14] sm:$0xf]
  %v4899 = vld [vmem:[%s13 + $0x18] sm:$0xf]
  %v4900 = vld [vmem:[%s13 + $0x1c] sm:$0xf]
  %v4901 = vld [vmem:[#allocation2] sm:$0x1]
  %v4903 = vperm.slane %v4901, 0
  %v4909 = vunpack.c.l.b16 %v4897
  %v4910 = vunpack.c.l.b16 %v4898
  %v4911 = vunpack.c.l.b16 %v4899
  %v4912 = vunpack.c.l.b16 %v4900
  %v4913 = vpack.c.b16 %v4910, %v4909
  %v4914 = vpack.c.b16 %v4912, %v4911
  %v4918 = vsel %vm3844, %v4896, 0
  %4920 = vmatpush.bf16.msra.mxu0 0
  %4921 = vmatpush.bf16.msra.mxu0 0
  %4922 = vmatpush.bf16.msra.mxu0 0
  %4923 = vmatpush.bf16.msra.mxu0 0
  %4924 = vmatpush.bf16.msra.mxu0 0
  %4925 = vmatpush.bf16.msra.mxu0 0
  %4926 = vmatpush.bf16.msra.mxu0 %v4914
  %4927 = vmatpush.bf16.msra.mxu0 %v4913
  %4928 = vmatmul.bf16.gmra.mxu0 %v4918
  %v4929 = vpop.f32.mrf.mxu0
  %v4930 = vadd.f32 %v4903, %v4929
  %v4931 = vpop.f32.mrf.mxu0
  %v4932 = vadd.f32 %v4903, %v4931
  %4933 = vdwg.mxu0
  %vm4934 = vcmask 7168
  %4935 = vst.msk [vmem:[%s19] sm:$0xff] %vm4934, %v4930
  %4936 = vst.msk [vmem:[%s19 + $0x8] sm:$0xff] %vm4934, %v4932
  // Predicated region
  $region62: #{discriminator_spec_w_forward.3} parent=0 // pred_check
    _
  $region63: #{discriminator_spec_w_forward.3} parent=0 // pred_check_branch
    %4938 = sbr.rel (0) target = $region65
  $region64: #{discriminator_spec_w_forward.3} parent=0 // pred_region
    _
  $region65: #{discriminator_spec_w_forward.3} parent=0 // pred_fallthru
    _
  // Predicated region
  $region66: #{discriminator_spec_w_forward.3} parent=0 // pred_check
    _
  $region67: #{discriminator_spec_w_forward.3} parent=0 // pred_check_branch
    %4940 = sbr.rel (0) target = $region69
  $region68: #{discriminator_spec_w_forward.3} parent=0 // pred_region
    _
  $region69: #{discriminator_spec_w_forward.3} parent=0 // pred_fallthru
    _
  // Predicated region
  $region70: #{discriminator_spec_w_forward.3} parent=0 // pred_check
    _
  $region71: #{discriminator_spec_w_forward.3} parent=0 // pred_check_branch
    %4942 = sbr.rel (0) target = $region73
  $region72: #{discriminator_spec_w_forward.3} parent=0 // pred_region
    _
  $region73: #{discriminator_spec_w_forward.3} parent=0 // pred_fallthru
    _
  // Predicated region
  $region74: #{discriminator_spec_w_forward.3} parent=0 // pred_check
    _
  $region75: #{discriminator_spec_w_forward.3} parent=0 // pred_check_branch
    %4944 = sbr.rel (0) target = $region77
  $region76: #{discriminator_spec_w_forward.3} parent=0 // pred_region
    _
  $region77: #{discriminator_spec_w_forward.3} parent=0 // pred_fallthru
    _
  // Predicated region
  $region78: #{discriminator_spec_w_forward.3} parent=0 // pred_check
    _
  $region79: #{discriminator_spec_w_forward.3} parent=0 // pred_check_branch
    %4946 = sbr.rel (0) target = $region81
  $region80: #{discriminator_spec_w_forward.3} parent=0 // pred_region
    _
  $region81: #{discriminator_spec_w_forward.3} parent=0 // pred_fallthru
    _
  // Predicated region
  $region82: #{discriminator_spec_w_forward.3} parent=0 // pred_check
    _
  $region83: #{discriminator_spec_w_forward.3} parent=0 // pred_check_branch
    %4948 = sbr.rel (0) target = $region85
  $region84: #{discriminator_spec_w_forward.3} parent=0 // pred_region
    _
  $region85: #{discriminator_spec_w_forward.3} parent=0 // pred_fallthru
    _
  // Predicated region
  $region86: #{discriminator_spec_w_forward.3} parent=0 // pred_check
    _
  $region87: #{discriminator_spec_w_forward.3} parent=0 // pred_check_branch
    %4950 = sbr.rel (0) target = $region89
  $region88: #{discriminator_spec_w_forward.3} parent=0 // pred_region
    _
  $region89: #{discriminator_spec_w_forward.3} parent=0 // pred_fallthru
    _
  // Predicated region
  $region90: #{discriminator_spec_w_forward.3} parent=0 // pred_check
    _
  $region91: #{discriminator_spec_w_forward.3} parent=0 // pred_check_branch
    %4952 = sbr.rel (0) target = $region93
  $region92: #{discriminator_spec_w_forward.3} parent=0 // pred_region
    _
  $region93: #{discriminator_spec_w_forward.3} parent=0 // pred_fallthru
    _
  // Predicated region
  $region94: #{discriminator_spec_w_forward.3} parent=0 // pred_check
    _
  $region95: #{discriminator_spec_w_forward.3} parent=0 // pred_check_branch
    %4954 = sbr.rel (0) target = $region97
  $region96: #{discriminator_spec_w_forward.3} parent=0 // pred_region
    _
  $region97: #{discriminator_spec_w_forward.3} parent=0 // pred_fallthru
    _
  // Predicated region
  $region98: #{discriminator_spec_w_forward.3} parent=0 // pred_check
    _
  $region99: #{discriminator_spec_w_forward.3} parent=0 // pred_check_branch
    %4956 = sbr.rel (0) target = $region101
  $region100: #{discriminator_spec_w_forward.3} parent=0 // pred_region
    _
  $region101: #{discriminator_spec_w_forward.3} parent=0 // pred_fallthru
    _

</llo_original>
